<compile_context>
chip_gen: v6e
topology: v6e:2x2x1
jax: 0.10.0
libtpu: 0.0.40
codegen_flags: <defaults>
</compile_context>

<pallas_src>
import math
import numpy as np

import jax
import jax.numpy as jnp
from jax.experimental import pallas as pl
from jax.experimental.pallas import tpu as pltpu


LANE = 128
TARGET_TILE_S = 8192  # f32 lanes per grid step; double-buffered in+out block
                      # is well under 1 MiB -> safe on v5e/v6e/v7x VMEM budgets.


# ----------------------------- Pallas kernel ------------------------------- #
def _seg_model_kernel(x_ref, invc_ref, w1_ref, b1_ref, w2_ref, b2_ref, o_ref):
    # x_ref   : (C, TILE_S)   channels x flattened crop-voxels (lane-dense)
    # invc_ref: (1, TILE_S)   reciprocal overlap count per voxel (fused averaging)
    # w1_ref  : (Hdim, C)     encoder 1x1x1 conv weight
    # b1_ref  : (Hdim, 1)
    # w2_ref  : (K, Hdim)     decoder 1x1x1 conv weight
    # b2_ref  : (K, 1)
    # o_ref   : (K, TILE_S)   per-voxel class scores, pre-scaled by 1/count
    x = x_ref[...]
    h = jnp.dot(w1_ref[...], x, preferred_element_type=jnp.float32) + b1_ref[...]
    h = jnp.maximum(h, 0.0)
    o = jnp.dot(w2_ref[...], h, preferred_element_type=jnp.float32) + b2_ref[...]
    o_ref[...] = o * invc_ref[...]


def run_model_on_slab(x_flat, inv_count, w1, b1, w2, b2):
    """x_flat: (C, S_total) f32, inv_count: (1, S_total) f32 -> (K, S_total) f32."""
    c, s_total = x_flat.shape
    hdim = w1.shape[0]
    k = w2.shape[0]

    # Lane-dense tiling: one big slab, padded to a multiple of TILE_S.
    if s_total >= TARGET_TILE_S:
        tile_s = TARGET_TILE_S
    else:
        tile_s = ((s_total + LANE - 1) // LANE) * LANE
    s_pad = ((s_total + tile_s - 1) // tile_s) * tile_s
    if s_pad != s_total:
        x_flat = jnp.pad(x_flat, ((0, 0), (0, s_pad - s_total)))
        inv_count = jnp.pad(inv_count, ((0, 0), (0, s_pad - s_total)))

    out = pl.pallas_call(
        _seg_model_kernel,
        out_shape=jax.ShapeDtypeStruct((k, s_pad), jnp.float32),
        grid=(s_pad // tile_s,),
        in_specs=[
            pl.BlockSpec((c, tile_s), lambda i: (0, i)),
            pl.BlockSpec((1, tile_s), lambda i: (0, i)),
            pl.BlockSpec((hdim, c), lambda i: (0, 0)),
            pl.BlockSpec((hdim, 1), lambda i: (0, 0)),
            pl.BlockSpec((k, hdim), lambda i: (0, 0)),
            pl.BlockSpec((k, 1), lambda i: (0, 0)),
        ],
        out_specs=pl.BlockSpec((k, tile_s), lambda i: (0, i)),
        compiler_params=pltpu.CompilerParams(
            dimension_semantics=("parallel",)),
    )(x_flat, inv_count, w1, b1, w2, b2)
    return out[:, :s_total]


# --------------------------- SlidingEval in JAX ----------------------------- #
class SlidingEvalJAX:
    def __init__(self, crop_size, stride_rate, class_number=2,
                 in_channels=4, hidden=32, key=None):
        if isinstance(crop_size, int):
            crop_size = (crop_size, crop_size, crop_size)
        self.crop_size = tuple(int(c) for c in crop_size)
        self.stride_rate = stride_rate
        self.class_number = class_number
        # Deterministic synthetic model weights (stand-in for encoder_t/decoder_t).
        key = jax.random.PRNGKey(42) if key is None else key
        k1, k2, k3, k4 = jax.random.split(key, 4)
        self.w1 = 0.1 * jax.random.normal(k1, (hidden, in_channels), jnp.float32)
        self.b1 = 0.1 * jax.random.normal(k2, (hidden, 1), jnp.float32)
        self.w2 = 0.1 * jax.random.normal(k3, (class_number, hidden), jnp.float32)
        self.b2 = 0.1 * jax.random.normal(k4, (class_number, 1), jnp.float32)

    # ---- padding helper (matches pad_image_to_shape semantics) ---- #
    def _pad_image_to_shape(self, img, shape):
        margin = np.zeros(6, dtype=np.int64)
        pad_depth = max(shape[0] - img.shape[1], 0)
        pad_height = max(shape[1] - img.shape[2], 0)
        pad_width = max(shape[2] - img.shape[3], 0)
        margin[0] = pad_depth // 2
        margin[1] = pad_depth // 2 + pad_depth % 2
        margin[2] = pad_height // 2
        margin[3] = pad_height // 2 + pad_height % 2
        margin[4] = pad_width // 2
        margin[5] = pad_width // 2 + pad_width % 2
        img = jnp.pad(
            img,
            ((0, 0),
             (int(margin[0]), int(margin[1])),
             (int(margin[2]), int(margin[3])),
             (int(margin[4]), int(margin[5]))),
            mode="constant", constant_values=0.0)
        return img, margin

    def _model(self, crops_flat, inv_count):
        return run_model_on_slab(crops_flat, inv_count,
                                 self.w1, self.b1, self.w2, self.b2)

    # ---- scale_process (whole-image or sliding branch) ---- #
    def scale_process(self, img):
        c, new_dep, new_rows, new_cols = img.shape
        long_size = max(new_dep, new_rows, new_cols)
        cd, ch, cw = self.crop_size
        K = self.class_number
        S = cd * ch * cw

        if long_size <= min(self.crop_size):
            # Single crop covers the whole (padded) volume.
            img_pad, margin = self._pad_image_to_shape(img, self.crop_size)
            crop_flat = img_pad.reshape(c, S)
            inv_count = jnp.ones((1, S), jnp.float32)
            score = self._model(crop_flat, inv_count).reshape(1, K, cd, ch, cw)
            score = score[:, :,
                          int(margin[0]): cd - int(margin[1]),
                          int(margin[2]): ch - int(margin[3]),
                          int(margin[4]): cw - int(margin[5])]
            return score

        # ---- sliding-window branch ---- #
        stride_0 = int(math.ceil(cd * self.stride_rate))
        stride_1 = int(math.ceil(ch * self.stride_rate))
        stride_2 = int(math.ceil(cw * self.stride_rate))
        img_pad, margin = self._pad_image_to_shape(img, self.crop_size)
        pad_dep, pad_rows, pad_cols = img_pad.shape[1], img_pad.shape[2], img_pad.shape[3]
        d_grid = int(math.ceil((pad_dep - cd) / stride_0)) + 1
        r_grid = int(math.ceil((pad_rows - ch) / stride_1)) + 1
        c_grid = int(math.ceil((pad_cols - cw) / stride_2)) + 1

        # Enumerate crop windows (static positions, same clamping as the reference).
        positions = []
        for grid_zidx in range(d_grid):
            for grid_yidx in range(c_grid):
                for grid_xidx in range(r_grid):
                    s_z = grid_zidx * stride_0
                    s_x = grid_xidx * stride_1
                    s_y = grid_yidx * stride_2
                    e_z = min(s_z + cd, pad_dep)
                    e_x = min(s_x + ch, pad_rows)
                    e_y = min(s_y + cw, pad_cols)
                    positions.append((e_z - cd, e_x - ch, e_y - cw))

        n = len(positions)
        V = pad_dep * pad_rows * pad_cols

        # Static flat index of every crop voxel inside the padded volume: (N*S,)
        dz = np.arange(cd)
        dx = np.arange(ch)
        dy = np.arange(cw)
        base = (dz[:, None, None] * (pad_rows * pad_cols)
                + dx[None, :, None] * pad_cols
                + dy[None, None, :]).reshape(-1)                          # (S,)
        starts = np.asarray(positions, dtype=np.int64)                    # (N, 3)
        start_flat = (starts[:, 0] * (pad_rows * pad_cols)
                      + starts[:, 1] * pad_cols + starts[:, 2])           # (N,)
        idx_np = (start_flat[:, None] + base[None, :]).reshape(-1)        # (N*S,)

        # Static overlap counts; fold reciprocal into the kernel epilogue.
        count_np = np.zeros((V,), dtype=np.float32)
        np.add.at(count_np, idx_np, 1.0)
        inv_count_np = (1.0 / count_np[idx_np]).reshape(1, n * S)

        idx = jnp.asarray(idx_np, dtype=jnp.int32)
        inv_count = jnp.asarray(inv_count_np, dtype=jnp.float32)

        # One gather builds the lane-dense (C, N*S) crop slab (no Python stack loop).
        img_flat = img_pad.reshape(c, V)
        crops_flat = jnp.take(img_flat, idx, axis=1)                      # (C, N*S)

        # Single Pallas call over the whole slab; scores are already / count.
        scores_flat = self._model(crops_flat, inv_count)                  # (K, N*S)

        # Single fused scatter-add produces the averaged volume directly.
        data_flat = jnp.zeros((K, V), jnp.float32).at[:, idx].add(scores_flat)
        score = data_flat.reshape(1, K, pad_dep, pad_rows, pad_cols)
        score = score[:, :,
                      int(margin[0]): pad_dep - int(margin[1]),
                      int(margin[2]): pad_rows - int(margin[3]),
                      int(margin[4]): pad_cols - int(margin[5])]
        return score

    # ---- forward ---- #
    def forward(self, img):
        img = jnp.squeeze(img)
        assert img.ndim == 4 or img.ndim == 3
        if img.ndim == 3:
            img = img[None, ...]
        _, ori_dep, ori_rows, ori_cols = img.shape
        processed_pred = jnp.zeros(
            (1, self.class_number, ori_dep, ori_rows, ori_cols), jnp.float32)
        processed_pred = processed_pred + self.scale_process(img)
        return processed_pred


if __name__ == "__main__":
    key = jax.random.PRNGKey(0)
    C, D, H, W = 4, 16, 16, 16
    # Mimic the torch module's input: batch dim that gets squeezed away.
    img = jax.random.normal(key, (1, C, D, H, W), jnp.float32)

    evaluator = SlidingEvalJAX(crop_size=8, stride_rate=0.5,
                               class_number=2, in_channels=C, hidden=32)
    out = evaluator.forward(img)
    out = jax.block_until_ready(out)
    assert out.shape == (1, 2, D, H, W), out.shape
    assert bool(jnp.all(jnp.isfinite(out)))
    print("KERNEL_OK")
</pallas_src>

<mosaic_0001>
module attributes {stable_mosaic.version = 11 : i64} {
  func.func @_seg_model_kernel(%arg0: i32, %arg1: memref<4x8192xf32, #tpu.memory_space<vmem>>, %arg2: memref<1x8192xf32, #tpu.memory_space<vmem>>, %arg3: memref<32x4xf32, #tpu.memory_space<vmem>>, %arg4: memref<32x1xf32, #tpu.memory_space<vmem>>, %arg5: memref<2x32xf32, #tpu.memory_space<vmem>>, %arg6: memref<2x1xf32, #tpu.memory_space<vmem>>, %arg7: memref<2x8192xf32, #tpu.memory_space<vmem>>) attributes {dimension_semantics = [#tpu.dimension_semantics<parallel>], iteration_bounds = array<i64: 2>, scalar_prefetch = 0 : i64, scratch_operands = 0 : i64, tpu.core_type = #tpu.core_type<tc>, window_params = [{transform_indices = @transform_0, window_bounds = array<i64: 4, 8192>}, {transform_indices = @transform_1, window_bounds = array<i64: 1, 8192>}, {pipeline_mode = #tpu.pipeline_mode<synchronous>, transform_indices = @transform_2, window_bounds = array<i64: 32, 4>}, {pipeline_mode = #tpu.pipeline_mode<synchronous>, transform_indices = @transform_3, window_bounds = array<i64: 32, 1>}, {pipeline_mode = #tpu.pipeline_mode<synchronous>, transform_indices = @transform_4, window_bounds = array<i64: 2, 32>}, {pipeline_mode = #tpu.pipeline_mode<synchronous>, transform_indices = @transform_5, window_bounds = array<i64: 2, 1>}, {transform_indices = @transform_6, window_bounds = array<i64: 2, 8192>}]} {
    %c0 = arith.constant 0 : index
    %c0_0 = arith.constant 0 : index
    %0 = vector.load %arg1[%c0, %c0_0] : memref<4x8192xf32, #tpu.memory_space<vmem>>, vector<4x8192xf32>
    %c0_1 = arith.constant 0 : index
    %c0_2 = arith.constant 0 : index
    %1 = vector.load %arg3[%c0_1, %c0_2] : memref<32x4xf32, #tpu.memory_space<vmem>>, vector<32x4xf32>
    %cst = arith.constant dense<0.000000e+00> : vector<32x8192xf32>
    %2 = tpu.matmul %1, %0, %cst {dimension_numbers = #tpu.dot_dimension_numbers<[1], [0], [0], [1], [0, 0, 1, 1], [], []>} : vector<32x4xf32>, vector<4x8192xf32>, vector<32x8192xf32> -> vector<32x8192xf32>
    %c0_3 = arith.constant 0 : index
    %c0_4 = arith.constant 0 : index
    %3 = vector.load %arg4[%c0_3, %c0_4] : memref<32x1xf32, #tpu.memory_space<vmem>>, vector<32x1xf32>
    %4 = vector.broadcast %3 : vector<32x1xf32> to vector<32x8192xf32>
    %5 = arith.addf %2, %4 : vector<32x8192xf32>
    %cst_5 = arith.constant 0.000000e+00 : f32
    %6 = vector.broadcast %cst_5 : f32 to vector<32x8192xf32>
    %7 = arith.maximumf %5, %6 : vector<32x8192xf32>
    %c0_6 = arith.constant 0 : index
    %c0_7 = arith.constant 0 : index
    %8 = vector.load %arg5[%c0_6, %c0_7] : memref<2x32xf32, #tpu.memory_space<vmem>>, vector<2x32xf32>
    %cst_8 = arith.constant dense<0.000000e+00> : vector<2x8192xf32>
    %9 = tpu.matmul %8, %7, %cst_8 {dimension_numbers = #tpu.dot_dimension_numbers<[1], [0], [0], [1], [0, 0, 1, 1], [], []>} : vector<2x32xf32>, vector<32x8192xf32>, vector<2x8192xf32> -> vector<2x8192xf32>
    %c0_9 = arith.constant 0 : index
    %c0_10 = arith.constant 0 : index
    %10 = vector.load %arg6[%c0_9, %c0_10] : memref<2x1xf32, #tpu.memory_space<vmem>>, vector<2x1xf32>
    %11 = vector.broadcast %10 : vector<2x1xf32> to vector<2x8192xf32>
    %12 = arith.addf %9, %11 : vector<2x8192xf32>
    %c0_11 = arith.constant 0 : index
    %c0_12 = arith.constant 0 : index
    %13 = vector.load %arg2[%c0_11, %c0_12] : memref<1x8192xf32, #tpu.memory_space<vmem>>, vector<1x8192xf32>
    %14 = vector.broadcast %13 : vector<1x8192xf32> to vector<2x8192xf32>
    %15 = arith.mulf %12, %14 : vector<2x8192xf32>
    %c0_13 = arith.constant 0 : index
    %c0_14 = arith.constant 0 : index
    %16 = vector.load %arg7[%c0_13, %c0_14] : memref<2x8192xf32, #tpu.memory_space<vmem>>, vector<2x8192xf32>
    tpu.vector_store %arg7[%c0_13, %c0_14], %15 {strides = array<i32>} : memref<2x8192xf32, #tpu.memory_space<vmem>>, vector<2x8192xf32>,
    return
  }
  func.func @transform_0(%arg0: i32) -> (i32, i32) {
    %c0_i32 = arith.constant 0 : i32
    %c0_i32_0 = arith.constant 0 : i32
    return %c0_i32, %arg0 : i32, i32
  }
  func.func @transform_1(%arg0: i32) -> (i32, i32) {
    %c0_i32 = arith.constant 0 : i32
    %c0_i32_0 = arith.constant 0 : i32
    return %c0_i32, %arg0 : i32, i32
  }
  func.func @transform_2(%arg0: i32) -> (i32, i32) {
    %c0_i32 = arith.constant 0 : i32
    %c0_i32_0 = arith.constant 0 : i32
    %c0_i32_1 = arith.constant 0 : i32
    return %c0_i32, %c0_i32_0 : i32, i32
  }
  func.func @transform_3(%arg0: i32) -> (i32, i32) {
    %c0_i32 = arith.constant 0 : i32
    %c0_i32_0 = arith.constant 0 : i32
    %c0_i32_1 = arith.constant 0 : i32
    return %c0_i32, %c0_i32_0 : i32, i32
  }
  func.func @transform_4(%arg0: i32) -> (i32, i32) {
    %c0_i32 = arith.constant 0 : i32
    %c0_i32_0 = arith.constant 0 : i32
    %c0_i32_1 = arith.constant 0 : i32
    return %c0_i32, %c0_i32_0 : i32, i32
  }
  func.func @transform_5(%arg0: i32) -> (i32, i32) {
    %c0_i32 = arith.constant 0 : i32
    %c0_i32_0 = arith.constant 0 : i32
    %c0_i32_1 = arith.constant 0 : i32
    return %c0_i32, %c0_i32_0 : i32, i32
  }
  func.func @transform_6(%arg0: i32) -> (i32, i32) {
    %c0_i32 = arith.constant 0 : i32
    %c0_i32_0 = arith.constant 0 : i32
    return %c0_i32, %arg0 : i32, i32
  }
}

</mosaic_0001>

<llo_original>
// kernel: tpu_custom_call.1
$region0: #{tpu_custom_call.1}
  #allocation0 [shape = 'u32[]', space=smem, size = 0x4, offset = 0x4, fixed_abs, tag = 'smem constant byte address 0x4 - core index']
  #allocation1 [shape = 'u32[144,128]{1,0:T(1,128)}', space=vmem, size = 0x12000, scoped, tag = 'internal scratch']
  %s0 = inlined_call_operand.hbm [shape: f32[4,16384], index: 0, kind: input, shape index: {}]
  %s1 = inlined_call_operand.hbm [shape: f32[1,16384], index: 1, kind: input, shape index: {}]
  %s2 = inlined_call_operand.vmem [shape: f32[32,4], index: 2, kind: input, shape index: {}]
  %s3 = inlined_call_operand.vmem [shape: f32[32,1], index: 3, kind: input, shape index: {}]
  %s4 = inlined_call_operand.vmem [shape: f32[2,32], index: 4, kind: input, shape index: {}]
  %s5 = inlined_call_operand.vmem [shape: f32[2,1], index: 5, kind: input, shape index: {}]
  %s6 = inlined_call_operand.hbm [shape: f32[2,16384], index: 6, kind: output, shape index: {}]
  %s7 = sld [smem:[#allocation0]]
  $region65: #{tpu_custom_call.1} parent=0
    _
  %s9 = ssub.s32 1, %s7
  %s10 = scalar_select 0, %s9, %s7
  $region1: #{tpu_custom_call.1} parent=0
    #allocation2 [shape = 'u8[262144]{0}', space=vmem, size = 0x40000, scoped, tag = 'input window, operand 0']
    #allocation3 [shape = 's32[2]{0}', space=sflag, size = 0x8, scoped, tag = 'scoped memory for tpu_custom_call.1']
    #allocation4 [shape = 's32[2]{0}', space=sflag, size = 0x8, scoped, tag = 'scoped memory for tpu_custom_call.1']
    #allocation5 [shape = 'u8[65536]{0}', space=vmem, size = 0x10000, scoped, tag = 'input window, operand 1']
    #allocation6 [shape = 's32[2]{0}', space=sflag, size = 0x8, scoped, tag = 'scoped memory for tpu_custom_call.1']
    #allocation7 [shape = 'u8[131072]{0}', space=vmem, size = 0x20000, scoped, tag = 'output window, operand 0']
    %11 = vsyncpa [#allocation3], 0
    %s12 = scalar_lea.sflag [#allocation3], 1
    %13 = vsyncpa %s12, 0
    %14 = vsyncpa [#allocation6], 0
    %s15 = scalar_lea.sflag [#allocation6], 1
    %16 = vsyncpa %s15, 0
    %17 = vsyncpa [#allocation4], 0
    %s18 = scalar_lea.sflag [#allocation4], 1
    %19 = vsyncpa %s18, 0
    loop: start=0, step=1, limit=4
    $region2: #{tpu_custom_call.1} parent=1 // loop_pre_header
      _
    $region3: #{tpu_custom_call.1} parent=1 // loop_header
      %s21 = sphi 0, %s25
      %p22 = scmp.ge.s32.totalorder %s21, 4
      %s31 = sphi 0, %s33
      %s34 = sphi 0, %s31
      %s35 = sphi 0, %s34
      %s51 = sphi 0, %s35
      %s57 = sphi 0, %s59
      %s60 = sphi 0, %s57
      %s61 = sphi 0, %s60
      %s77 = sphi 0, %s61
      %s81 = sphi 0, %s81
      %s83 = sphi 0, %s81
      %s84 = sphi 0, %s83
      %s98 = sphi 0, %s84
      %s102 = sphi 0, %s102
      %s104 = sphi 0, %s102
      %s105 = sphi 0, %s104
      %s119 = sphi 0, %s105
      %s123 = sphi 0, %s123
      %s125 = sphi 0, %s123
      %s126 = sphi 0, %s125
      %s140 = sphi 0, %s126
      %s144 = sphi 0, %s144
      %s146 = sphi 0, %s144
      %s147 = sphi 0, %s146
      %s161 = sphi 0, %s147
      %s167 = sphi 0, %s169
      %s170 = sphi 0, %s167
      %s171 = sphi 0, %s170
      %s187 = sphi 0, %s171
    $region4: #{tpu_custom_call.1} parent=1 // loop_header_branch
      %24 = sbr.rel (%p22) target = $region8
    $region5: #{tpu_custom_call.1} parent=1 // loop_body
      %s26 = ssub.s32 %s21, 1
      %s27 = ssub.s32 %s21, 2
      %s28 = sadd.s32 %s21, 1
      %s29 = ssub.s32 %s21, %s28
      %p30 = scmp.eq.s32.totalorder %s29, 0
      %s32 = sadd.s32 %s31, 1
      %s33 = scalar_select %p30, %s31, %s32
      %p36 = pneg %p30
      %p37 = scmp.eq.s32.totalorder %s21, 1
      %p38 = por %p36, %p37
      %p39 = scmp.ne.s32.totalorder %s31, %s34
      %p40 = scmp.eq.s32.totalorder %s21, 0
      %p41 = por %p39, %p40
      %p42 = scmp.ne.s32.totalorder %s31, %s34
      %p43 = scmp.eq.s32.totalorder %s26, 1
      %p44 = por %p42, %p43
      %p45 = scmp.ne.s32.totalorder %s34, %s35
      %p46 = scmp.eq.s32.totalorder %s26, 0
      %p47 = por %p45, %p46
      %p48 = scmp.ne.s32.totalorder %s34, %s35
      %p49 = scmp.eq.s32.totalorder %s27, 1
      %p50 = por %p48, %p49
      %p52 = scmp.ne.s32.totalorder %s35, %s51
      %p53 = scmp.eq.s32.totalorder %s27, 0
      %p54 = por %p52, %p53
      %s55 = ssub.s32 %s21, %s28
      %p56 = scmp.eq.s32.totalorder %s55, 0
      %s58 = sadd.s32 %s57, 1
      %s59 = scalar_select %p56, %s57, %s58
      %p62 = pneg %p56
      %p63 = scmp.eq.s32.totalorder %s21, 1
      %p64 = por %p62, %p63
      %p65 = scmp.ne.s32.totalorder %s57, %s60
      %p66 = scmp.eq.s32.totalorder %s21, 0
      %p67 = por %p65, %p66
      %p68 = scmp.ne.s32.totalorder %s57, %s60
      %p69 = scmp.eq.s32.totalorder %s26, 1
      %p70 = por %p68, %p69
      %p71 = scmp.ne.s32.totalorder %s60, %s61
      %p72 = scmp.eq.s32.totalorder %s26, 0
      %p73 = por %p71, %p72
      %p74 = scmp.ne.s32.totalorder %s60, %s61
      %p75 = scmp.eq.s32.totalorder %s27, 1
      %p76 = por %p74, %p75
      %p78 = scmp.ne.s32.totalorder %s61, %s77
      %p79 = scmp.eq.s32.totalorder %s27, 0
      %p80 = por %p78, %p79
      %s82 = sadd.s32 %s81, 1
      %p85 = scmp.eq.s32.totalorder %s21, 1
      %p86 = scmp.ne.s32.totalorder %s81, %s83
      %p87 = scmp.eq.s32.totalorder %s21, 0
      %p88 = por %p86, %p87
      %p89 = scmp.ne.s32.totalorder %s81, %s83
      %p90 = scmp.eq.s32.totalorder %s26, 1
      %p91 = por %p89, %p90
      %p92 = scmp.ne.s32.totalorder %s83, %s84
      %p93 = scmp.eq.s32.totalorder %s26, 0
      %p94 = por %p92, %p93
      %p95 = scmp.ne.s32.totalorder %s83, %s84
      %p96 = scmp.eq.s32.totalorder %s27, 1
      %p97 = por %p95, %p96
      %p99 = scmp.ne.s32.totalorder %s84, %s98
      %p100 = scmp.eq.s32.totalorder %s27, 0
      %p101 = por %p99, %p100
      %s103 = sadd.s32 %s102, 1
      %p106 = scmp.eq.s32.totalorder %s21, 1
      %p107 = scmp.ne.s32.totalorder %s102, %s104
      %p108 = scmp.eq.s32.totalorder %s21, 0
      %p109 = por %p107, %p108
      %p110 = scmp.ne.s32.totalorder %s102, %s104
      %p111 = scmp.eq.s32.totalorder %s26, 1
      %p112 = por %p110, %p111
      %p113 = scmp.ne.s32.totalorder %s104, %s105
      %p114 = scmp.eq.s32.totalorder %s26, 0
      %p115 = por %p113, %p114
      %p116 = scmp.ne.s32.totalorder %s104, %s105
      %p117 = scmp.eq.s32.totalorder %s27, 1
      %p118 = por %p116, %p117
      %p120 = scmp.ne.s32.totalorder %s105, %s119
      %p121 = scmp.eq.s32.totalorder %s27, 0
      %p122 = por %p120, %p121
      %s124 = sadd.s32 %s123, 1
      %p127 = scmp.eq.s32.totalorder %s21, 1
      %p128 = scmp.ne.s32.totalorder %s123, %s125
      %p129 = scmp.eq.s32.totalorder %s21, 0
      %p130 = por %p128, %p129
      %p131 = scmp.ne.s32.totalorder %s123, %s125
      %p132 = scmp.eq.s32.totalorder %s26, 1
      %p133 = por %p131, %p132
      %p134 = scmp.ne.s32.totalorder %s125, %s126
      %p135 = scmp.eq.s32.totalorder %s26, 0
      %p136 = por %p134, %p135
      %p137 = scmp.ne.s32.totalorder %s125, %s126
      %p138 = scmp.eq.s32.totalorder %s27, 1
      %p139 = por %p137, %p138
      %p141 = scmp.ne.s32.totalorder %s126, %s140
      %p142 = scmp.eq.s32.totalorder %s27, 0
      %p143 = por %p141, %p142
      %s145 = sadd.s32 %s144, 1
      %p148 = scmp.eq.s32.totalorder %s21, 1
      %p149 = scmp.ne.s32.totalorder %s144, %s146
      %p150 = scmp.eq.s32.totalorder %s21, 0
      %p151 = por %p149, %p150
      %p152 = scmp.ne.s32.totalorder %s144, %s146
      %p153 = scmp.eq.s32.totalorder %s26, 1
      %p154 = por %p152, %p153
      %p155 = scmp.ne.s32.totalorder %s146, %s147
      %p156 = scmp.eq.s32.totalorder %s26, 0
      %p157 = por %p155, %p156
      %p158 = scmp.ne.s32.totalorder %s146, %s147
      %p159 = scmp.eq.s32.totalorder %s27, 1
      %p160 = por %p158, %p159
      %p162 = scmp.ne.s32.totalorder %s147, %s161
      %p163 = scmp.eq.s32.totalorder %s27, 0
      %p164 = por %p162, %p163
      %s165 = ssub.s32 %s21, %s28
      %p166 = scmp.eq.s32.totalorder %s165, 0
      %s168 = sadd.s32 %s167, 1
      %s169 = scalar_select %p166, %s167, %s168
      %p172 = pneg %p166
      %p173 = scmp.eq.s32.totalorder %s21, 1
      %p174 = por %p172, %p173
      %p175 = scmp.ne.s32.totalorder %s167, %s170
      %p176 = scmp.eq.s32.totalorder %s21, 0
      %p177 = por %p175, %p176
      %p178 = scmp.ne.s32.totalorder %s167, %s170
      %p179 = scmp.eq.s32.totalorder %s26, 1
      %p180 = por %p178, %p179
      %p181 = scmp.ne.s32.totalorder %s170, %s171
      %p182 = scmp.eq.s32.totalorder %s26, 0
      %p183 = por %p181, %p182
      %p184 = scmp.ne.s32.totalorder %s170, %s171
      %p185 = scmp.eq.s32.totalorder %s27, 1
      %p186 = por %p184, %p185
      %p188 = scmp.ne.s32.totalorder %s171, %s187
      %p189 = scmp.eq.s32.totalorder %s27, 0
      %p190 = por %p188, %p189
      %p191 = scmp.le.s32.totalorder 1, %s21
      %p192 = scmp.lt.s32.totalorder %s21, 3
      %p193 = pnand %p191, %p192
      %p194 = pneg %p193
      // Predicated region
      $region9: #{tpu_custom_call.1} parent=5 // pred_check
        _
      $region10: #{tpu_custom_call.1} parent=5 // pred_check_branch
        %196 = sbr.rel (%p193) target = $region12
      $region11: #{tpu_custom_call.1} parent=5 // pred_region
        %s197 = ssub.s32 %s21, 1
        // Predicated region
        $region13: #{tpu_custom_call.1} parent=11 // pred_check
          %p198 = pneg %p94
        $region14: #{tpu_custom_call.1} parent=11 // pred_check_branch
          %200 = sbr.rel (%p198) target = $region16
        $region15: #{tpu_custom_call.1} parent=11 // pred_region
          _
        $region16: #{tpu_custom_call.1} parent=11 // pred_fallthru
          _
        // Predicated region
        $region17: #{tpu_custom_call.1} parent=11 // pred_check
          %p201 = pneg %p115
        $region18: #{tpu_custom_call.1} parent=11 // pred_check_branch
          %203 = sbr.rel (%p201) target = $region20
        $region19: #{tpu_custom_call.1} parent=11 // pred_region
          _
        $region20: #{tpu_custom_call.1} parent=11 // pred_fallthru
          _
        // Predicated region
        $region21: #{tpu_custom_call.1} parent=11 // pred_check
          %p204 = pneg %p136
        $region22: #{tpu_custom_call.1} parent=11 // pred_check_branch
          %206 = sbr.rel (%p204) target = $region24
        $region23: #{tpu_custom_call.1} parent=11 // pred_region
          _
        $region24: #{tpu_custom_call.1} parent=11 // pred_fallthru
          _
        // Predicated region
        $region25: #{tpu_custom_call.1} parent=11 // pred_check
          %p207 = pneg %p157
        $region26: #{tpu_custom_call.1} parent=11 // pred_check_branch
          %209 = sbr.rel (%p207) target = $region28
        $region27: #{tpu_custom_call.1} parent=11 // pred_region
          _
        $region28: #{tpu_custom_call.1} parent=11 // pred_fallthru
          _
      $region12: #{tpu_custom_call.1} parent=5 // pred_fallthru
        _
      %p210 = scmp.lt.s32.totalorder %s21, 2
      // Predicated region
      $region29: #{tpu_custom_call.1} parent=5 // pred_check
        %p211 = pneg %p210
      $region30: #{tpu_custom_call.1} parent=5 // pred_check_branch
        %213 = sbr.rel (%p211) target = $region32
      $region31: #{tpu_custom_call.1} parent=5 // pred_region
        // Predicated region
        $region33: #{tpu_custom_call.1} parent=31 // pred_check
          %p214 = pneg %p41
        $region34: #{tpu_custom_call.1} parent=31 // pred_check_branch
          %216 = sbr.rel (%p214) target = $region36
        $region35: #{tpu_custom_call.1} parent=31 // pred_region
          %s217 = sand.u32 %s31, 1
          %s218 = scalar_lea.sflag [#allocation3], %s217
          %s219 = sand.u32 %s31, 1
          %s220 = smul.addr %s219, 256
          %s221 = scalar_lea.vmem [#allocation2], %s220
          %s222 = smul.u32 64, %s21
          %s224 = ssub.s32 4096, 4096
          %225 = vsyncadd %s218, %s224
          %s226 = smul.addr %s222, 64
          %s227 = scalar_lea.hbm %s0, %s226
          %s229 = sshll.u32 %s221, 4
          %s230 = int_to_ptr.vmem [resolvable:$true] %s229
          %232 = dma.hbm_to_vmem [thread:$0]  %s227, 4096, %s230, %s218
        $region36: #{tpu_custom_call.1} parent=31 // pred_fallthru
          _
        // Predicated region
        $region37: #{tpu_custom_call.1} parent=31 // pred_check
          %p233 = pneg %p67
        $region38: #{tpu_custom_call.1} parent=31 // pred_check_branch
          %235 = sbr.rel (%p233) target = $region40
        $region39: #{tpu_custom_call.1} parent=31 // pred_region
          %s236 = sand.u32 %s57, 1
          %s237 = scalar_lea.sflag [#allocation6], %s236
          %s238 = sand.u32 %s57, 1
          %s239 = smul.addr %s238, 64
          %s240 = scalar_lea.vmem [#allocation5], %s239
          %s241 = smul.u32 64, %s21
          %s243 = ssub.s32 1024, 1024
          %244 = vsyncadd %s237, %s243
          %s245 = smul.addr %s241, 16
          %s246 = scalar_lea.hbm %s1, %s245
          %s248 = sshll.u32 %s240, 4
          %s249 = int_to_ptr.vmem [resolvable:$true] %s248
          %251 = dma.hbm_to_vmem [thread:$0]  %s246, 1024, %s249, %s237
        $region40: #{tpu_custom_call.1} parent=31 // pred_fallthru
          _
      $region32: #{tpu_custom_call.1} parent=5 // pred_fallthru
        _
      %p252 = scmp.le.s32.totalorder 1, %s21
      %p253 = scmp.lt.s32.totalorder %s21, 3
      %p254 = pnand %p252, %p253
      %p255 = pneg %p254
      // Predicated region
      $region41: #{tpu_custom_call.1} parent=5 // pred_check
        _
      $region42: #{tpu_custom_call.1} parent=5 // pred_check_branch
        %257 = sbr.rel (%p254) target = $region44
      $region43: #{tpu_custom_call.1} parent=5 // pred_region
        %s258 = ssub.s32 %s21, 1
        %s259 = sand.u32 %s34, 1
        %s260 = scalar_lea.sflag [#allocation3], %s259
        %s261 = sand.u32 %s34, 1
        %s262 = smul.addr %s261, 256
        %s263 = scalar_lea.vmem [#allocation2], %s262
        // Predicated region
        $region45: #{tpu_custom_call.1} parent=43 // pred_check
          %p264 = pneg %p47
        $region46: #{tpu_custom_call.1} parent=43 // pred_check_branch
          %266 = sbr.rel (%p264) target = $region48
        $region47: #{tpu_custom_call.1} parent=43 // pred_region
          %267 = dma.done %s260, 4096
        $region48: #{tpu_custom_call.1} parent=43 // pred_fallthru
          _
        %s268 = sand.u32 %s60, 1
        %s269 = scalar_lea.sflag [#allocation6], %s268
        %s270 = sand.u32 %s60, 1
        %s271 = smul.addr %s270, 64
        %s272 = scalar_lea.vmem [#allocation5], %s271
        // Predicated region
        $region49: #{tpu_custom_call.1} parent=43 // pred_check
          %p273 = pneg %p73
        $region50: #{tpu_custom_call.1} parent=43 // pred_check_branch
          %275 = sbr.rel (%p273) target = $region52
        $region51: #{tpu_custom_call.1} parent=43 // pred_region
          %276 = dma.done %s269, 1024
        $region52: #{tpu_custom_call.1} parent=43 // pred_fallthru
          _
        %s277 = sand.u32 %s34, 1
        %s278 = scalar_lea.sflag [#allocation3], %s277
        %s279 = sand.u32 %s34, 1
        %s280 = smul.addr %s279, 256
        %s281 = scalar_lea.vmem [#allocation2], %s280
        %p282 = pneg %p47
        %p283 = pneg %p44
        %s284 = sand.u32 %s60, 1
        %s285 = scalar_lea.sflag [#allocation6], %s284
        %s286 = sand.u32 %s60, 1
        %s287 = smul.addr %s286, 64
        %s288 = scalar_lea.vmem [#allocation5], %s287
        %p289 = pneg %p73
        %p290 = pneg %p70
        %p291 = pneg %p94
        %p292 = pneg %p91
        %p293 = pneg %p115
        %p294 = pneg %p112
        %p295 = pneg %p136
        %p296 = pneg %p133
        %p297 = pneg %p157
        %p298 = pneg %p154
        %p299 = pneg %p183
        %p300 = pneg %p180
        %s301 = sand.u32 %s170, 1
        %s302 = scalar_lea.sflag [#allocation4], %s301
        %s303 = sand.u32 %s170, 1
        %s304 = smul.addr %s303, 128
        %s305 = scalar_lea.vmem [#allocation7], %s304
        %s306 = smul.u32 64, %s26
        %s307 = smul.u32 64, %s26
        %s308 = smul.u32 64, %s26
        %v309 = vld [vmem:[%s263] sm:$0xff]
        %v310 = vld [vmem:[%s263 + $0x8] sm:$0xff]
        %v311 = vld [vmem:[%s263 + $0x10] sm:$0xff]
        %v312 = vld [vmem:[%s263 + $0x18] sm:$0xff]
        %v313 = vld [vmem:[%s263 + $0x20] sm:$0xff]
        %v314 = vld [vmem:[%s263 + $0x28] sm:$0xff]
        %v315 = vld [vmem:[%s263 + $0x30] sm:$0xff]
        %v316 = vld [vmem:[%s263 + $0x38] sm:$0xff]
        %v317 = vld [vmem:[%s263 + $0x40] sm:$0xff]
        %v318 = vld [vmem:[%s263 + $0x48] sm:$0xff]
        %v319 = vld [vmem:[%s263 + $0x50] sm:$0xff]
        %v320 = vld [vmem:[%s263 + $0x58] sm:$0xff]
        %v321 = vld [vmem:[%s263 + $0x60] sm:$0xff]
        %v322 = vld [vmem:[%s263 + $0x68] sm:$0xff]
        %v323 = vld [vmem:[%s263 + $0x70] sm:$0xff]
        %v324 = vld [vmem:[%s263 + $0x78] sm:$0xff]
        %v325 = vld [vmem:[%s263 + $0x80] sm:$0xff]
        %v326 = vld [vmem:[%s263 + $0x88] sm:$0xff]
        %v327 = vld [vmem:[%s263 + $0x90] sm:$0xff]
        %v328 = vld [vmem:[%s263 + $0x98] sm:$0xff]
        %v329 = vld [vmem:[%s263 + $0xa0] sm:$0xff]
        %v330 = vld [vmem:[%s263 + $0xa8] sm:$0xff]
        %v331 = vld [vmem:[%s263 + $0xb0] sm:$0xff]
        %v332 = vld [vmem:[%s263 + $0xb8] sm:$0xff]
        %v333 = vld [vmem:[%s263 + $0xc0] sm:$0xff]
        %v334 = vld [vmem:[%s263 + $0xc8] sm:$0xff]
        %v335 = vld [vmem:[%s263 + $0xd0] sm:$0xff]
        %v336 = vld [vmem:[%s263 + $0xd8] sm:$0xff]
        %v337 = vld [vmem:[%s263 + $0xe0] sm:$0xff]
        %v338 = vld [vmem:[%s263 + $0xe8] sm:$0xff]
        %v339 = vld [vmem:[%s263 + $0xf0] sm:$0xff]
        %v340 = vld [vmem:[%s263 + $0xf8] sm:$0xff]
        %v341 = vld [vmem:[%s2] sm:$0xff]
        %v342 = vld [vmem:[%s2 + $0x8] sm:$0xff]
        %v343 = vld [vmem:[%s2 + $0x10] sm:$0xff]
        %v344 = vld [vmem:[%s2 + $0x18] sm:$0xff]
        %v345 = vld [vmem:[%s3] sm:$0xff]
        %v346 = vld [vmem:[%s3 + $0x8] sm:$0xff]
        %v347 = vld [vmem:[%s3 + $0x10] sm:$0xff]
        %v348 = vld [vmem:[%s3 + $0x18] sm:$0xff]
        %350 = vset.pattern.permute.xlu0 0
        %351 = vperm.xlu0 %350, %v345
        %v352 = vpop.permute.xlu0 %351
        %355 = vset.pattern.permute.xlu0 0
        %356 = vperm.xlu0 %355, %v346
        %v357 = vpop.permute.xlu0 %356
        %360 = vset.pattern.permute.xlu0 0
        %361 = vperm.xlu0 %360, %v347
        %v362 = vpop.permute.xlu0 %361
        %365 = vset.pattern.permute.xlu0 0
        %366 = vperm.xlu0 %365, %v348
        %v367 = vpop.permute.xlu0 %366
        %v401 = vcombine.high %v309, %v309
        %v402 = vcombine.high %v310, %v310
        %v403 = vcombine.high %v311, %v311
        %v404 = vcombine.high %v312, %v312
        %v405 = vcombine.high %v313, %v313
        %v406 = vcombine.high %v314, %v314
        %v407 = vcombine.high %v315, %v315
        %v408 = vcombine.high %v316, %v316
        %v409 = vcombine.high %v317, %v317
        %v410 = vcombine.high %v318, %v318
        %v411 = vcombine.high %v319, %v319
        %v412 = vcombine.high %v320, %v320
        %v413 = vcombine.high %v321, %v321
        %v414 = vcombine.high %v322, %v322
        %v415 = vcombine.high %v323, %v323
        %v416 = vcombine.high %v324, %v324
        %v417 = vcombine.high %v325, %v325
        %v418 = vcombine.high %v326, %v326
        %v419 = vcombine.high %v327, %v327
        %v420 = vcombine.high %v328, %v328
        %v421 = vcombine.high %v329, %v329
        %v422 = vcombine.high %v330, %v330
        %v423 = vcombine.high %v331, %v331
        %v424 = vcombine.high %v332, %v332
        %v425 = vcombine.high %v333, %v333
        %v426 = vcombine.high %v334, %v334
        %v427 = vcombine.high %v335, %v335
        %v428 = vcombine.high %v336, %v336
        %v429 = vcombine.high %v337, %v337
        %v430 = vcombine.high %v338, %v338
        %v431 = vcombine.high %v339, %v339
        %v432 = vcombine.high %v340, %v340
        %vm433 = vcmask 31744
        %v435 = vsel %vm433, %v341, 0
        %v438 = vsel %vm433, %v342, 0
        %v441 = vsel %vm433, %v343, 0
        %v444 = vsel %vm433, %v344, 0
        %vm446 = vcmask 1043456
        %v447 = vsel %vm446, %v309, 0
        %v449 = vsel %vm446, %v401, 0
        %v451 = vsel %vm446, %v310, 0
        %v453 = vsel %vm446, %v402, 0
        %v455 = vsel %vm446, %v311, 0
        %v457 = vsel %vm446, %v403, 0
        %v459 = vsel %vm446, %v312, 0
        %v461 = vsel %vm446, %v404, 0
        %v463 = vsel %vm446, %v313, 0
        %v465 = vsel %vm446, %v405, 0
        %v467 = vsel %vm446, %v314, 0
        %v469 = vsel %vm446, %v406, 0
        %v471 = vsel %vm446, %v315, 0
        %v473 = vsel %vm446, %v407, 0
        %v475 = vsel %vm446, %v316, 0
        %v477 = vsel %vm446, %v408, 0
        %v479 = vsel %vm446, %v317, 0
        %v481 = vsel %vm446, %v409, 0
        %v483 = vsel %vm446, %v318, 0
        %v485 = vsel %vm446, %v410, 0
        %v487 = vsel %vm446, %v319, 0
        %v489 = vsel %vm446, %v411, 0
        %v491 = vsel %vm446, %v320, 0
        %v493 = vsel %vm446, %v412, 0
        %v495 = vsel %vm446, %v321, 0
        %v497 = vsel %vm446, %v413, 0
        %v499 = vsel %vm446, %v322, 0
        %v501 = vsel %vm446, %v414, 0
        %v503 = vsel %vm446, %v323, 0
        %v505 = vsel %vm446, %v415, 0
        %v507 = vsel %vm446, %v324, 0
        %v509 = vsel %vm446, %v416, 0
        %v511 = vsel %vm446, %v325, 0
        %v513 = vsel %vm446, %v417, 0
        %v515 = vsel %vm446, %v326, 0
        %v517 = vsel %vm446, %v418, 0
        %v519 = vsel %vm446, %v327, 0
        %v521 = vsel %vm446, %v419, 0
        %v523 = vsel %vm446, %v328, 0
        %v525 = vsel %vm446, %v420, 0
        %v527 = vsel %vm446, %v329, 0
        %v529 = vsel %vm446, %v421, 0
        %v531 = vsel %vm446, %v330, 0
        %v533 = vsel %vm446, %v422, 0
        %v535 = vsel %vm446, %v331, 0
        %v537 = vsel %vm446, %v423, 0
        %v539 = vsel %vm446, %v332, 0
        %v541 = vsel %vm446, %v424, 0
        %v543 = vsel %vm446, %v333, 0
        %v545 = vsel %vm446, %v425, 0
        %v547 = vsel %vm446, %v334, 0
        %v549 = vsel %vm446, %v426, 0
        %v551 = vsel %vm446, %v335, 0
        %v553 = vsel %vm446, %v427, 0
        %v555 = vsel %vm446, %v336, 0
        %v557 = vsel %vm446, %v428, 0
        %v559 = vsel %vm446, %v337, 0
        %v561 = vsel %vm446, %v429, 0
        %v563 = vsel %vm446, %v338, 0
        %v565 = vsel %vm446, %v430, 0
        %v567 = vsel %vm446, %v339, 0
        %v569 = vsel %vm446, %v431, 0
        %v571 = vsel %vm446, %v340, 0
        %v573 = vsel %vm446, %v432, 0
        %575 = vmatprep.subr.mxu0 0.0
        %576 = vmatpush1.msra.mxu0 0.0
        %577 = vmatprep.subr.mxu0 0.0
        %578 = vmatpush1.msra.mxu0 0.0
        %579 = vmatprep.subr.mxu0 0.0
        %580 = vmatpush1.msra.mxu0 0.0
        %581 = vmatprep.subr.mxu0 0.0
        %582 = vmatpush1.msra.mxu0 0.0
        %583 = vmatprep.subr.mxu0 0.0
        %584 = vmatpush1.msra.mxu0 0.0
        %585 = vmatprep.subr.mxu0 0.0
        %586 = vmatpush1.msra.mxu0 0.0
        %587 = vmatprep.subr.mxu0 0.0
        %588 = vmatpush1.msra.mxu0 0.0
        %589 = vmatprep.subr.mxu0 0.0
        %590 = vmatpush1.msra.mxu0 0.0
        %591 = vmatprep.subr.mxu0 0.0
        %592 = vmatpush1.msra.mxu0 0.0
        %593 = vmatprep.subr.mxu0 0.0
        %594 = vmatpush1.msra.mxu0 0.0
        %595 = vmatprep.subr.mxu0 0.0
        %596 = vmatpush1.msra.mxu0 0.0
        %597 = vmatprep.subr.mxu0 0.0
        %598 = vmatpush1.msra.mxu0 0.0
        %599 = vmatprep.subr.mxu0 0.0
        %600 = vmatpush1.msra.mxu0 0.0
        %601 = vmatprep.subr.mxu0 0.0
        %602 = vmatpush1.msra.mxu0 0.0
        %603 = vmatprep.subr.mxu0 0.0
        %604 = vmatpush1.msra.mxu0 0.0
        %605 = vmatprep.subr.mxu0 %v449
        %606 = vmatpush1.msra.mxu0 %v447
        %607 = vmatprep.subr.mxu0 0.0
        %608 = vmatpush2.msra.mxu0 0.0
        %609 = vmatprep.subr.mxu0 0.0
        %610 = vmatpush2.msra.mxu0 0.0
        %611 = vmatprep.subr.mxu0 0.0
        %612 = vmatpush2.msra.mxu0 0.0
        %613 = vmatprep.subr.mxu0 0.0
        %614 = vmatpush2.msra.mxu0 0.0
        %615 = vmatprep.subr.mxu0 0.0
        %616 = vmatpush2.msra.mxu0 0.0
        %617 = vmatprep.subr.mxu0 0.0
        %618 = vmatpush2.msra.mxu0 0.0
        %619 = vmatprep.subr.mxu0 0.0
        %620 = vmatpush2.msra.mxu0 0.0
        %621 = vmatprep.subr.mxu0 0.0
        %622 = vmatpush2.msra.mxu0 0.0
        %623 = vmatprep.subr.mxu0 0.0
        %624 = vmatpush2.msra.mxu0 0.0
        %625 = vmatprep.subr.mxu0 0.0
        %626 = vmatpush2.msra.mxu0 0.0
        %627 = vmatprep.subr.mxu0 0.0
        %628 = vmatpush2.msra.mxu0 0.0
        %629 = vmatprep.subr.mxu0 0.0
        %630 = vmatpush2.msra.mxu0 0.0
        %631 = vmatprep.subr.mxu0 0.0
        %632 = vmatpush2.msra.mxu0 0.0
        %633 = vmatprep.subr.mxu0 0.0
        %634 = vmatpush2.msra.mxu0 0.0
        %635 = vmatprep.subr.mxu0 0.0
        %636 = vmatpush2.msra.mxu0 0.0
        %637 = vmatprep.subr.mxu0 0.0
        %638 = vmatpush2.msra.mxu0 0.0
        %639 = vmatprep.mubr.f32.mxu0 0.0
        %640 = vmatmul.mubr.f32.gmra.mxu0 %v435
        %v641 = vpop.f32.mrf.mxu0
        %v642 = vadd.f32 %v352, %v641
        %v643 = vpop.f32.mrf.mxu0
        %v644 = vadd.f32 %v352, %v643
        %645 = vmatprep.mubr.f32.mxu0 0.0
        %646 = vmatmul.mubr.f32.gmra.mxu0 %v438
        %v647 = vpop.f32.mrf.mxu0
        %v648 = vadd.f32 %v357, %v647
        %v649 = vpop.f32.mrf.mxu0
        %v650 = vadd.f32 %v357, %v649
        %651 = vmatprep.mubr.f32.mxu0 0.0
        %652 = vmatmul.mubr.f32.gmra.mxu0 %v441
        %v653 = vpop.f32.mrf.mxu0
        %v654 = vadd.f32 %v362, %v653
        %v655 = vpop.f32.mrf.mxu0
        %v656 = vadd.f32 %v362, %v655
        %657 = vmatprep.mubr.f32.mxu0 0.0
        %658 = vmatmul.mubr.f32.gmra.mxu0 %v444
        %v659 = vpop.f32.mrf.mxu0
        %v660 = vadd.f32 %v367, %v659
        %v661 = vpop.f32.mrf.mxu0
        %v662 = vadd.f32 %v367, %v661
        %663 = vdwg.mxu0
        %664 = vmatprep.subr.mxu0 0.0
        %665 = vmatpush1.msra.mxu0 0.0
        %666 = vmatprep.subr.mxu0 0.0
        %667 = vmatpush1.msra.mxu0 0.0
        %668 = vmatprep.subr.mxu0 0.0
        %669 = vmatpush1.msra.mxu0 0.0
        %670 = vmatprep.subr.mxu0 0.0
        %671 = vmatpush1.msra.mxu0 0.0
        %672 = vmatprep.subr.mxu0 0.0
        %673 = vmatpush1.msra.mxu0 0.0
        %674 = vmatprep.subr.mxu0 0.0
        %675 = vmatpush1.msra.mxu0 0.0
        %676 = vmatprep.subr.mxu0 0.0
        %677 = vmatpush1.msra.mxu0 0.0
        %678 = vmatprep.subr.mxu0 0.0
        %679 = vmatpush1.msra.mxu0 0.0
        %680 = vmatprep.subr.mxu0 0.0
        %681 = vmatpush1.msra.mxu0 0.0
        %682 = vmatprep.subr.mxu0 0.0
        %683 = vmatpush1.msra.mxu0 0.0
        %684 = vmatprep.subr.mxu0 0.0
        %685 = vmatpush1.msra.mxu0 0.0
        %686 = vmatprep.subr.mxu0 0.0
        %687 = vmatpush1.msra.mxu0 0.0
        %688 = vmatprep.subr.mxu0 0.0
        %689 = vmatpush1.msra.mxu0 0.0
        %690 = vmatprep.subr.mxu0 0.0
        %691 = vmatpush1.msra.mxu0 0.0
        %692 = vmatprep.subr.mxu0 0.0
        %693 = vmatpush1.msra.mxu0 0.0
        %694 = vmatprep.subr.mxu0 %v453
        %695 = vmatpush1.msra.mxu0 %v451
        %696 = vmatprep.subr.mxu0 0.0
        %697 = vmatpush2.msra.mxu0 0.0
        %698 = vmatprep.subr.mxu0 0.0
        %699 = vmatpush2.msra.mxu0 0.0
        %700 = vmatprep.subr.mxu0 0.0
        %701 = vmatpush2.msra.mxu0 0.0
        %702 = vmatprep.subr.mxu0 0.0
        %703 = vmatpush2.msra.mxu0 0.0
        %704 = vmatprep.subr.mxu0 0.0
        %705 = vmatpush2.msra.mxu0 0.0
        %706 = vmatprep.subr.mxu0 0.0
        %707 = vmatpush2.msra.mxu0 0.0
        %708 = vmatprep.subr.mxu0 0.0
        %709 = vmatpush2.msra.mxu0 0.0
        %710 = vmatprep.subr.mxu0 0.0
        %711 = vmatpush2.msra.mxu0 0.0
        %712 = vmatprep.subr.mxu0 0.0
        %713 = vmatpush2.msra.mxu0 0.0
        %714 = vmatprep.subr.mxu0 0.0
        %715 = vmatpush2.msra.mxu0 0.0
        %716 = vmatprep.subr.mxu0 0.0
        %717 = vmatpush2.msra.mxu0 0.0
        %718 = vmatprep.subr.mxu0 0.0
        %719 = vmatpush2.msra.mxu0 0.0
        %720 = vmatprep.subr.mxu0 0.0
        %721 = vmatpush2.msra.mxu0 0.0
        %722 = vmatprep.subr.mxu0 0.0
        %723 = vmatpush2.msra.mxu0 0.0
        %724 = vmatprep.subr.mxu0 0.0
        %725 = vmatpush2.msra.mxu0 0.0
        %726 = vmatprep.subr.mxu0 0.0
        %727 = vmatpush2.msra.mxu0 0.0
        %728 = vmatprep.mubr.f32.mxu0 0.0
        %729 = vmatmul.mubr.f32.gmra.mxu0 %v435
        %v730 = vpop.f32.mrf.mxu0
        %v731 = vadd.f32 %v352, %v730
        %v732 = vpop.f32.mrf.mxu0
        %v733 = vadd.f32 %v352, %v732
        %734 = vmatprep.mubr.f32.mxu0 0.0
        %735 = vmatmul.mubr.f32.gmra.mxu0 %v438
        %v736 = vpop.f32.mrf.mxu0
        %v737 = vadd.f32 %v357, %v736
        %v738 = vpop.f32.mrf.mxu0
        %v739 = vadd.f32 %v357, %v738
        %740 = vmatprep.mubr.f32.mxu0 0.0
        %741 = vmatmul.mubr.f32.gmra.mxu0 %v441
        %v742 = vpop.f32.mrf.mxu0
        %v743 = vadd.f32 %v362, %v742
        %v744 = vpop.f32.mrf.mxu0
        %v745 = vadd.f32 %v362, %v744
        %746 = vmatprep.mubr.f32.mxu0 0.0
        %747 = vmatmul.mubr.f32.gmra.mxu0 %v444
        %v748 = vpop.f32.mrf.mxu0
        %v749 = vadd.f32 %v367, %v748
        %v750 = vpop.f32.mrf.mxu0
        %v751 = vadd.f32 %v367, %v750
        %752 = vdwg.mxu0
        %753 = vmatprep.subr.mxu0 0.0
        %754 = vmatpush1.msra.mxu0 0.0
        %755 = vmatprep.subr.mxu0 0.0
        %756 = vmatpush1.msra.mxu0 0.0
        %757 = vmatprep.subr.mxu0 0.0
        %758 = vmatpush1.msra.mxu0 0.0
        %759 = vmatprep.subr.mxu0 0.0
        %760 = vmatpush1.msra.mxu0 0.0
        %761 = vmatprep.subr.mxu0 0.0
        %762 = vmatpush1.msra.mxu0 0.0
        %763 = vmatprep.subr.mxu0 0.0
        %764 = vmatpush1.msra.mxu0 0.0
        %765 = vmatprep.subr.mxu0 0.0
        %766 = vmatpush1.msra.mxu0 0.0
        %767 = vmatprep.subr.mxu0 0.0
        %768 = vmatpush1.msra.mxu0 0.0
        %769 = vmatprep.subr.mxu0 0.0
        %770 = vmatpush1.msra.mxu0 0.0
        %771 = vmatprep.subr.mxu0 0.0
        %772 = vmatpush1.msra.mxu0 0.0
        %773 = vmatprep.subr.mxu0 0.0
        %774 = vmatpush1.msra.mxu0 0.0
        %775 = vmatprep.subr.mxu0 0.0
        %776 = vmatpush1.msra.mxu0 0.0
        %777 = vmatprep.subr.mxu0 0.0
        %778 = vmatpush1.msra.mxu0 0.0
        %779 = vmatprep.subr.mxu0 0.0
        %780 = vmatpush1.msra.mxu0 0.0
        %781 = vmatprep.subr.mxu0 0.0
        %782 = vmatpush1.msra.mxu0 0.0
        %783 = vmatprep.subr.mxu0 %v457
        %784 = vmatpush1.msra.mxu0 %v455
        %785 = vmatprep.subr.mxu0 0.0
        %786 = vmatpush2.msra.mxu0 0.0
        %787 = vmatprep.subr.mxu0 0.0
        %788 = vmatpush2.msra.mxu0 0.0
        %789 = vmatprep.subr.mxu0 0.0
        %790 = vmatpush2.msra.mxu0 0.0
        %791 = vmatprep.subr.mxu0 0.0
        %792 = vmatpush2.msra.mxu0 0.0
        %793 = vmatprep.subr.mxu0 0.0
        %794 = vmatpush2.msra.mxu0 0.0
        %795 = vmatprep.subr.mxu0 0.0
        %796 = vmatpush2.msra.mxu0 0.0
        %797 = vmatprep.subr.mxu0 0.0
        %798 = vmatpush2.msra.mxu0 0.0
        %799 = vmatprep.subr.mxu0 0.0
        %800 = vmatpush2.msra.mxu0 0.0
        %801 = vmatprep.subr.mxu0 0.0
        %802 = vmatpush2.msra.mxu0 0.0
        %803 = vmatprep.subr.mxu0 0.0
        %804 = vmatpush2.msra.mxu0 0.0
        %805 = vmatprep.subr.mxu0 0.0
        %806 = vmatpush2.msra.mxu0 0.0
        %807 = vmatprep.subr.mxu0 0.0
        %808 = vmatpush2.msra.mxu0 0.0
        %809 = vmatprep.subr.mxu0 0.0
        %810 = vmatpush2.msra.mxu0 0.0
        %811 = vmatprep.subr.mxu0 0.0
        %812 = vmatpush2.msra.mxu0 0.0
        %813 = vmatprep.subr.mxu0 0.0
        %814 = vmatpush2.msra.mxu0 0.0
        %815 = vmatprep.subr.mxu0 0.0
        %816 = vmatpush2.msra.mxu0 0.0
        %817 = vmatprep.mubr.f32.mxu0 0.0
        %818 = vmatmul.mubr.f32.gmra.mxu0 %v435
        %v819 = vpop.f32.mrf.mxu0
        %v820 = vadd.f32 %v352, %v819
        %v821 = vpop.f32.mrf.mxu0
        %v822 = vadd.f32 %v352, %v821
        %823 = vmatprep.mubr.f32.mxu0 0.0
        %824 = vmatmul.mubr.f32.gmra.mxu0 %v438
        %v825 = vpop.f32.mrf.mxu0
        %v826 = vadd.f32 %v357, %v825
        %v827 = vpop.f32.mrf.mxu0
        %v828 = vadd.f32 %v357, %v827
        %829 = vmatprep.mubr.f32.mxu0 0.0
        %830 = vmatmul.mubr.f32.gmra.mxu0 %v441
        %v831 = vpop.f32.mrf.mxu0
        %v832 = vadd.f32 %v362, %v831
        %v833 = vpop.f32.mrf.mxu0
        %v834 = vadd.f32 %v362, %v833
        %835 = vmatprep.mubr.f32.mxu0 0.0
        %836 = vmatmul.mubr.f32.gmra.mxu0 %v444
        %v837 = vpop.f32.mrf.mxu0
        %v838 = vadd.f32 %v367, %v837
        %v839 = vpop.f32.mrf.mxu0
        %v840 = vadd.f32 %v367, %v839
        %841 = vdwg.mxu0
        %842 = vmatprep.subr.mxu0 0.0
        %843 = vmatpush1.msra.mxu0 0.0
        %844 = vmatprep.subr.mxu0 0.0
        %845 = vmatpush1.msra.mxu0 0.0
        %846 = vmatprep.subr.mxu0 0.0
        %847 = vmatpush1.msra.mxu0 0.0
        %848 = vmatprep.subr.mxu0 0.0
        %849 = vmatpush1.msra.mxu0 0.0
        %850 = vmatprep.subr.mxu0 0.0
        %851 = vmatpush1.msra.mxu0 0.0
        %852 = vmatprep.subr.mxu0 0.0
        %853 = vmatpush1.msra.mxu0 0.0
        %854 = vmatprep.subr.mxu0 0.0
        %855 = vmatpush1.msra.mxu0 0.0
        %856 = vmatprep.subr.mxu0 0.0
        %857 = vmatpush1.msra.mxu0 0.0
        %858 = vmatprep.subr.mxu0 0.0
        %859 = vmatpush1.msra.mxu0 0.0
        %860 = vmatprep.subr.mxu0 0.0
        %861 = vmatpush1.msra.mxu0 0.0
        %862 = vmatprep.subr.mxu0 0.0
        %863 = vmatpush1.msra.mxu0 0.0
        %864 = vmatprep.subr.mxu0 0.0
        %865 = vmatpush1.msra.mxu0 0.0
        %866 = vmatprep.subr.mxu0 0.0
        %867 = vmatpush1.msra.mxu0 0.0
        %868 = vmatprep.subr.mxu0 0.0
        %869 = vmatpush1.msra.mxu0 0.0
        %870 = vmatprep.subr.mxu0 0.0
        %871 = vmatpush1.msra.mxu0 0.0
        %872 = vmatprep.subr.mxu0 %v461
        %873 = vmatpush1.msra.mxu0 %v459
        %874 = vmatprep.subr.mxu0 0.0
        %875 = vmatpush2.msra.mxu0 0.0
        %876 = vmatprep.subr.mxu0 0.0
        %877 = vmatpush2.msra.mxu0 0.0
        %878 = vmatprep.subr.mxu0 0.0
        %879 = vmatpush2.msra.mxu0 0.0
        %880 = vmatprep.subr.mxu0 0.0
        %881 = vmatpush2.msra.mxu0 0.0
        %882 = vmatprep.subr.mxu0 0.0
        %883 = vmatpush2.msra.mxu0 0.0
        %884 = vmatprep.subr.mxu0 0.0
        %885 = vmatpush2.msra.mxu0 0.0
        %886 = vmatprep.subr.mxu0 0.0
        %887 = vmatpush2.msra.mxu0 0.0
        %888 = vmatprep.subr.mxu0 0.0
        %889 = vmatpush2.msra.mxu0 0.0
        %890 = vmatprep.subr.mxu0 0.0
        %891 = vmatpush2.msra.mxu0 0.0
        %892 = vmatprep.subr.mxu0 0.0
        %893 = vmatpush2.msra.mxu0 0.0
        %894 = vmatprep.subr.mxu0 0.0
        %895 = vmatpush2.msra.mxu0 0.0
        %896 = vmatprep.subr.mxu0 0.0
        %897 = vmatpush2.msra.mxu0 0.0
        %898 = vmatprep.subr.mxu0 0.0
        %899 = vmatpush2.msra.mxu0 0.0
        %900 = vmatprep.subr.mxu0 0.0
        %901 = vmatpush2.msra.mxu0 0.0
        %902 = vmatprep.subr.mxu0 0.0
        %903 = vmatpush2.msra.mxu0 0.0
        %904 = vmatprep.subr.mxu0 0.0
        %905 = vmatpush2.msra.mxu0 0.0
        %906 = vmatprep.mubr.f32.mxu0 0.0
        %907 = vmatmul.mubr.f32.gmra.mxu0 %v435
        %v908 = vpop.f32.mrf.mxu0
        %v909 = vadd.f32 %v352, %v908
        %v910 = vpop.f32.mrf.mxu0
        %v911 = vadd.f32 %v352, %v910
        %912 = vmatprep.mubr.f32.mxu0 0.0
        %913 = vmatmul.mubr.f32.gmra.mxu0 %v438
        %v914 = vpop.f32.mrf.mxu0
        %v915 = vadd.f32 %v357, %v914
        %v916 = vpop.f32.mrf.mxu0
        %v917 = vadd.f32 %v357, %v916
        %918 = vmatprep.mubr.f32.mxu0 0.0
        %919 = vmatmul.mubr.f32.gmra.mxu0 %v441
        %v920 = vpop.f32.mrf.mxu0
        %v921 = vadd.f32 %v362, %v920
        %v922 = vpop.f32.mrf.mxu0
        %v923 = vadd.f32 %v362, %v922
        %924 = vmatprep.mubr.f32.mxu0 0.0
        %925 = vmatmul.mubr.f32.gmra.mxu0 %v444
        %v926 = vpop.f32.mrf.mxu0
        %v927 = vadd.f32 %v367, %v926
        %v928 = vpop.f32.mrf.mxu0
        %v929 = vadd.f32 %v367, %v928
        %930 = vdwg.mxu0
        %931 = vmatprep.subr.mxu0 0.0
        %932 = vmatpush1.msra.mxu0 0.0
        %933 = vmatprep.subr.mxu0 0.0
        %934 = vmatpush1.msra.mxu0 0.0
        %935 = vmatprep.subr.mxu0 0.0
        %936 = vmatpush1.msra.mxu0 0.0
        %937 = vmatprep.subr.mxu0 0.0
        %938 = vmatpush1.msra.mxu0 0.0
        %939 = vmatprep.subr.mxu0 0.0
        %940 = vmatpush1.msra.mxu0 0.0
        %941 = vmatprep.subr.mxu0 0.0
        %942 = vmatpush1.msra.mxu0 0.0
        %943 = vmatprep.subr.mxu0 0.0
        %944 = vmatpush1.msra.mxu0 0.0
        %945 = vmatprep.subr.mxu0 0.0
        %946 = vmatpush1.msra.mxu0 0.0
        %947 = vmatprep.subr.mxu0 0.0
        %948 = vmatpush1.msra.mxu0 0.0
        %949 = vmatprep.subr.mxu0 0.0
        %950 = vmatpush1.msra.mxu0 0.0
        %951 = vmatprep.subr.mxu0 0.0
        %952 = vmatpush1.msra.mxu0 0.0
        %953 = vmatprep.subr.mxu0 0.0
        %954 = vmatpush1.msra.mxu0 0.0
        %955 = vmatprep.subr.mxu0 0.0
        %956 = vmatpush1.msra.mxu0 0.0
        %957 = vmatprep.subr.mxu0 0.0
        %958 = vmatpush1.msra.mxu0 0.0
        %959 = vmatprep.subr.mxu0 0.0
        %960 = vmatpush1.msra.mxu0 0.0
        %961 = vmatprep.subr.mxu0 %v465
        %962 = vmatpush1.msra.mxu0 %v463
        %963 = vmatprep.subr.mxu0 0.0
        %964 = vmatpush2.msra.mxu0 0.0
        %965 = vmatprep.subr.mxu0 0.0
        %966 = vmatpush2.msra.mxu0 0.0
        %967 = vmatprep.subr.mxu0 0.0
        %968 = vmatpush2.msra.mxu0 0.0
        %969 = vmatprep.subr.mxu0 0.0
        %970 = vmatpush2.msra.mxu0 0.0
        %971 = vmatprep.subr.mxu0 0.0
        %972 = vmatpush2.msra.mxu0 0.0
        %973 = vmatprep.subr.mxu0 0.0
        %974 = vmatpush2.msra.mxu0 0.0
        %975 = vmatprep.subr.mxu0 0.0
        %976 = vmatpush2.msra.mxu0 0.0
        %977 = vmatprep.subr.mxu0 0.0
        %978 = vmatpush2.msra.mxu0 0.0
        %979 = vmatprep.subr.mxu0 0.0
        %980 = vmatpush2.msra.mxu0 0.0
        %981 = vmatprep.subr.mxu0 0.0
        %982 = vmatpush2.msra.mxu0 0.0
        %983 = vmatprep.subr.mxu0 0.0
        %984 = vmatpush2.msra.mxu0 0.0
        %985 = vmatprep.subr.mxu0 0.0
        %986 = vmatpush2.msra.mxu0 0.0
        %987 = vmatprep.subr.mxu0 0.0
        %988 = vmatpush2.msra.mxu0 0.0
        %989 = vmatprep.subr.mxu0 0.0
        %990 = vmatpush2.msra.mxu0 0.0
        %991 = vmatprep.subr.mxu0 0.0
        %992 = vmatpush2.msra.mxu0 0.0
        %993 = vmatprep.subr.mxu0 0.0
        %994 = vmatpush2.msra.mxu0 0.0
        %995 = vmatprep.mubr.f32.mxu0 0.0
        %996 = vmatmul.mubr.f32.gmra.mxu0 %v435
        %v997 = vpop.f32.mrf.mxu0
        %v998 = vadd.f32 %v352, %v997
        %v999 = vpop.f32.mrf.mxu0
        %v1000 = vadd.f32 %v352, %v999
        %1001 = vmatprep.mubr.f32.mxu0 0.0
        %1002 = vmatmul.mubr.f32.gmra.mxu0 %v438
        %v1003 = vpop.f32.mrf.mxu0
        %v1004 = vadd.f32 %v357, %v1003
        %v1005 = vpop.f32.mrf.mxu0
        %v1006 = vadd.f32 %v357, %v1005
        %1007 = vmatprep.mubr.f32.mxu0 0.0
        %1008 = vmatmul.mubr.f32.gmra.mxu0 %v441
        %v1009 = vpop.f32.mrf.mxu0
        %v1010 = vadd.f32 %v362, %v1009
        %v1011 = vpop.f32.mrf.mxu0
        %v1012 = vadd.f32 %v362, %v1011
        %1013 = vmatprep.mubr.f32.mxu0 0.0
        %1014 = vmatmul.mubr.f32.gmra.mxu0 %v444
        %v1015 = vpop.f32.mrf.mxu0
        %v1016 = vadd.f32 %v367, %v1015
        %v1017 = vpop.f32.mrf.mxu0
        %v1018 = vadd.f32 %v367, %v1017
        %1019 = vdwg.mxu0
        %1020 = vmatprep.subr.mxu0 0.0
        %1021 = vmatpush1.msra.mxu0 0.0
        %1022 = vmatprep.subr.mxu0 0.0
        %1023 = vmatpush1.msra.mxu0 0.0
        %1024 = vmatprep.subr.mxu0 0.0
        %1025 = vmatpush1.msra.mxu0 0.0
        %1026 = vmatprep.subr.mxu0 0.0
        %1027 = vmatpush1.msra.mxu0 0.0
        %1028 = vmatprep.subr.mxu0 0.0
        %1029 = vmatpush1.msra.mxu0 0.0
        %1030 = vmatprep.subr.mxu0 0.0
        %1031 = vmatpush1.msra.mxu0 0.0
        %1032 = vmatprep.subr.mxu0 0.0
        %1033 = vmatpush1.msra.mxu0 0.0
        %1034 = vmatprep.subr.mxu0 0.0
        %1035 = vmatpush1.msra.mxu0 0.0
        %1036 = vmatprep.subr.mxu0 0.0
        %1037 = vmatpush1.msra.mxu0 0.0
        %1038 = vmatprep.subr.mxu0 0.0
        %1039 = vmatpush1.msra.mxu0 0.0
        %1040 = vmatprep.subr.mxu0 0.0
        %1041 = vmatpush1.msra.mxu0 0.0
        %1042 = vmatprep.subr.mxu0 0.0
        %1043 = vmatpush1.msra.mxu0 0.0
        %1044 = vmatprep.subr.mxu0 0.0
        %1045 = vmatpush1.msra.mxu0 0.0
        %1046 = vmatprep.subr.mxu0 0.0
        %1047 = vmatpush1.msra.mxu0 0.0
        %1048 = vmatprep.subr.mxu0 0.0
        %1049 = vmatpush1.msra.mxu0 0.0
        %1050 = vmatprep.subr.mxu0 %v469
        %1051 = vmatpush1.msra.mxu0 %v467
        %1052 = vmatprep.subr.mxu0 0.0
        %1053 = vmatpush2.msra.mxu0 0.0
        %1054 = vmatprep.subr.mxu0 0.0
        %1055 = vmatpush2.msra.mxu0 0.0
        %1056 = vmatprep.subr.mxu0 0.0
        %1057 = vmatpush2.msra.mxu0 0.0
        %1058 = vmatprep.subr.mxu0 0.0
        %1059 = vmatpush2.msra.mxu0 0.0
        %1060 = vmatprep.subr.mxu0 0.0
        %1061 = vmatpush2.msra.mxu0 0.0
        %1062 = vmatprep.subr.mxu0 0.0
        %1063 = vmatpush2.msra.mxu0 0.0
        %1064 = vmatprep.subr.mxu0 0.0
        %1065 = vmatpush2.msra.mxu0 0.0
        %1066 = vmatprep.subr.mxu0 0.0
        %1067 = vmatpush2.msra.mxu0 0.0
        %1068 = vmatprep.subr.mxu0 0.0
        %1069 = vmatpush2.msra.mxu0 0.0
        %1070 = vmatprep.subr.mxu0 0.0
        %1071 = vmatpush2.msra.mxu0 0.0
        %1072 = vmatprep.subr.mxu0 0.0
        %1073 = vmatpush2.msra.mxu0 0.0
        %1074 = vmatprep.subr.mxu0 0.0
        %1075 = vmatpush2.msra.mxu0 0.0
        %1076 = vmatprep.subr.mxu0 0.0
        %1077 = vmatpush2.msra.mxu0 0.0
        %1078 = vmatprep.subr.mxu0 0.0
        %1079 = vmatpush2.msra.mxu0 0.0
        %1080 = vmatprep.subr.mxu0 0.0
        %1081 = vmatpush2.msra.mxu0 0.0
        %1082 = vmatprep.subr.mxu0 0.0
        %1083 = vmatpush2.msra.mxu0 0.0
        %1084 = vmatprep.mubr.f32.mxu0 0.0
        %1085 = vmatmul.mubr.f32.gmra.mxu0 %v435
        %v1086 = vpop.f32.mrf.mxu0
        %v1087 = vadd.f32 %v352, %v1086
        %v1088 = vpop.f32.mrf.mxu0
        %v1089 = vadd.f32 %v352, %v1088
        %1090 = vmatprep.mubr.f32.mxu0 0.0
        %1091 = vmatmul.mubr.f32.gmra.mxu0 %v438
        %v1092 = vpop.f32.mrf.mxu0
        %v1093 = vadd.f32 %v357, %v1092
        %v1094 = vpop.f32.mrf.mxu0
        %v1095 = vadd.f32 %v357, %v1094
        %1096 = vmatprep.mubr.f32.mxu0 0.0
        %1097 = vmatmul.mubr.f32.gmra.mxu0 %v441
        %v1098 = vpop.f32.mrf.mxu0
        %v1099 = vadd.f32 %v362, %v1098
        %v1100 = vpop.f32.mrf.mxu0
        %v1101 = vadd.f32 %v362, %v1100
        %1102 = vmatprep.mubr.f32.mxu0 0.0
        %1103 = vmatmul.mubr.f32.gmra.mxu0 %v444
        %v1104 = vpop.f32.mrf.mxu0
        %v1105 = vadd.f32 %v367, %v1104
        %v1106 = vpop.f32.mrf.mxu0
        %v1107 = vadd.f32 %v367, %v1106
        %1108 = vdwg.mxu0
        %1109 = vmatprep.subr.mxu0 0.0
        %1110 = vmatpush1.msra.mxu0 0.0
        %1111 = vmatprep.subr.mxu0 0.0
        %1112 = vmatpush1.msra.mxu0 0.0
        %1113 = vmatprep.subr.mxu0 0.0
        %1114 = vmatpush1.msra.mxu0 0.0
        %1115 = vmatprep.subr.mxu0 0.0
        %1116 = vmatpush1.msra.mxu0 0.0
        %1117 = vmatprep.subr.mxu0 0.0
        %1118 = vmatpush1.msra.mxu0 0.0
        %1119 = vmatprep.subr.mxu0 0.0
        %1120 = vmatpush1.msra.mxu0 0.0
        %1121 = vmatprep.subr.mxu0 0.0
        %1122 = vmatpush1.msra.mxu0 0.0
        %1123 = vmatprep.subr.mxu0 0.0
        %1124 = vmatpush1.msra.mxu0 0.0
        %1125 = vmatprep.subr.mxu0 0.0
        %1126 = vmatpush1.msra.mxu0 0.0
        %1127 = vmatprep.subr.mxu0 0.0
        %1128 = vmatpush1.msra.mxu0 0.0
        %1129 = vmatprep.subr.mxu0 0.0
        %1130 = vmatpush1.msra.mxu0 0.0
        %1131 = vmatprep.subr.mxu0 0.0
        %1132 = vmatpush1.msra.mxu0 0.0
        %1133 = vmatprep.subr.mxu0 0.0
        %1134 = vmatpush1.msra.mxu0 0.0
        %1135 = vmatprep.subr.mxu0 0.0
        %1136 = vmatpush1.msra.mxu0 0.0
        %1137 = vmatprep.subr.mxu0 0.0
        %1138 = vmatpush1.msra.mxu0 0.0
        %1139 = vmatprep.subr.mxu0 %v473
        %1140 = vmatpush1.msra.mxu0 %v471
        %1141 = vmatprep.subr.mxu0 0.0
        %1142 = vmatpush2.msra.mxu0 0.0
        %1143 = vmatprep.subr.mxu0 0.0
        %1144 = vmatpush2.msra.mxu0 0.0
        %1145 = vmatprep.subr.mxu0 0.0
        %1146 = vmatpush2.msra.mxu0 0.0
        %1147 = vmatprep.subr.mxu0 0.0
        %1148 = vmatpush2.msra.mxu0 0.0
        %1149 = vmatprep.subr.mxu0 0.0
        %1150 = vmatpush2.msra.mxu0 0.0
        %1151 = vmatprep.subr.mxu0 0.0
        %1152 = vmatpush2.msra.mxu0 0.0
        %1153 = vmatprep.subr.mxu0 0.0
        %1154 = vmatpush2.msra.mxu0 0.0
        %1155 = vmatprep.subr.mxu0 0.0
        %1156 = vmatpush2.msra.mxu0 0.0
        %1157 = vmatprep.subr.mxu0 0.0
        %1158 = vmatpush2.msra.mxu0 0.0
        %1159 = vmatprep.subr.mxu0 0.0
        %1160 = vmatpush2.msra.mxu0 0.0
        %1161 = vmatprep.subr.mxu0 0.0
        %1162 = vmatpush2.msra.mxu0 0.0
        %1163 = vmatprep.subr.mxu0 0.0
        %1164 = vmatpush2.msra.mxu0 0.0
        %1165 = vmatprep.subr.mxu0 0.0
        %1166 = vmatpush2.msra.mxu0 0.0
        %1167 = vmatprep.subr.mxu0 0.0
        %1168 = vmatpush2.msra.mxu0 0.0
        %1169 = vmatprep.subr.mxu0 0.0
        %1170 = vmatpush2.msra.mxu0 0.0
        %1171 = vmatprep.subr.mxu0 0.0
        %1172 = vmatpush2.msra.mxu0 0.0
        %1173 = vmatprep.mubr.f32.mxu0 0.0
        %1174 = vmatmul.mubr.f32.gmra.mxu0 %v435
        %v1175 = vpop.f32.mrf.mxu0
        %v1176 = vadd.f32 %v352, %v1175
        %v1177 = vpop.f32.mrf.mxu0
        %v1178 = vadd.f32 %v352, %v1177
        %1179 = vmatprep.mubr.f32.mxu0 0.0
        %1180 = vmatmul.mubr.f32.gmra.mxu0 %v438
        %v1181 = vpop.f32.mrf.mxu0
        %v1182 = vadd.f32 %v357, %v1181
        %v1183 = vpop.f32.mrf.mxu0
        %v1184 = vadd.f32 %v357, %v1183
        %1185 = vmatprep.mubr.f32.mxu0 0.0
        %1186 = vmatmul.mubr.f32.gmra.mxu0 %v441
        %v1187 = vpop.f32.mrf.mxu0
        %v1188 = vadd.f32 %v362, %v1187
        %v1189 = vpop.f32.mrf.mxu0
        %v1190 = vadd.f32 %v362, %v1189
        %1191 = vmatprep.mubr.f32.mxu0 0.0
        %1192 = vmatmul.mubr.f32.gmra.mxu0 %v444
        %v1193 = vpop.f32.mrf.mxu0
        %v1194 = vadd.f32 %v367, %v1193
        %v1195 = vpop.f32.mrf.mxu0
        %v1196 = vadd.f32 %v367, %v1195
        %1197 = vdwg.mxu0
        %1198 = vmatprep.subr.mxu0 0.0
        %1199 = vmatpush1.msra.mxu0 0.0
        %1200 = vmatprep.subr.mxu0 0.0
        %1201 = vmatpush1.msra.mxu0 0.0
        %1202 = vmatprep.subr.mxu0 0.0
        %1203 = vmatpush1.msra.mxu0 0.0
        %1204 = vmatprep.subr.mxu0 0.0
        %1205 = vmatpush1.msra.mxu0 0.0
        %1206 = vmatprep.subr.mxu0 0.0
        %1207 = vmatpush1.msra.mxu0 0.0
        %1208 = vmatprep.subr.mxu0 0.0
        %1209 = vmatpush1.msra.mxu0 0.0
        %1210 = vmatprep.subr.mxu0 0.0
        %1211 = vmatpush1.msra.mxu0 0.0
        %1212 = vmatprep.subr.mxu0 0.0
        %1213 = vmatpush1.msra.mxu0 0.0
        %1214 = vmatprep.subr.mxu0 0.0
        %1215 = vmatpush1.msra.mxu0 0.0
        %1216 = vmatprep.subr.mxu0 0.0
        %1217 = vmatpush1.msra.mxu0 0.0
        %1218 = vmatprep.subr.mxu0 0.0
        %1219 = vmatpush1.msra.mxu0 0.0
        %1220 = vmatprep.subr.mxu0 0.0
        %1221 = vmatpush1.msra.mxu0 0.0
        %1222 = vmatprep.subr.mxu0 0.0
        %1223 = vmatpush1.msra.mxu0 0.0
        %1224 = vmatprep.subr.mxu0 0.0
        %1225 = vmatpush1.msra.mxu0 0.0
        %1226 = vmatprep.subr.mxu0 0.0
        %1227 = vmatpush1.msra.mxu0 0.0
        %1228 = vmatprep.subr.mxu0 %v477
        %1229 = vmatpush1.msra.mxu0 %v475
        %1230 = vmatprep.subr.mxu0 0.0
        %1231 = vmatpush2.msra.mxu0 0.0
        %1232 = vmatprep.subr.mxu0 0.0
        %1233 = vmatpush2.msra.mxu0 0.0
        %1234 = vmatprep.subr.mxu0 0.0
        %1235 = vmatpush2.msra.mxu0 0.0
        %1236 = vmatprep.subr.mxu0 0.0
        %1237 = vmatpush2.msra.mxu0 0.0
        %1238 = vmatprep.subr.mxu0 0.0
        %1239 = vmatpush2.msra.mxu0 0.0
        %1240 = vmatprep.subr.mxu0 0.0
        %1241 = vmatpush2.msra.mxu0 0.0
        %1242 = vmatprep.subr.mxu0 0.0
        %1243 = vmatpush2.msra.mxu0 0.0
        %1244 = vmatprep.subr.mxu0 0.0
        %1245 = vmatpush2.msra.mxu0 0.0
        %1246 = vmatprep.subr.mxu0 0.0
        %1247 = vmatpush2.msra.mxu0 0.0
        %1248 = vmatprep.subr.mxu0 0.0
        %1249 = vmatpush2.msra.mxu0 0.0
        %1250 = vmatprep.subr.mxu0 0.0
        %1251 = vmatpush2.msra.mxu0 0.0
        %1252 = vmatprep.subr.mxu0 0.0
        %1253 = vmatpush2.msra.mxu0 0.0
        %1254 = vmatprep.subr.mxu0 0.0
        %1255 = vmatpush2.msra.mxu0 0.0
        %1256 = vmatprep.subr.mxu0 0.0
        %1257 = vmatpush2.msra.mxu0 0.0
        %1258 = vmatprep.subr.mxu0 0.0
        %1259 = vmatpush2.msra.mxu0 0.0
        %1260 = vmatprep.subr.mxu0 0.0
        %1261 = vmatpush2.msra.mxu0 0.0
        %1262 = vmatprep.mubr.f32.mxu0 0.0
        %1263 = vmatmul.mubr.f32.gmra.mxu0 %v435
        %v1264 = vpop.f32.mrf.mxu0
        %v1265 = vadd.f32 %v352, %v1264
        %v1266 = vpop.f32.mrf.mxu0
        %v1267 = vadd.f32 %v352, %v1266
        %1268 = vmatprep.mubr.f32.mxu0 0.0
        %1269 = vmatmul.mubr.f32.gmra.mxu0 %v438
        %v1270 = vpop.f32.mrf.mxu0
        %v1271 = vadd.f32 %v357, %v1270
        %v1272 = vpop.f32.mrf.mxu0
        %v1273 = vadd.f32 %v357, %v1272
        %1274 = vmatprep.mubr.f32.mxu0 0.0
        %1275 = vmatmul.mubr.f32.gmra.mxu0 %v441
        %v1276 = vpop.f32.mrf.mxu0
        %v1277 = vadd.f32 %v362, %v1276
        %v1278 = vpop.f32.mrf.mxu0
        %v1279 = vadd.f32 %v362, %v1278
        %1280 = vmatprep.mubr.f32.mxu0 0.0
        %1281 = vmatmul.mubr.f32.gmra.mxu0 %v444
        %v1282 = vpop.f32.mrf.mxu0
        %v1283 = vadd.f32 %v367, %v1282
        %v1284 = vpop.f32.mrf.mxu0
        %v1285 = vadd.f32 %v367, %v1284
        %1286 = vdwg.mxu0
        %1287 = vmatprep.subr.mxu0 0.0
        %1288 = vmatpush1.msra.mxu0 0.0
        %1289 = vmatprep.subr.mxu0 0.0
        %1290 = vmatpush1.msra.mxu0 0.0
        %1291 = vmatprep.subr.mxu0 0.0
        %1292 = vmatpush1.msra.mxu0 0.0
        %1293 = vmatprep.subr.mxu0 0.0
        %1294 = vmatpush1.msra.mxu0 0.0
        %1295 = vmatprep.subr.mxu0 0.0
        %1296 = vmatpush1.msra.mxu0 0.0
        %1297 = vmatprep.subr.mxu0 0.0
        %1298 = vmatpush1.msra.mxu0 0.0
        %1299 = vmatprep.subr.mxu0 0.0
        %1300 = vmatpush1.msra.mxu0 0.0
        %1301 = vmatprep.subr.mxu0 0.0
        %1302 = vmatpush1.msra.mxu0 0.0
        %1303 = vmatprep.subr.mxu0 0.0
        %1304 = vmatpush1.msra.mxu0 0.0
        %1305 = vmatprep.subr.mxu0 0.0
        %1306 = vmatpush1.msra.mxu0 0.0
        %1307 = vmatprep.subr.mxu0 0.0
        %1308 = vmatpush1.msra.mxu0 0.0
        %1309 = vmatprep.subr.mxu0 0.0
        %1310 = vmatpush1.msra.mxu0 0.0
        %1311 = vmatprep.subr.mxu0 0.0
        %1312 = vmatpush1.msra.mxu0 0.0
        %1313 = vmatprep.subr.mxu0 0.0
        %1314 = vmatpush1.msra.mxu0 0.0
        %1315 = vmatprep.subr.mxu0 0.0
        %1316 = vmatpush1.msra.mxu0 0.0
        %1317 = vmatprep.subr.mxu0 %v481
        %1318 = vmatpush1.msra.mxu0 %v479
        %1319 = vmatprep.subr.mxu0 0.0
        %1320 = vmatpush2.msra.mxu0 0.0
        %1321 = vmatprep.subr.mxu0 0.0
        %1322 = vmatpush2.msra.mxu0 0.0
        %1323 = vmatprep.subr.mxu0 0.0
        %1324 = vmatpush2.msra.mxu0 0.0
        %1325 = vmatprep.subr.mxu0 0.0
        %1326 = vmatpush2.msra.mxu0 0.0
        %1327 = vmatprep.subr.mxu0 0.0
        %1328 = vmatpush2.msra.mxu0 0.0
        %1329 = vmatprep.subr.mxu0 0.0
        %1330 = vmatpush2.msra.mxu0 0.0
        %1331 = vmatprep.subr.mxu0 0.0
        %1332 = vmatpush2.msra.mxu0 0.0
        %1333 = vmatprep.subr.mxu0 0.0
        %1334 = vmatpush2.msra.mxu0 0.0
        %1335 = vmatprep.subr.mxu0 0.0
        %1336 = vmatpush2.msra.mxu0 0.0
        %1337 = vmatprep.subr.mxu0 0.0
        %1338 = vmatpush2.msra.mxu0 0.0
        %1339 = vmatprep.subr.mxu0 0.0
        %1340 = vmatpush2.msra.mxu0 0.0
        %1341 = vmatprep.subr.mxu0 0.0
        %1342 = vmatpush2.msra.mxu0 0.0
        %1343 = vmatprep.subr.mxu0 0.0
        %1344 = vmatpush2.msra.mxu0 0.0
        %1345 = vmatprep.subr.mxu0 0.0
        %1346 = vmatpush2.msra.mxu0 0.0
        %1347 = vmatprep.subr.mxu0 0.0
        %1348 = vmatpush2.msra.mxu0 0.0
        %1349 = vmatprep.subr.mxu0 0.0
        %1350 = vmatpush2.msra.mxu0 0.0
        %1351 = vmatprep.mubr.f32.mxu0 0.0
        %1352 = vmatmul.mubr.f32.gmra.mxu0 %v435
        %v1353 = vpop.f32.mrf.mxu0
        %v1354 = vadd.f32 %v352, %v1353
        %v1355 = vpop.f32.mrf.mxu0
        %v1356 = vadd.f32 %v352, %v1355
        %1357 = vmatprep.mubr.f32.mxu0 0.0
        %1358 = vmatmul.mubr.f32.gmra.mxu0 %v438
        %v1359 = vpop.f32.mrf.mxu0
        %v1360 = vadd.f32 %v357, %v1359
        %v1361 = vpop.f32.mrf.mxu0
        %v1362 = vadd.f32 %v357, %v1361
        %1363 = vmatprep.mubr.f32.mxu0 0.0
        %1364 = vmatmul.mubr.f32.gmra.mxu0 %v441
        %v1365 = vpop.f32.mrf.mxu0
        %v1366 = vadd.f32 %v362, %v1365
        %v1367 = vpop.f32.mrf.mxu0
        %v1368 = vadd.f32 %v362, %v1367
        %1369 = vmatprep.mubr.f32.mxu0 0.0
        %1370 = vmatmul.mubr.f32.gmra.mxu0 %v444
        %v1371 = vpop.f32.mrf.mxu0
        %v1372 = vadd.f32 %v367, %v1371
        %v1373 = vpop.f32.mrf.mxu0
        %v1374 = vadd.f32 %v367, %v1373
        %1375 = vdwg.mxu0
        %1376 = vmatprep.subr.mxu0 0.0
        %1377 = vmatpush1.msra.mxu0 0.0
        %1378 = vmatprep.subr.mxu0 0.0
        %1379 = vmatpush1.msra.mxu0 0.0
        %1380 = vmatprep.subr.mxu0 0.0
        %1381 = vmatpush1.msra.mxu0 0.0
        %1382 = vmatprep.subr.mxu0 0.0
        %1383 = vmatpush1.msra.mxu0 0.0
        %1384 = vmatprep.subr.mxu0 0.0
        %1385 = vmatpush1.msra.mxu0 0.0
        %1386 = vmatprep.subr.mxu0 0.0
        %1387 = vmatpush1.msra.mxu0 0.0
        %1388 = vmatprep.subr.mxu0 0.0
        %1389 = vmatpush1.msra.mxu0 0.0
        %1390 = vmatprep.subr.mxu0 0.0
        %1391 = vmatpush1.msra.mxu0 0.0
        %1392 = vmatprep.subr.mxu0 0.0
        %1393 = vmatpush1.msra.mxu0 0.0
        %1394 = vmatprep.subr.mxu0 0.0
        %1395 = vmatpush1.msra.mxu0 0.0
        %1396 = vmatprep.subr.mxu0 0.0
        %1397 = vmatpush1.msra.mxu0 0.0
        %1398 = vmatprep.subr.mxu0 0.0
        %1399 = vmatpush1.msra.mxu0 0.0
        %1400 = vmatprep.subr.mxu0 0.0
        %1401 = vmatpush1.msra.mxu0 0.0
        %1402 = vmatprep.subr.mxu0 0.0
        %1403 = vmatpush1.msra.mxu0 0.0
        %1404 = vmatprep.subr.mxu0 0.0
        %1405 = vmatpush1.msra.mxu0 0.0
        %1406 = vmatprep.subr.mxu0 %v485
        %1407 = vmatpush1.msra.mxu0 %v483
        %1408 = vmatprep.subr.mxu0 0.0
        %1409 = vmatpush2.msra.mxu0 0.0
        %1410 = vmatprep.subr.mxu0 0.0
        %1411 = vmatpush2.msra.mxu0 0.0
        %1412 = vmatprep.subr.mxu0 0.0
        %1413 = vmatpush2.msra.mxu0 0.0
        %1414 = vmatprep.subr.mxu0 0.0
        %1415 = vmatpush2.msra.mxu0 0.0
        %1416 = vmatprep.subr.mxu0 0.0
        %1417 = vmatpush2.msra.mxu0 0.0
        %1418 = vmatprep.subr.mxu0 0.0
        %1419 = vmatpush2.msra.mxu0 0.0
        %1420 = vmatprep.subr.mxu0 0.0
        %1421 = vmatpush2.msra.mxu0 0.0
        %1422 = vmatprep.subr.mxu0 0.0
        %1423 = vmatpush2.msra.mxu0 0.0
        %1424 = vmatprep.subr.mxu0 0.0
        %1425 = vmatpush2.msra.mxu0 0.0
        %1426 = vmatprep.subr.mxu0 0.0
        %1427 = vmatpush2.msra.mxu0 0.0
        %1428 = vmatprep.subr.mxu0 0.0
        %1429 = vmatpush2.msra.mxu0 0.0
        %1430 = vmatprep.subr.mxu0 0.0
        %1431 = vmatpush2.msra.mxu0 0.0
        %1432 = vmatprep.subr.mxu0 0.0
        %1433 = vmatpush2.msra.mxu0 0.0
        %1434 = vmatprep.subr.mxu0 0.0
        %1435 = vmatpush2.msra.mxu0 0.0
        %1436 = vmatprep.subr.mxu0 0.0
        %1437 = vmatpush2.msra.mxu0 0.0
        %1438 = vmatprep.subr.mxu0 0.0
        %1439 = vmatpush2.msra.mxu0 0.0
        %1440 = vmatprep.mubr.f32.mxu0 0.0
        %1441 = vmatmul.mubr.f32.gmra.mxu0 %v435
        %v1442 = vpop.f32.mrf.mxu0
        %v1443 = vadd.f32 %v352, %v1442
        %v1444 = vpop.f32.mrf.mxu0
        %v1445 = vadd.f32 %v352, %v1444
        %1446 = vmatprep.mubr.f32.mxu0 0.0
        %1447 = vmatmul.mubr.f32.gmra.mxu0 %v438
        %v1448 = vpop.f32.mrf.mxu0
        %v1449 = vadd.f32 %v357, %v1448
        %v1450 = vpop.f32.mrf.mxu0
        %v1451 = vadd.f32 %v357, %v1450
        %1452 = vmatprep.mubr.f32.mxu0 0.0
        %1453 = vmatmul.mubr.f32.gmra.mxu0 %v441
        %v1454 = vpop.f32.mrf.mxu0
        %v1455 = vadd.f32 %v362, %v1454
        %v1456 = vpop.f32.mrf.mxu0
        %v1457 = vadd.f32 %v362, %v1456
        %1458 = vmatprep.mubr.f32.mxu0 0.0
        %1459 = vmatmul.mubr.f32.gmra.mxu0 %v444
        %v1460 = vpop.f32.mrf.mxu0
        %v1461 = vadd.f32 %v367, %v1460
        %v1462 = vpop.f32.mrf.mxu0
        %v1463 = vadd.f32 %v367, %v1462
        %1464 = vdwg.mxu0
        %1465 = vmatprep.subr.mxu0 0.0
        %1466 = vmatpush1.msra.mxu0 0.0
        %1467 = vmatprep.subr.mxu0 0.0
        %1468 = vmatpush1.msra.mxu0 0.0
        %1469 = vmatprep.subr.mxu0 0.0
        %1470 = vmatpush1.msra.mxu0 0.0
        %1471 = vmatprep.subr.mxu0 0.0
        %1472 = vmatpush1.msra.mxu0 0.0
        %1473 = vmatprep.subr.mxu0 0.0
        %1474 = vmatpush1.msra.mxu0 0.0
        %1475 = vmatprep.subr.mxu0 0.0
        %1476 = vmatpush1.msra.mxu0 0.0
        %1477 = vmatprep.subr.mxu0 0.0
        %1478 = vmatpush1.msra.mxu0 0.0
        %1479 = vmatprep.subr.mxu0 0.0
        %1480 = vmatpush1.msra.mxu0 0.0
        %1481 = vmatprep.subr.mxu0 0.0
        %1482 = vmatpush1.msra.mxu0 0.0
        %1483 = vmatprep.subr.mxu0 0.0
        %1484 = vmatpush1.msra.mxu0 0.0
        %1485 = vmatprep.subr.mxu0 0.0
        %1486 = vmatpush1.msra.mxu0 0.0
        %1487 = vmatprep.subr.mxu0 0.0
        %1488 = vmatpush1.msra.mxu0 0.0
        %1489 = vmatprep.subr.mxu0 0.0
        %1490 = vmatpush1.msra.mxu0 0.0
        %1491 = vmatprep.subr.mxu0 0.0
        %1492 = vmatpush1.msra.mxu0 0.0
        %1493 = vmatprep.subr.mxu0 0.0
        %1494 = vmatpush1.msra.mxu0 0.0
        %1495 = vmatprep.subr.mxu0 %v489
        %1496 = vmatpush1.msra.mxu0 %v487
        %1497 = vmatprep.subr.mxu0 0.0
        %1498 = vmatpush2.msra.mxu0 0.0
        %1499 = vmatprep.subr.mxu0 0.0
        %1500 = vmatpush2.msra.mxu0 0.0
        %1501 = vmatprep.subr.mxu0 0.0
        %1502 = vmatpush2.msra.mxu0 0.0
        %1503 = vmatprep.subr.mxu0 0.0
        %1504 = vmatpush2.msra.mxu0 0.0
        %1505 = vmatprep.subr.mxu0 0.0
        %1506 = vmatpush2.msra.mxu0 0.0
        %1507 = vmatprep.subr.mxu0 0.0
        %1508 = vmatpush2.msra.mxu0 0.0
        %1509 = vmatprep.subr.mxu0 0.0
        %1510 = vmatpush2.msra.mxu0 0.0
        %1511 = vmatprep.subr.mxu0 0.0
        %1512 = vmatpush2.msra.mxu0 0.0
        %1513 = vmatprep.subr.mxu0 0.0
        %1514 = vmatpush2.msra.mxu0 0.0
        %1515 = vmatprep.subr.mxu0 0.0
        %1516 = vmatpush2.msra.mxu0 0.0
        %1517 = vmatprep.subr.mxu0 0.0
        %1518 = vmatpush2.msra.mxu0 0.0
        %1519 = vmatprep.subr.mxu0 0.0
        %1520 = vmatpush2.msra.mxu0 0.0
        %1521 = vmatprep.subr.mxu0 0.0
        %1522 = vmatpush2.msra.mxu0 0.0
        %1523 = vmatprep.subr.mxu0 0.0
        %1524 = vmatpush2.msra.mxu0 0.0
        %1525 = vmatprep.subr.mxu0 0.0
        %1526 = vmatpush2.msra.mxu0 0.0
        %1527 = vmatprep.subr.mxu0 0.0
        %1528 = vmatpush2.msra.mxu0 0.0
        %1529 = vmatprep.mubr.f32.mxu0 0.0
        %1530 = vmatmul.mubr.f32.gmra.mxu0 %v435
        %v1531 = vpop.f32.mrf.mxu0
        %v1532 = vadd.f32 %v352, %v1531
        %v1533 = vpop.f32.mrf.mxu0
        %v1534 = vadd.f32 %v352, %v1533
        %1535 = vmatprep.mubr.f32.mxu0 0.0
        %1536 = vmatmul.mubr.f32.gmra.mxu0 %v438
        %v1537 = vpop.f32.mrf.mxu0
        %v1538 = vadd.f32 %v357, %v1537
        %v1539 = vpop.f32.mrf.mxu0
        %v1540 = vadd.f32 %v357, %v1539
        %1541 = vmatprep.mubr.f32.mxu0 0.0
        %1542 = vmatmul.mubr.f32.gmra.mxu0 %v441
        %v1543 = vpop.f32.mrf.mxu0
        %v1544 = vadd.f32 %v362, %v1543
        %v1545 = vpop.f32.mrf.mxu0
        %v1546 = vadd.f32 %v362, %v1545
        %1547 = vmatprep.mubr.f32.mxu0 0.0
        %1548 = vmatmul.mubr.f32.gmra.mxu0 %v444
        %v1549 = vpop.f32.mrf.mxu0
        %v1550 = vadd.f32 %v367, %v1549
        %v1551 = vpop.f32.mrf.mxu0
        %v1552 = vadd.f32 %v367, %v1551
        %1553 = vdwg.mxu0
        %1554 = vmatprep.subr.mxu0 0.0
        %1555 = vmatpush1.msra.mxu0 0.0
        %1556 = vmatprep.subr.mxu0 0.0
        %1557 = vmatpush1.msra.mxu0 0.0
        %1558 = vmatprep.subr.mxu0 0.0
        %1559 = vmatpush1.msra.mxu0 0.0
        %1560 = vmatprep.subr.mxu0 0.0
        %1561 = vmatpush1.msra.mxu0 0.0
        %1562 = vmatprep.subr.mxu0 0.0
        %1563 = vmatpush1.msra.mxu0 0.0
        %1564 = vmatprep.subr.mxu0 0.0
        %1565 = vmatpush1.msra.mxu0 0.0
        %1566 = vmatprep.subr.mxu0 0.0
        %1567 = vmatpush1.msra.mxu0 0.0
        %1568 = vmatprep.subr.mxu0 0.0
        %1569 = vmatpush1.msra.mxu0 0.0
        %1570 = vmatprep.subr.mxu0 0.0
        %1571 = vmatpush1.msra.mxu0 0.0
        %1572 = vmatprep.subr.mxu0 0.0
        %1573 = vmatpush1.msra.mxu0 0.0
        %1574 = vmatprep.subr.mxu0 0.0
        %1575 = vmatpush1.msra.mxu0 0.0
        %1576 = vmatprep.subr.mxu0 0.0
        %1577 = vmatpush1.msra.mxu0 0.0
        %1578 = vmatprep.subr.mxu0 0.0
        %1579 = vmatpush1.msra.mxu0 0.0
        %1580 = vmatprep.subr.mxu0 0.0
        %1581 = vmatpush1.msra.mxu0 0.0
        %1582 = vmatprep.subr.mxu0 0.0
        %1583 = vmatpush1.msra.mxu0 0.0
        %1584 = vmatprep.subr.mxu0 %v493
        %1585 = vmatpush1.msra.mxu0 %v491
        %1586 = vmatprep.subr.mxu0 0.0
        %1587 = vmatpush2.msra.mxu0 0.0
        %1588 = vmatprep.subr.mxu0 0.0
        %1589 = vmatpush2.msra.mxu0 0.0
        %1590 = vmatprep.subr.mxu0 0.0
        %1591 = vmatpush2.msra.mxu0 0.0
        %1592 = vmatprep.subr.mxu0 0.0
        %1593 = vmatpush2.msra.mxu0 0.0
        %1594 = vmatprep.subr.mxu0 0.0
        %1595 = vmatpush2.msra.mxu0 0.0
        %1596 = vmatprep.subr.mxu0 0.0
        %1597 = vmatpush2.msra.mxu0 0.0
        %1598 = vmatprep.subr.mxu0 0.0
        %1599 = vmatpush2.msra.mxu0 0.0
        %1600 = vmatprep.subr.mxu0 0.0
        %1601 = vmatpush2.msra.mxu0 0.0
        %1602 = vmatprep.subr.mxu0 0.0
        %1603 = vmatpush2.msra.mxu0 0.0
        %1604 = vmatprep.subr.mxu0 0.0
        %1605 = vmatpush2.msra.mxu0 0.0
        %1606 = vmatprep.subr.mxu0 0.0
        %1607 = vmatpush2.msra.mxu0 0.0
        %1608 = vmatprep.subr.mxu0 0.0
        %1609 = vmatpush2.msra.mxu0 0.0
        %1610 = vmatprep.subr.mxu0 0.0
        %1611 = vmatpush2.msra.mxu0 0.0
        %1612 = vmatprep.subr.mxu0 0.0
        %1613 = vmatpush2.msra.mxu0 0.0
        %1614 = vmatprep.subr.mxu0 0.0
        %1615 = vmatpush2.msra.mxu0 0.0
        %1616 = vmatprep.subr.mxu0 0.0
        %1617 = vmatpush2.msra.mxu0 0.0
        %1618 = vmatprep.mubr.f32.mxu0 0.0
        %1619 = vmatmul.mubr.f32.gmra.mxu0 %v435
        %v1620 = vpop.f32.mrf.mxu0
        %v1621 = vadd.f32 %v352, %v1620
        %v1622 = vpop.f32.mrf.mxu0
        %v1623 = vadd.f32 %v352, %v1622
        %1624 = vmatprep.mubr.f32.mxu0 0.0
        %1625 = vmatmul.mubr.f32.gmra.mxu0 %v438
        %v1626 = vpop.f32.mrf.mxu0
        %v1627 = vadd.f32 %v357, %v1626
        %v1628 = vpop.f32.mrf.mxu0
        %v1629 = vadd.f32 %v357, %v1628
        %1630 = vmatprep.mubr.f32.mxu0 0.0
        %1631 = vmatmul.mubr.f32.gmra.mxu0 %v441
        %v1632 = vpop.f32.mrf.mxu0
        %v1633 = vadd.f32 %v362, %v1632
        %v1634 = vpop.f32.mrf.mxu0
        %v1635 = vadd.f32 %v362, %v1634
        %1636 = vmatprep.mubr.f32.mxu0 0.0
        %1637 = vmatmul.mubr.f32.gmra.mxu0 %v444
        %v1638 = vpop.f32.mrf.mxu0
        %v1639 = vadd.f32 %v367, %v1638
        %v1640 = vpop.f32.mrf.mxu0
        %v1641 = vadd.f32 %v367, %v1640
        %1642 = vdwg.mxu0
        %1643 = vmatprep.subr.mxu0 0.0
        %1644 = vmatpush1.msra.mxu0 0.0
        %1645 = vmatprep.subr.mxu0 0.0
        %1646 = vmatpush1.msra.mxu0 0.0
        %1647 = vmatprep.subr.mxu0 0.0
        %1648 = vmatpush1.msra.mxu0 0.0
        %1649 = vmatprep.subr.mxu0 0.0
        %1650 = vmatpush1.msra.mxu0 0.0
        %1651 = vmatprep.subr.mxu0 0.0
        %1652 = vmatpush1.msra.mxu0 0.0
        %1653 = vmatprep.subr.mxu0 0.0
        %1654 = vmatpush1.msra.mxu0 0.0
        %1655 = vmatprep.subr.mxu0 0.0
        %1656 = vmatpush1.msra.mxu0 0.0
        %1657 = vmatprep.subr.mxu0 0.0
        %1658 = vmatpush1.msra.mxu0 0.0
        %1659 = vmatprep.subr.mxu0 0.0
        %1660 = vmatpush1.msra.mxu0 0.0
        %1661 = vmatprep.subr.mxu0 0.0
        %1662 = vmatpush1.msra.mxu0 0.0
        %1663 = vmatprep.subr.mxu0 0.0
        %1664 = vmatpush1.msra.mxu0 0.0
        %1665 = vmatprep.subr.mxu0 0.0
        %1666 = vmatpush1.msra.mxu0 0.0
        %1667 = vmatprep.subr.mxu0 0.0
        %1668 = vmatpush1.msra.mxu0 0.0
        %1669 = vmatprep.subr.mxu0 0.0
        %1670 = vmatpush1.msra.mxu0 0.0
        %1671 = vmatprep.subr.mxu0 0.0
        %1672 = vmatpush1.msra.mxu0 0.0
        %1673 = vmatprep.subr.mxu0 %v497
        %1674 = vmatpush1.msra.mxu0 %v495
        %1675 = vmatprep.subr.mxu0 0.0
        %1676 = vmatpush2.msra.mxu0 0.0
        %1677 = vmatprep.subr.mxu0 0.0
        %1678 = vmatpush2.msra.mxu0 0.0
        %1679 = vmatprep.subr.mxu0 0.0
        %1680 = vmatpush2.msra.mxu0 0.0
        %1681 = vmatprep.subr.mxu0 0.0
        %1682 = vmatpush2.msra.mxu0 0.0
        %1683 = vmatprep.subr.mxu0 0.0
        %1684 = vmatpush2.msra.mxu0 0.0
        %1685 = vmatprep.subr.mxu0 0.0
        %1686 = vmatpush2.msra.mxu0 0.0
        %1687 = vmatprep.subr.mxu0 0.0
        %1688 = vmatpush2.msra.mxu0 0.0
        %1689 = vmatprep.subr.mxu0 0.0
        %1690 = vmatpush2.msra.mxu0 0.0
        %1691 = vmatprep.subr.mxu0 0.0
        %1692 = vmatpush2.msra.mxu0 0.0
        %1693 = vmatprep.subr.mxu0 0.0
        %1694 = vmatpush2.msra.mxu0 0.0
        %1695 = vmatprep.subr.mxu0 0.0
        %1696 = vmatpush2.msra.mxu0 0.0
        %1697 = vmatprep.subr.mxu0 0.0
        %1698 = vmatpush2.msra.mxu0 0.0
        %1699 = vmatprep.subr.mxu0 0.0
        %1700 = vmatpush2.msra.mxu0 0.0
        %1701 = vmatprep.subr.mxu0 0.0
        %1702 = vmatpush2.msra.mxu0 0.0
        %1703 = vmatprep.subr.mxu0 0.0
        %1704 = vmatpush2.msra.mxu0 0.0
        %1705 = vmatprep.subr.mxu0 0.0
        %1706 = vmatpush2.msra.mxu0 0.0
        %1707 = vmatprep.mubr.f32.mxu0 0.0
        %1708 = vmatmul.mubr.f32.gmra.mxu0 %v435
        %v1709 = vpop.f32.mrf.mxu0
        %v1710 = vadd.f32 %v352, %v1709
        %v1711 = vpop.f32.mrf.mxu0
        %v1712 = vadd.f32 %v352, %v1711
        %1713 = vmatprep.mubr.f32.mxu0 0.0
        %1714 = vmatmul.mubr.f32.gmra.mxu0 %v438
        %v1715 = vpop.f32.mrf.mxu0
        %v1716 = vadd.f32 %v357, %v1715
        %v1717 = vpop.f32.mrf.mxu0
        %v1718 = vadd.f32 %v357, %v1717
        %1719 = vmatprep.mubr.f32.mxu0 0.0
        %1720 = vmatmul.mubr.f32.gmra.mxu0 %v441
        %v1721 = vpop.f32.mrf.mxu0
        %v1722 = vadd.f32 %v362, %v1721
        %v1723 = vpop.f32.mrf.mxu0
        %v1724 = vadd.f32 %v362, %v1723
        %1725 = vmatprep.mubr.f32.mxu0 0.0
        %1726 = vmatmul.mubr.f32.gmra.mxu0 %v444
        %v1727 = vpop.f32.mrf.mxu0
        %v1728 = vadd.f32 %v367, %v1727
        %v1729 = vpop.f32.mrf.mxu0
        %v1730 = vadd.f32 %v367, %v1729
        %1731 = vdwg.mxu0
        %1732 = vmatprep.subr.mxu0 0.0
        %1733 = vmatpush1.msra.mxu0 0.0
        %1734 = vmatprep.subr.mxu0 0.0
        %1735 = vmatpush1.msra.mxu0 0.0
        %1736 = vmatprep.subr.mxu0 0.0
        %1737 = vmatpush1.msra.mxu0 0.0
        %1738 = vmatprep.subr.mxu0 0.0
        %1739 = vmatpush1.msra.mxu0 0.0
        %1740 = vmatprep.subr.mxu0 0.0
        %1741 = vmatpush1.msra.mxu0 0.0
        %1742 = vmatprep.subr.mxu0 0.0
        %1743 = vmatpush1.msra.mxu0 0.0
        %1744 = vmatprep.subr.mxu0 0.0
        %1745 = vmatpush1.msra.mxu0 0.0
        %1746 = vmatprep.subr.mxu0 0.0
        %1747 = vmatpush1.msra.mxu0 0.0
        %1748 = vmatprep.subr.mxu0 0.0
        %1749 = vmatpush1.msra.mxu0 0.0
        %1750 = vmatprep.subr.mxu0 0.0
        %1751 = vmatpush1.msra.mxu0 0.0
        %1752 = vmatprep.subr.mxu0 0.0
        %1753 = vmatpush1.msra.mxu0 0.0
        %1754 = vmatprep.subr.mxu0 0.0
        %1755 = vmatpush1.msra.mxu0 0.0
        %1756 = vmatprep.subr.mxu0 0.0
        %1757 = vmatpush1.msra.mxu0 0.0
        %1758 = vmatprep.subr.mxu0 0.0
        %1759 = vmatpush1.msra.mxu0 0.0
        %1760 = vmatprep.subr.mxu0 0.0
        %1761 = vmatpush1.msra.mxu0 0.0
        %1762 = vmatprep.subr.mxu0 %v501
        %1763 = vmatpush1.msra.mxu0 %v499
        %1764 = vmatprep.subr.mxu0 0.0
        %1765 = vmatpush2.msra.mxu0 0.0
        %1766 = vmatprep.subr.mxu0 0.0
        %1767 = vmatpush2.msra.mxu0 0.0
        %1768 = vmatprep.subr.mxu0 0.0
        %1769 = vmatpush2.msra.mxu0 0.0
        %1770 = vmatprep.subr.mxu0 0.0
        %1771 = vmatpush2.msra.mxu0 0.0
        %1772 = vmatprep.subr.mxu0 0.0
        %1773 = vmatpush2.msra.mxu0 0.0
        %1774 = vmatprep.subr.mxu0 0.0
        %1775 = vmatpush2.msra.mxu0 0.0
        %1776 = vmatprep.subr.mxu0 0.0
        %1777 = vmatpush2.msra.mxu0 0.0
        %1778 = vmatprep.subr.mxu0 0.0
        %1779 = vmatpush2.msra.mxu0 0.0
        %1780 = vmatprep.subr.mxu0 0.0
        %1781 = vmatpush2.msra.mxu0 0.0
        %1782 = vmatprep.subr.mxu0 0.0
        %1783 = vmatpush2.msra.mxu0 0.0
        %1784 = vmatprep.subr.mxu0 0.0
        %1785 = vmatpush2.msra.mxu0 0.0
        %1786 = vmatprep.subr.mxu0 0.0
        %1787 = vmatpush2.msra.mxu0 0.0
        %1788 = vmatprep.subr.mxu0 0.0
        %1789 = vmatpush2.msra.mxu0 0.0
        %1790 = vmatprep.subr.mxu0 0.0
        %1791 = vmatpush2.msra.mxu0 0.0
        %1792 = vmatprep.subr.mxu0 0.0
        %1793 = vmatpush2.msra.mxu0 0.0
        %1794 = vmatprep.subr.mxu0 0.0
        %1795 = vmatpush2.msra.mxu0 0.0
        %1796 = vmatprep.mubr.f32.mxu0 0.0
        %1797 = vmatmul.mubr.f32.gmra.mxu0 %v435
        %v1798 = vpop.f32.mrf.mxu0
        %v1799 = vadd.f32 %v352, %v1798
        %v1800 = vpop.f32.mrf.mxu0
        %v1801 = vadd.f32 %v352, %v1800
        %1802 = vmatprep.mubr.f32.mxu0 0.0
        %1803 = vmatmul.mubr.f32.gmra.mxu0 %v438
        %v1804 = vpop.f32.mrf.mxu0
        %v1805 = vadd.f32 %v357, %v1804
        %v1806 = vpop.f32.mrf.mxu0
        %v1807 = vadd.f32 %v357, %v1806
        %1808 = vmatprep.mubr.f32.mxu0 0.0
        %1809 = vmatmul.mubr.f32.gmra.mxu0 %v441
        %v1810 = vpop.f32.mrf.mxu0
        %v1811 = vadd.f32 %v362, %v1810
        %v1812 = vpop.f32.mrf.mxu0
        %v1813 = vadd.f32 %v362, %v1812
        %1814 = vmatprep.mubr.f32.mxu0 0.0
        %1815 = vmatmul.mubr.f32.gmra.mxu0 %v444
        %v1816 = vpop.f32.mrf.mxu0
        %v1817 = vadd.f32 %v367, %v1816
        %v1818 = vpop.f32.mrf.mxu0
        %v1819 = vadd.f32 %v367, %v1818
        %1820 = vdwg.mxu0
        %1821 = vmatprep.subr.mxu0 0.0
        %1822 = vmatpush1.msra.mxu0 0.0
        %1823 = vmatprep.subr.mxu0 0.0
        %1824 = vmatpush1.msra.mxu0 0.0
        %1825 = vmatprep.subr.mxu0 0.0
        %1826 = vmatpush1.msra.mxu0 0.0
        %1827 = vmatprep.subr.mxu0 0.0
        %1828 = vmatpush1.msra.mxu0 0.0
        %1829 = vmatprep.subr.mxu0 0.0
        %1830 = vmatpush1.msra.mxu0 0.0
        %1831 = vmatprep.subr.mxu0 0.0
        %1832 = vmatpush1.msra.mxu0 0.0
        %1833 = vmatprep.subr.mxu0 0.0
        %1834 = vmatpush1.msra.mxu0 0.0
        %1835 = vmatprep.subr.mxu0 0.0
        %1836 = vmatpush1.msra.mxu0 0.0
        %1837 = vmatprep.subr.mxu0 0.0
        %1838 = vmatpush1.msra.mxu0 0.0
        %1839 = vmatprep.subr.mxu0 0.0
        %1840 = vmatpush1.msra.mxu0 0.0
        %1841 = vmatprep.subr.mxu0 0.0
        %1842 = vmatpush1.msra.mxu0 0.0
        %1843 = vmatprep.subr.mxu0 0.0
        %1844 = vmatpush1.msra.mxu0 0.0
        %1845 = vmatprep.subr.mxu0 0.0
        %1846 = vmatpush1.msra.mxu0 0.0
        %1847 = vmatprep.subr.mxu0 0.0
        %1848 = vmatpush1.msra.mxu0 0.0
        %1849 = vmatprep.subr.mxu0 0.0
        %1850 = vmatpush1.msra.mxu0 0.0
        %1851 = vmatprep.subr.mxu0 %v505
        %1852 = vmatpush1.msra.mxu0 %v503
        %1853 = vmatprep.subr.mxu0 0.0
        %1854 = vmatpush2.msra.mxu0 0.0
        %1855 = vmatprep.subr.mxu0 0.0
        %1856 = vmatpush2.msra.mxu0 0.0
        %1857 = vmatprep.subr.mxu0 0.0
        %1858 = vmatpush2.msra.mxu0 0.0
        %1859 = vmatprep.subr.mxu0 0.0
        %1860 = vmatpush2.msra.mxu0 0.0
        %1861 = vmatprep.subr.mxu0 0.0
        %1862 = vmatpush2.msra.mxu0 0.0
        %1863 = vmatprep.subr.mxu0 0.0
        %1864 = vmatpush2.msra.mxu0 0.0
        %1865 = vmatprep.subr.mxu0 0.0
        %1866 = vmatpush2.msra.mxu0 0.0
        %1867 = vmatprep.subr.mxu0 0.0
        %1868 = vmatpush2.msra.mxu0 0.0
        %1869 = vmatprep.subr.mxu0 0.0
        %1870 = vmatpush2.msra.mxu0 0.0
        %1871 = vmatprep.subr.mxu0 0.0
        %1872 = vmatpush2.msra.mxu0 0.0
        %1873 = vmatprep.subr.mxu0 0.0
        %1874 = vmatpush2.msra.mxu0 0.0
        %1875 = vmatprep.subr.mxu0 0.0
        %1876 = vmatpush2.msra.mxu0 0.0
        %1877 = vmatprep.subr.mxu0 0.0
        %1878 = vmatpush2.msra.mxu0 0.0
        %1879 = vmatprep.subr.mxu0 0.0
        %1880 = vmatpush2.msra.mxu0 0.0
        %1881 = vmatprep.subr.mxu0 0.0
        %1882 = vmatpush2.msra.mxu0 0.0
        %1883 = vmatprep.subr.mxu0 0.0
        %1884 = vmatpush2.msra.mxu0 0.0
        %1885 = vmatprep.mubr.f32.mxu0 0.0
        %1886 = vmatmul.mubr.f32.gmra.mxu0 %v435
        %v1887 = vpop.f32.mrf.mxu0
        %v1888 = vadd.f32 %v352, %v1887
        %v1889 = vpop.f32.mrf.mxu0
        %v1890 = vadd.f32 %v352, %v1889
        %1891 = vmatprep.mubr.f32.mxu0 0.0
        %1892 = vmatmul.mubr.f32.gmra.mxu0 %v438
        %v1893 = vpop.f32.mrf.mxu0
        %v1894 = vadd.f32 %v357, %v1893
        %v1895 = vpop.f32.mrf.mxu0
        %v1896 = vadd.f32 %v357, %v1895
        %1897 = vmatprep.mubr.f32.mxu0 0.0
        %1898 = vmatmul.mubr.f32.gmra.mxu0 %v441
        %v1899 = vpop.f32.mrf.mxu0
        %v1900 = vadd.f32 %v362, %v1899
        %v1901 = vpop.f32.mrf.mxu0
        %v1902 = vadd.f32 %v362, %v1901
        %1903 = vmatprep.mubr.f32.mxu0 0.0
        %1904 = vmatmul.mubr.f32.gmra.mxu0 %v444
        %v1905 = vpop.f32.mrf.mxu0
        %v1906 = vadd.f32 %v367, %v1905
        %v1907 = vpop.f32.mrf.mxu0
        %v1908 = vadd.f32 %v367, %v1907
        %1909 = vdwg.mxu0
        %1910 = vmatprep.subr.mxu0 0.0
        %1911 = vmatpush1.msra.mxu0 0.0
        %1912 = vmatprep.subr.mxu0 0.0
        %1913 = vmatpush1.msra.mxu0 0.0
        %1914 = vmatprep.subr.mxu0 0.0
        %1915 = vmatpush1.msra.mxu0 0.0
        %1916 = vmatprep.subr.mxu0 0.0
        %1917 = vmatpush1.msra.mxu0 0.0
        %1918 = vmatprep.subr.mxu0 0.0
        %1919 = vmatpush1.msra.mxu0 0.0
        %1920 = vmatprep.subr.mxu0 0.0
        %1921 = vmatpush1.msra.mxu0 0.0
        %1922 = vmatprep.subr.mxu0 0.0
        %1923 = vmatpush1.msra.mxu0 0.0
        %1924 = vmatprep.subr.mxu0 0.0
        %1925 = vmatpush1.msra.mxu0 0.0
        %1926 = vmatprep.subr.mxu0 0.0
        %1927 = vmatpush1.msra.mxu0 0.0
        %1928 = vmatprep.subr.mxu0 0.0
        %1929 = vmatpush1.msra.mxu0 0.0
        %1930 = vmatprep.subr.mxu0 0.0
        %1931 = vmatpush1.msra.mxu0 0.0
        %1932 = vmatprep.subr.mxu0 0.0
        %1933 = vmatpush1.msra.mxu0 0.0
        %1934 = vmatprep.subr.mxu0 0.0
        %1935 = vmatpush1.msra.mxu0 0.0
        %1936 = vmatprep.subr.mxu0 0.0
        %1937 = vmatpush1.msra.mxu0 0.0
        %1938 = vmatprep.subr.mxu0 0.0
        %1939 = vmatpush1.msra.mxu0 0.0
        %1940 = vmatprep.subr.mxu0 %v509
        %1941 = vmatpush1.msra.mxu0 %v507
        %1942 = vmatprep.subr.mxu0 0.0
        %1943 = vmatpush2.msra.mxu0 0.0
        %1944 = vmatprep.subr.mxu0 0.0
        %1945 = vmatpush2.msra.mxu0 0.0
        %1946 = vmatprep.subr.mxu0 0.0
        %1947 = vmatpush2.msra.mxu0 0.0
        %1948 = vmatprep.subr.mxu0 0.0
        %1949 = vmatpush2.msra.mxu0 0.0
        %1950 = vmatprep.subr.mxu0 0.0
        %1951 = vmatpush2.msra.mxu0 0.0
        %1952 = vmatprep.subr.mxu0 0.0
        %1953 = vmatpush2.msra.mxu0 0.0
        %1954 = vmatprep.subr.mxu0 0.0
        %1955 = vmatpush2.msra.mxu0 0.0
        %1956 = vmatprep.subr.mxu0 0.0
        %1957 = vmatpush2.msra.mxu0 0.0
        %1958 = vmatprep.subr.mxu0 0.0
        %1959 = vmatpush2.msra.mxu0 0.0
        %1960 = vmatprep.subr.mxu0 0.0
        %1961 = vmatpush2.msra.mxu0 0.0
        %1962 = vmatprep.subr.mxu0 0.0
        %1963 = vmatpush2.msra.mxu0 0.0
        %1964 = vmatprep.subr.mxu0 0.0
        %1965 = vmatpush2.msra.mxu0 0.0
        %1966 = vmatprep.subr.mxu0 0.0
        %1967 = vmatpush2.msra.mxu0 0.0
        %1968 = vmatprep.subr.mxu0 0.0
        %1969 = vmatpush2.msra.mxu0 0.0
        %1970 = vmatprep.subr.mxu0 0.0
        %1971 = vmatpush2.msra.mxu0 0.0
        %1972 = vmatprep.subr.mxu0 0.0
        %1973 = vmatpush2.msra.mxu0 0.0
        %1974 = vmatprep.mubr.f32.mxu0 0.0
        %1975 = vmatmul.mubr.f32.gmra.mxu0 %v435
        %v1976 = vpop.f32.mrf.mxu0
        %v1977 = vadd.f32 %v352, %v1976
        %v1978 = vpop.f32.mrf.mxu0
        %v1979 = vadd.f32 %v352, %v1978
        %1980 = vmatprep.mubr.f32.mxu0 0.0
        %1981 = vmatmul.mubr.f32.gmra.mxu0 %v438
        %v1982 = vpop.f32.mrf.mxu0
        %v1983 = vadd.f32 %v357, %v1982
        %v1984 = vpop.f32.mrf.mxu0
        %v1985 = vadd.f32 %v357, %v1984
        %1986 = vmatprep.mubr.f32.mxu0 0.0
        %1987 = vmatmul.mubr.f32.gmra.mxu0 %v441
        %v1988 = vpop.f32.mrf.mxu0
        %v1989 = vadd.f32 %v362, %v1988
        %v1990 = vpop.f32.mrf.mxu0
        %v1991 = vadd.f32 %v362, %v1990
        %1992 = vmatprep.mubr.f32.mxu0 0.0
        %1993 = vmatmul.mubr.f32.gmra.mxu0 %v444
        %v1994 = vpop.f32.mrf.mxu0
        %v1995 = vadd.f32 %v367, %v1994
        %v1996 = vpop.f32.mrf.mxu0
        %v1997 = vadd.f32 %v367, %v1996
        %1998 = vdwg.mxu0
        %1999 = vmatprep.subr.mxu0 0.0
        %2000 = vmatpush1.msra.mxu0 0.0
        %2001 = vmatprep.subr.mxu0 0.0
        %2002 = vmatpush1.msra.mxu0 0.0
        %2003 = vmatprep.subr.mxu0 0.0
        %2004 = vmatpush1.msra.mxu0 0.0
        %2005 = vmatprep.subr.mxu0 0.0
        %2006 = vmatpush1.msra.mxu0 0.0
        %2007 = vmatprep.subr.mxu0 0.0
        %2008 = vmatpush1.msra.mxu0 0.0
        %2009 = vmatprep.subr.mxu0 0.0
        %2010 = vmatpush1.msra.mxu0 0.0
        %2011 = vmatprep.subr.mxu0 0.0
        %2012 = vmatpush1.msra.mxu0 0.0
        %2013 = vmatprep.subr.mxu0 0.0
        %2014 = vmatpush1.msra.mxu0 0.0
        %2015 = vmatprep.subr.mxu0 0.0
        %2016 = vmatpush1.msra.mxu0 0.0
        %2017 = vmatprep.subr.mxu0 0.0
        %2018 = vmatpush1.msra.mxu0 0.0
        %2019 = vmatprep.subr.mxu0 0.0
        %2020 = vmatpush1.msra.mxu0 0.0
        %2021 = vmatprep.subr.mxu0 0.0
        %2022 = vmatpush1.msra.mxu0 0.0
        %2023 = vmatprep.subr.mxu0 0.0
        %2024 = vmatpush1.msra.mxu0 0.0
        %2025 = vmatprep.subr.mxu0 0.0
        %2026 = vmatpush1.msra.mxu0 0.0
        %2027 = vmatprep.subr.mxu0 0.0
        %2028 = vmatpush1.msra.mxu0 0.0
        %2029 = vmatprep.subr.mxu0 %v513
        %2030 = vmatpush1.msra.mxu0 %v511
        %2031 = vmatprep.subr.mxu0 0.0
        %2032 = vmatpush2.msra.mxu0 0.0
        %2033 = vmatprep.subr.mxu0 0.0
        %2034 = vmatpush2.msra.mxu0 0.0
        %2035 = vmatprep.subr.mxu0 0.0
        %2036 = vmatpush2.msra.mxu0 0.0
        %2037 = vmatprep.subr.mxu0 0.0
        %2038 = vmatpush2.msra.mxu0 0.0
        %2039 = vmatprep.subr.mxu0 0.0
        %2040 = vmatpush2.msra.mxu0 0.0
        %2041 = vmatprep.subr.mxu0 0.0
        %2042 = vmatpush2.msra.mxu0 0.0
        %2043 = vmatprep.subr.mxu0 0.0
        %2044 = vmatpush2.msra.mxu0 0.0
        %2045 = vmatprep.subr.mxu0 0.0
        %2046 = vmatpush2.msra.mxu0 0.0
        %2047 = vmatprep.subr.mxu0 0.0
        %2048 = vmatpush2.msra.mxu0 0.0
        %2049 = vmatprep.subr.mxu0 0.0
        %2050 = vmatpush2.msra.mxu0 0.0
        %2051 = vmatprep.subr.mxu0 0.0
        %2052 = vmatpush2.msra.mxu0 0.0
        %2053 = vmatprep.subr.mxu0 0.0
        %2054 = vmatpush2.msra.mxu0 0.0
        %2055 = vmatprep.subr.mxu0 0.0
        %2056 = vmatpush2.msra.mxu0 0.0
        %2057 = vmatprep.subr.mxu0 0.0
        %2058 = vmatpush2.msra.mxu0 0.0
        %2059 = vmatprep.subr.mxu0 0.0
        %2060 = vmatpush2.msra.mxu0 0.0
        %2061 = vmatprep.subr.mxu0 0.0
        %2062 = vmatpush2.msra.mxu0 0.0
        %2063 = vmatprep.mubr.f32.mxu0 0.0
        %2064 = vmatmul.mubr.f32.gmra.mxu0 %v435
        %v2065 = vpop.f32.mrf.mxu0
        %v2066 = vadd.f32 %v352, %v2065
        %v2067 = vpop.f32.mrf.mxu0
        %v2068 = vadd.f32 %v352, %v2067
        %2069 = vmatprep.mubr.f32.mxu0 0.0
        %2070 = vmatmul.mubr.f32.gmra.mxu0 %v438
        %v2071 = vpop.f32.mrf.mxu0
        %v2072 = vadd.f32 %v357, %v2071
        %v2073 = vpop.f32.mrf.mxu0
        %v2074 = vadd.f32 %v357, %v2073
        %2075 = vmatprep.mubr.f32.mxu0 0.0
        %2076 = vmatmul.mubr.f32.gmra.mxu0 %v441
        %v2077 = vpop.f32.mrf.mxu0
        %v2078 = vadd.f32 %v362, %v2077
        %v2079 = vpop.f32.mrf.mxu0
        %v2080 = vadd.f32 %v362, %v2079
        %2081 = vmatprep.mubr.f32.mxu0 0.0
        %2082 = vmatmul.mubr.f32.gmra.mxu0 %v444
        %v2083 = vpop.f32.mrf.mxu0
        %v2084 = vadd.f32 %v367, %v2083
        %v2085 = vpop.f32.mrf.mxu0
        %v2086 = vadd.f32 %v367, %v2085
        %2087 = vdwg.mxu0
        %2088 = vmatprep.subr.mxu0 0.0
        %2089 = vmatpush1.msra.mxu0 0.0
        %2090 = vmatprep.subr.mxu0 0.0
        %2091 = vmatpush1.msra.mxu0 0.0
        %2092 = vmatprep.subr.mxu0 0.0
        %2093 = vmatpush1.msra.mxu0 0.0
        %2094 = vmatprep.subr.mxu0 0.0
        %2095 = vmatpush1.msra.mxu0 0.0
        %2096 = vmatprep.subr.mxu0 0.0
        %2097 = vmatpush1.msra.mxu0 0.0
        %2098 = vmatprep.subr.mxu0 0.0
        %2099 = vmatpush1.msra.mxu0 0.0
        %2100 = vmatprep.subr.mxu0 0.0
        %2101 = vmatpush1.msra.mxu0 0.0
        %2102 = vmatprep.subr.mxu0 0.0
        %2103 = vmatpush1.msra.mxu0 0.0
        %2104 = vmatprep.subr.mxu0 0.0
        %2105 = vmatpush1.msra.mxu0 0.0
        %2106 = vmatprep.subr.mxu0 0.0
        %2107 = vmatpush1.msra.mxu0 0.0
        %2108 = vmatprep.subr.mxu0 0.0
        %2109 = vmatpush1.msra.mxu0 0.0
        %2110 = vmatprep.subr.mxu0 0.0
        %2111 = vmatpush1.msra.mxu0 0.0
        %2112 = vmatprep.subr.mxu0 0.0
        %2113 = vmatpush1.msra.mxu0 0.0
        %2114 = vmatprep.subr.mxu0 0.0
        %2115 = vmatpush1.msra.mxu0 0.0
        %2116 = vmatprep.subr.mxu0 0.0
        %2117 = vmatpush1.msra.mxu0 0.0
        %2118 = vmatprep.subr.mxu0 %v517
        %2119 = vmatpush1.msra.mxu0 %v515
        %2120 = vmatprep.subr.mxu0 0.0
        %2121 = vmatpush2.msra.mxu0 0.0
        %2122 = vmatprep.subr.mxu0 0.0
        %2123 = vmatpush2.msra.mxu0 0.0
        %2124 = vmatprep.subr.mxu0 0.0
        %2125 = vmatpush2.msra.mxu0 0.0
        %2126 = vmatprep.subr.mxu0 0.0
        %2127 = vmatpush2.msra.mxu0 0.0
        %2128 = vmatprep.subr.mxu0 0.0
        %2129 = vmatpush2.msra.mxu0 0.0
        %2130 = vmatprep.subr.mxu0 0.0
        %2131 = vmatpush2.msra.mxu0 0.0
        %2132 = vmatprep.subr.mxu0 0.0
        %2133 = vmatpush2.msra.mxu0 0.0
        %2134 = vmatprep.subr.mxu0 0.0
        %2135 = vmatpush2.msra.mxu0 0.0
        %2136 = vmatprep.subr.mxu0 0.0
        %2137 = vmatpush2.msra.mxu0 0.0
        %2138 = vmatprep.subr.mxu0 0.0
        %2139 = vmatpush2.msra.mxu0 0.0
        %2140 = vmatprep.subr.mxu0 0.0
        %2141 = vmatpush2.msra.mxu0 0.0
        %2142 = vmatprep.subr.mxu0 0.0
        %2143 = vmatpush2.msra.mxu0 0.0
        %2144 = vmatprep.subr.mxu0 0.0
        %2145 = vmatpush2.msra.mxu0 0.0
        %2146 = vmatprep.subr.mxu0 0.0
        %2147 = vmatpush2.msra.mxu0 0.0
        %2148 = vmatprep.subr.mxu0 0.0
        %2149 = vmatpush2.msra.mxu0 0.0
        %2150 = vmatprep.subr.mxu0 0.0
        %2151 = vmatpush2.msra.mxu0 0.0
        %2152 = vmatprep.mubr.f32.mxu0 0.0
        %2153 = vmatmul.mubr.f32.gmra.mxu0 %v435
        %v2154 = vpop.f32.mrf.mxu0
        %v2155 = vadd.f32 %v352, %v2154
        %v2156 = vpop.f32.mrf.mxu0
        %v2157 = vadd.f32 %v352, %v2156
        %2158 = vmatprep.mubr.f32.mxu0 0.0
        %2159 = vmatmul.mubr.f32.gmra.mxu0 %v438
        %v2160 = vpop.f32.mrf.mxu0
        %v2161 = vadd.f32 %v357, %v2160
        %v2162 = vpop.f32.mrf.mxu0
        %v2163 = vadd.f32 %v357, %v2162
        %2164 = vmatprep.mubr.f32.mxu0 0.0
        %2165 = vmatmul.mubr.f32.gmra.mxu0 %v441
        %v2166 = vpop.f32.mrf.mxu0
        %v2167 = vadd.f32 %v362, %v2166
        %v2168 = vpop.f32.mrf.mxu0
        %v2169 = vadd.f32 %v362, %v2168
        %2170 = vmatprep.mubr.f32.mxu0 0.0
        %2171 = vmatmul.mubr.f32.gmra.mxu0 %v444
        %v2172 = vpop.f32.mrf.mxu0
        %v2173 = vadd.f32 %v367, %v2172
        %v2174 = vpop.f32.mrf.mxu0
        %v2175 = vadd.f32 %v367, %v2174
        %2176 = vdwg.mxu0
        %2177 = vmatprep.subr.mxu0 0.0
        %2178 = vmatpush1.msra.mxu0 0.0
        %2179 = vmatprep.subr.mxu0 0.0
        %2180 = vmatpush1.msra.mxu0 0.0
        %2181 = vmatprep.subr.mxu0 0.0
        %2182 = vmatpush1.msra.mxu0 0.0
        %2183 = vmatprep.subr.mxu0 0.0
        %2184 = vmatpush1.msra.mxu0 0.0
        %2185 = vmatprep.subr.mxu0 0.0
        %2186 = vmatpush1.msra.mxu0 0.0
        %2187 = vmatprep.subr.mxu0 0.0
        %2188 = vmatpush1.msra.mxu0 0.0
        %2189 = vmatprep.subr.mxu0 0.0
        %2190 = vmatpush1.msra.mxu0 0.0
        %2191 = vmatprep.subr.mxu0 0.0
        %2192 = vmatpush1.msra.mxu0 0.0
        %2193 = vmatprep.subr.mxu0 0.0
        %2194 = vmatpush1.msra.mxu0 0.0
        %2195 = vmatprep.subr.mxu0 0.0
        %2196 = vmatpush1.msra.mxu0 0.0
        %2197 = vmatprep.subr.mxu0 0.0
        %2198 = vmatpush1.msra.mxu0 0.0
        %2199 = vmatprep.subr.mxu0 0.0
        %2200 = vmatpush1.msra.mxu0 0.0
        %2201 = vmatprep.subr.mxu0 0.0
        %2202 = vmatpush1.msra.mxu0 0.0
        %2203 = vmatprep.subr.mxu0 0.0
        %2204 = vmatpush1.msra.mxu0 0.0
        %2205 = vmatprep.subr.mxu0 0.0
        %2206 = vmatpush1.msra.mxu0 0.0
        %2207 = vmatprep.subr.mxu0 %v521
        %2208 = vmatpush1.msra.mxu0 %v519
        %2209 = vmatprep.subr.mxu0 0.0
        %2210 = vmatpush2.msra.mxu0 0.0
        %2211 = vmatprep.subr.mxu0 0.0
        %2212 = vmatpush2.msra.mxu0 0.0
        %2213 = vmatprep.subr.mxu0 0.0
        %2214 = vmatpush2.msra.mxu0 0.0
        %2215 = vmatprep.subr.mxu0 0.0
        %2216 = vmatpush2.msra.mxu0 0.0
        %2217 = vmatprep.subr.mxu0 0.0
        %2218 = vmatpush2.msra.mxu0 0.0
        %2219 = vmatprep.subr.mxu0 0.0
        %2220 = vmatpush2.msra.mxu0 0.0
        %2221 = vmatprep.subr.mxu0 0.0
        %2222 = vmatpush2.msra.mxu0 0.0
        %2223 = vmatprep.subr.mxu0 0.0
        %2224 = vmatpush2.msra.mxu0 0.0
        %2225 = vmatprep.subr.mxu0 0.0
        %2226 = vmatpush2.msra.mxu0 0.0
        %2227 = vmatprep.subr.mxu0 0.0
        %2228 = vmatpush2.msra.mxu0 0.0
        %2229 = vmatprep.subr.mxu0 0.0
        %2230 = vmatpush2.msra.mxu0 0.0
        %2231 = vmatprep.subr.mxu0 0.0
        %2232 = vmatpush2.msra.mxu0 0.0
        %2233 = vmatprep.subr.mxu0 0.0
        %2234 = vmatpush2.msra.mxu0 0.0
        %2235 = vmatprep.subr.mxu0 0.0
        %2236 = vmatpush2.msra.mxu0 0.0
        %2237 = vmatprep.subr.mxu0 0.0
        %2238 = vmatpush2.msra.mxu0 0.0
        %2239 = vmatprep.subr.mxu0 0.0
        %2240 = vmatpush2.msra.mxu0 0.0
        %2241 = vmatprep.mubr.f32.mxu0 0.0
        %2242 = vmatmul.mubr.f32.gmra.mxu0 %v435
        %v2243 = vpop.f32.mrf.mxu0
        %v2244 = vadd.f32 %v352, %v2243
        %v2245 = vpop.f32.mrf.mxu0
        %v2246 = vadd.f32 %v352, %v2245
        %2247 = vmatprep.mubr.f32.mxu0 0.0
        %2248 = vmatmul.mubr.f32.gmra.mxu0 %v438
        %v2249 = vpop.f32.mrf.mxu0
        %v2250 = vadd.f32 %v357, %v2249
        %v2251 = vpop.f32.mrf.mxu0
        %v2252 = vadd.f32 %v357, %v2251
        %2253 = vmatprep.mubr.f32.mxu0 0.0
        %2254 = vmatmul.mubr.f32.gmra.mxu0 %v441
        %v2255 = vpop.f32.mrf.mxu0
        %v2256 = vadd.f32 %v362, %v2255
        %v2257 = vpop.f32.mrf.mxu0
        %v2258 = vadd.f32 %v362, %v2257
        %2259 = vmatprep.mubr.f32.mxu0 0.0
        %2260 = vmatmul.mubr.f32.gmra.mxu0 %v444
        %v2261 = vpop.f32.mrf.mxu0
        %v2262 = vadd.f32 %v367, %v2261
        %v2263 = vpop.f32.mrf.mxu0
        %v2264 = vadd.f32 %v367, %v2263
        %2265 = vdwg.mxu0
        %2266 = vmatprep.subr.mxu0 0.0
        %2267 = vmatpush1.msra.mxu0 0.0
        %2268 = vmatprep.subr.mxu0 0.0
        %2269 = vmatpush1.msra.mxu0 0.0
        %2270 = vmatprep.subr.mxu0 0.0
        %2271 = vmatpush1.msra.mxu0 0.0
        %2272 = vmatprep.subr.mxu0 0.0
        %2273 = vmatpush1.msra.mxu0 0.0
        %2274 = vmatprep.subr.mxu0 0.0
        %2275 = vmatpush1.msra.mxu0 0.0
        %2276 = vmatprep.subr.mxu0 0.0
        %2277 = vmatpush1.msra.mxu0 0.0
        %2278 = vmatprep.subr.mxu0 0.0
        %2279 = vmatpush1.msra.mxu0 0.0
        %2280 = vmatprep.subr.mxu0 0.0
        %2281 = vmatpush1.msra.mxu0 0.0
        %2282 = vmatprep.subr.mxu0 0.0
        %2283 = vmatpush1.msra.mxu0 0.0
        %2284 = vmatprep.subr.mxu0 0.0
        %2285 = vmatpush1.msra.mxu0 0.0
        %2286 = vmatprep.subr.mxu0 0.0
        %2287 = vmatpush1.msra.mxu0 0.0
        %2288 = vmatprep.subr.mxu0 0.0
        %2289 = vmatpush1.msra.mxu0 0.0
        %2290 = vmatprep.subr.mxu0 0.0
        %2291 = vmatpush1.msra.mxu0 0.0
        %2292 = vmatprep.subr.mxu0 0.0
        %2293 = vmatpush1.msra.mxu0 0.0
        %2294 = vmatprep.subr.mxu0 0.0
        %2295 = vmatpush1.msra.mxu0 0.0
        %2296 = vmatprep.subr.mxu0 %v525
        %2297 = vmatpush1.msra.mxu0 %v523
        %2298 = vmatprep.subr.mxu0 0.0
        %2299 = vmatpush2.msra.mxu0 0.0
        %2300 = vmatprep.subr.mxu0 0.0
        %2301 = vmatpush2.msra.mxu0 0.0
        %2302 = vmatprep.subr.mxu0 0.0
        %2303 = vmatpush2.msra.mxu0 0.0
        %2304 = vmatprep.subr.mxu0 0.0
        %2305 = vmatpush2.msra.mxu0 0.0
        %2306 = vmatprep.subr.mxu0 0.0
        %2307 = vmatpush2.msra.mxu0 0.0
        %2308 = vmatprep.subr.mxu0 0.0
        %2309 = vmatpush2.msra.mxu0 0.0
        %2310 = vmatprep.subr.mxu0 0.0
        %2311 = vmatpush2.msra.mxu0 0.0
        %2312 = vmatprep.subr.mxu0 0.0
        %2313 = vmatpush2.msra.mxu0 0.0
        %2314 = vmatprep.subr.mxu0 0.0
        %2315 = vmatpush2.msra.mxu0 0.0
        %2316 = vmatprep.subr.mxu0 0.0
        %2317 = vmatpush2.msra.mxu0 0.0
        %2318 = vmatprep.subr.mxu0 0.0
        %2319 = vmatpush2.msra.mxu0 0.0
        %2320 = vmatprep.subr.mxu0 0.0
        %2321 = vmatpush2.msra.mxu0 0.0
        %2322 = vmatprep.subr.mxu0 0.0
        %2323 = vmatpush2.msra.mxu0 0.0
        %2324 = vmatprep.subr.mxu0 0.0
        %2325 = vmatpush2.msra.mxu0 0.0
        %2326 = vmatprep.subr.mxu0 0.0
        %2327 = vmatpush2.msra.mxu0 0.0
        %2328 = vmatprep.subr.mxu0 0.0
        %2329 = vmatpush2.msra.mxu0 0.0
        %2330 = vmatprep.mubr.f32.mxu0 0.0
        %2331 = vmatmul.mubr.f32.gmra.mxu0 %v435
        %v2332 = vpop.f32.mrf.mxu0
        %v2333 = vadd.f32 %v352, %v2332
        %v2334 = vpop.f32.mrf.mxu0
        %v2335 = vadd.f32 %v352, %v2334
        %2336 = vmatprep.mubr.f32.mxu0 0.0
        %2337 = vmatmul.mubr.f32.gmra.mxu0 %v438
        %v2338 = vpop.f32.mrf.mxu0
        %v2339 = vadd.f32 %v357, %v2338
        %v2340 = vpop.f32.mrf.mxu0
        %v2341 = vadd.f32 %v357, %v2340
        %2342 = vmatprep.mubr.f32.mxu0 0.0
        %2343 = vmatmul.mubr.f32.gmra.mxu0 %v441
        %v2344 = vpop.f32.mrf.mxu0
        %v2345 = vadd.f32 %v362, %v2344
        %v2346 = vpop.f32.mrf.mxu0
        %v2347 = vadd.f32 %v362, %v2346
        %2348 = vmatprep.mubr.f32.mxu0 0.0
        %2349 = vmatmul.mubr.f32.gmra.mxu0 %v444
        %v2350 = vpop.f32.mrf.mxu0
        %v2351 = vadd.f32 %v367, %v2350
        %v2352 = vpop.f32.mrf.mxu0
        %v2353 = vadd.f32 %v367, %v2352
        %2354 = vdwg.mxu0
        %2355 = vmatprep.subr.mxu0 0.0
        %2356 = vmatpush1.msra.mxu0 0.0
        %2357 = vmatprep.subr.mxu0 0.0
        %2358 = vmatpush1.msra.mxu0 0.0
        %2359 = vmatprep.subr.mxu0 0.0
        %2360 = vmatpush1.msra.mxu0 0.0
        %2361 = vmatprep.subr.mxu0 0.0
        %2362 = vmatpush1.msra.mxu0 0.0
        %2363 = vmatprep.subr.mxu0 0.0
        %2364 = vmatpush1.msra.mxu0 0.0
        %2365 = vmatprep.subr.mxu0 0.0
        %2366 = vmatpush1.msra.mxu0 0.0
        %2367 = vmatprep.subr.mxu0 0.0
        %2368 = vmatpush1.msra.mxu0 0.0
        %2369 = vmatprep.subr.mxu0 0.0
        %2370 = vmatpush1.msra.mxu0 0.0
        %2371 = vmatprep.subr.mxu0 0.0
        %2372 = vmatpush1.msra.mxu0 0.0
        %2373 = vmatprep.subr.mxu0 0.0
        %2374 = vmatpush1.msra.mxu0 0.0
        %2375 = vmatprep.subr.mxu0 0.0
        %2376 = vmatpush1.msra.mxu0 0.0
        %2377 = vmatprep.subr.mxu0 0.0
        %2378 = vmatpush1.msra.mxu0 0.0
        %2379 = vmatprep.subr.mxu0 0.0
        %2380 = vmatpush1.msra.mxu0 0.0
        %2381 = vmatprep.subr.mxu0 0.0
        %2382 = vmatpush1.msra.mxu0 0.0
        %2383 = vmatprep.subr.mxu0 0.0
        %2384 = vmatpush1.msra.mxu0 0.0
        %2385 = vmatprep.subr.mxu0 %v529
        %2386 = vmatpush1.msra.mxu0 %v527
        %2387 = vmatprep.subr.mxu0 0.0
        %2388 = vmatpush2.msra.mxu0 0.0
        %2389 = vmatprep.subr.mxu0 0.0
        %2390 = vmatpush2.msra.mxu0 0.0
        %2391 = vmatprep.subr.mxu0 0.0
        %2392 = vmatpush2.msra.mxu0 0.0
        %2393 = vmatprep.subr.mxu0 0.0
        %2394 = vmatpush2.msra.mxu0 0.0
        %2395 = vmatprep.subr.mxu0 0.0
        %2396 = vmatpush2.msra.mxu0 0.0
        %2397 = vmatprep.subr.mxu0 0.0
        %2398 = vmatpush2.msra.mxu0 0.0
        %2399 = vmatprep.subr.mxu0 0.0
        %2400 = vmatpush2.msra.mxu0 0.0
        %2401 = vmatprep.subr.mxu0 0.0
        %2402 = vmatpush2.msra.mxu0 0.0
        %2403 = vmatprep.subr.mxu0 0.0
        %2404 = vmatpush2.msra.mxu0 0.0
        %2405 = vmatprep.subr.mxu0 0.0
        %2406 = vmatpush2.msra.mxu0 0.0
        %2407 = vmatprep.subr.mxu0 0.0
        %2408 = vmatpush2.msra.mxu0 0.0
        %2409 = vmatprep.subr.mxu0 0.0
        %2410 = vmatpush2.msra.mxu0 0.0
        %2411 = vmatprep.subr.mxu0 0.0
        %2412 = vmatpush2.msra.mxu0 0.0
        %2413 = vmatprep.subr.mxu0 0.0
        %2414 = vmatpush2.msra.mxu0 0.0
        %2415 = vmatprep.subr.mxu0 0.0
        %2416 = vmatpush2.msra.mxu0 0.0
        %2417 = vmatprep.subr.mxu0 0.0
        %2418 = vmatpush2.msra.mxu0 0.0
        %2419 = vmatprep.mubr.f32.mxu0 0.0
        %2420 = vmatmul.mubr.f32.gmra.mxu0 %v435
        %v2421 = vpop.f32.mrf.mxu0
        %v2422 = vadd.f32 %v352, %v2421
        %v2423 = vpop.f32.mrf.mxu0
        %v2424 = vadd.f32 %v352, %v2423
        %2425 = vmatprep.mubr.f32.mxu0 0.0
        %2426 = vmatmul.mubr.f32.gmra.mxu0 %v438
        %v2427 = vpop.f32.mrf.mxu0
        %v2428 = vadd.f32 %v357, %v2427
        %v2429 = vpop.f32.mrf.mxu0
        %v2430 = vadd.f32 %v357, %v2429
        %2431 = vmatprep.mubr.f32.mxu0 0.0
        %2432 = vmatmul.mubr.f32.gmra.mxu0 %v441
        %v2433 = vpop.f32.mrf.mxu0
        %v2434 = vadd.f32 %v362, %v2433
        %v2435 = vpop.f32.mrf.mxu0
        %v2436 = vadd.f32 %v362, %v2435
        %2437 = vmatprep.mubr.f32.mxu0 0.0
        %2438 = vmatmul.mubr.f32.gmra.mxu0 %v444
        %v2439 = vpop.f32.mrf.mxu0
        %v2440 = vadd.f32 %v367, %v2439
        %v2441 = vpop.f32.mrf.mxu0
        %v2442 = vadd.f32 %v367, %v2441
        %2443 = vdwg.mxu0
        %2444 = vmatprep.subr.mxu0 0.0
        %2445 = vmatpush1.msra.mxu0 0.0
        %2446 = vmatprep.subr.mxu0 0.0
        %2447 = vmatpush1.msra.mxu0 0.0
        %2448 = vmatprep.subr.mxu0 0.0
        %2449 = vmatpush1.msra.mxu0 0.0
        %2450 = vmatprep.subr.mxu0 0.0
        %2451 = vmatpush1.msra.mxu0 0.0
        %2452 = vmatprep.subr.mxu0 0.0
        %2453 = vmatpush1.msra.mxu0 0.0
        %2454 = vmatprep.subr.mxu0 0.0
        %2455 = vmatpush1.msra.mxu0 0.0
        %2456 = vmatprep.subr.mxu0 0.0
        %2457 = vmatpush1.msra.mxu0 0.0
        %2458 = vmatprep.subr.mxu0 0.0
        %2459 = vmatpush1.msra.mxu0 0.0
        %2460 = vmatprep.subr.mxu0 0.0
        %2461 = vmatpush1.msra.mxu0 0.0
        %2462 = vmatprep.subr.mxu0 0.0
        %2463 = vmatpush1.msra.mxu0 0.0
        %2464 = vmatprep.subr.mxu0 0.0
        %2465 = vmatpush1.msra.mxu0 0.0
        %2466 = vmatprep.subr.mxu0 0.0
        %2467 = vmatpush1.msra.mxu0 0.0
        %2468 = vmatprep.subr.mxu0 0.0
        %2469 = vmatpush1.msra.mxu0 0.0
        %2470 = vmatprep.subr.mxu0 0.0
        %2471 = vmatpush1.msra.mxu0 0.0
        %2472 = vmatprep.subr.mxu0 0.0
        %2473 = vmatpush1.msra.mxu0 0.0
        %2474 = vmatprep.subr.mxu0 %v533
        %2475 = vmatpush1.msra.mxu0 %v531
        %2476 = vmatprep.subr.mxu0 0.0
        %2477 = vmatpush2.msra.mxu0 0.0
        %2478 = vmatprep.subr.mxu0 0.0
        %2479 = vmatpush2.msra.mxu0 0.0
        %2480 = vmatprep.subr.mxu0 0.0
        %2481 = vmatpush2.msra.mxu0 0.0
        %2482 = vmatprep.subr.mxu0 0.0
        %2483 = vmatpush2.msra.mxu0 0.0
        %2484 = vmatprep.subr.mxu0 0.0
        %2485 = vmatpush2.msra.mxu0 0.0
        %2486 = vmatprep.subr.mxu0 0.0
        %2487 = vmatpush2.msra.mxu0 0.0
        %2488 = vmatprep.subr.mxu0 0.0
        %2489 = vmatpush2.msra.mxu0 0.0
        %2490 = vmatprep.subr.mxu0 0.0
        %2491 = vmatpush2.msra.mxu0 0.0
        %2492 = vmatprep.subr.mxu0 0.0
        %2493 = vmatpush2.msra.mxu0 0.0
        %2494 = vmatprep.subr.mxu0 0.0
        %2495 = vmatpush2.msra.mxu0 0.0
        %2496 = vmatprep.subr.mxu0 0.0
        %2497 = vmatpush2.msra.mxu0 0.0
        %2498 = vmatprep.subr.mxu0 0.0
        %2499 = vmatpush2.msra.mxu0 0.0
        %2500 = vmatprep.subr.mxu0 0.0
        %2501 = vmatpush2.msra.mxu0 0.0
        %2502 = vmatprep.subr.mxu0 0.0
        %2503 = vmatpush2.msra.mxu0 0.0
        %2504 = vmatprep.subr.mxu0 0.0
        %2505 = vmatpush2.msra.mxu0 0.0
        %2506 = vmatprep.subr.mxu0 0.0
        %2507 = vmatpush2.msra.mxu0 0.0
        %2508 = vmatprep.mubr.f32.mxu0 0.0
        %2509 = vmatmul.mubr.f32.gmra.mxu0 %v435
        %v2510 = vpop.f32.mrf.mxu0
        %v2511 = vadd.f32 %v352, %v2510
        %v2512 = vpop.f32.mrf.mxu0
        %v2513 = vadd.f32 %v352, %v2512
        %2514 = vmatprep.mubr.f32.mxu0 0.0
        %2515 = vmatmul.mubr.f32.gmra.mxu0 %v438
        %v2516 = vpop.f32.mrf.mxu0
        %v2517 = vadd.f32 %v357, %v2516
        %v2518 = vpop.f32.mrf.mxu0
        %v2519 = vadd.f32 %v357, %v2518
        %2520 = vmatprep.mubr.f32.mxu0 0.0
        %2521 = vmatmul.mubr.f32.gmra.mxu0 %v441
        %v2522 = vpop.f32.mrf.mxu0
        %v2523 = vadd.f32 %v362, %v2522
        %v2524 = vpop.f32.mrf.mxu0
        %v2525 = vadd.f32 %v362, %v2524
        %2526 = vmatprep.mubr.f32.mxu0 0.0
        %2527 = vmatmul.mubr.f32.gmra.mxu0 %v444
        %v2528 = vpop.f32.mrf.mxu0
        %v2529 = vadd.f32 %v367, %v2528
        %v2530 = vpop.f32.mrf.mxu0
        %v2531 = vadd.f32 %v367, %v2530
        %2532 = vdwg.mxu0
        %2533 = vmatprep.subr.mxu0 0.0
        %2534 = vmatpush1.msra.mxu0 0.0
        %2535 = vmatprep.subr.mxu0 0.0
        %2536 = vmatpush1.msra.mxu0 0.0
        %2537 = vmatprep.subr.mxu0 0.0
        %2538 = vmatpush1.msra.mxu0 0.0
        %2539 = vmatprep.subr.mxu0 0.0
        %2540 = vmatpush1.msra.mxu0 0.0
        %2541 = vmatprep.subr.mxu0 0.0
        %2542 = vmatpush1.msra.mxu0 0.0
        %2543 = vmatprep.subr.mxu0 0.0
        %2544 = vmatpush1.msra.mxu0 0.0
        %2545 = vmatprep.subr.mxu0 0.0
        %2546 = vmatpush1.msra.mxu0 0.0
        %2547 = vmatprep.subr.mxu0 0.0
        %2548 = vmatpush1.msra.mxu0 0.0
        %2549 = vmatprep.subr.mxu0 0.0
        %2550 = vmatpush1.msra.mxu0 0.0
        %2551 = vmatprep.subr.mxu0 0.0
        %2552 = vmatpush1.msra.mxu0 0.0
        %2553 = vmatprep.subr.mxu0 0.0
        %2554 = vmatpush1.msra.mxu0 0.0
        %2555 = vmatprep.subr.mxu0 0.0
        %2556 = vmatpush1.msra.mxu0 0.0
        %2557 = vmatprep.subr.mxu0 0.0
        %2558 = vmatpush1.msra.mxu0 0.0
        %2559 = vmatprep.subr.mxu0 0.0
        %2560 = vmatpush1.msra.mxu0 0.0
        %2561 = vmatprep.subr.mxu0 0.0
        %2562 = vmatpush1.msra.mxu0 0.0
        %2563 = vmatprep.subr.mxu0 %v537
        %2564 = vmatpush1.msra.mxu0 %v535
        %2565 = vmatprep.subr.mxu0 0.0
        %2566 = vmatpush2.msra.mxu0 0.0
        %2567 = vmatprep.subr.mxu0 0.0
        %2568 = vmatpush2.msra.mxu0 0.0
        %2569 = vmatprep.subr.mxu0 0.0
        %2570 = vmatpush2.msra.mxu0 0.0
        %2571 = vmatprep.subr.mxu0 0.0
        %2572 = vmatpush2.msra.mxu0 0.0
        %2573 = vmatprep.subr.mxu0 0.0
        %2574 = vmatpush2.msra.mxu0 0.0
        %2575 = vmatprep.subr.mxu0 0.0
        %2576 = vmatpush2.msra.mxu0 0.0
        %2577 = vmatprep.subr.mxu0 0.0
        %2578 = vmatpush2.msra.mxu0 0.0
        %2579 = vmatprep.subr.mxu0 0.0
        %2580 = vmatpush2.msra.mxu0 0.0
        %2581 = vmatprep.subr.mxu0 0.0
        %2582 = vmatpush2.msra.mxu0 0.0
        %2583 = vmatprep.subr.mxu0 0.0
        %2584 = vmatpush2.msra.mxu0 0.0
        %2585 = vmatprep.subr.mxu0 0.0
        %2586 = vmatpush2.msra.mxu0 0.0
        %2587 = vmatprep.subr.mxu0 0.0
        %2588 = vmatpush2.msra.mxu0 0.0
        %2589 = vmatprep.subr.mxu0 0.0
        %2590 = vmatpush2.msra.mxu0 0.0
        %2591 = vmatprep.subr.mxu0 0.0
        %2592 = vmatpush2.msra.mxu0 0.0
        %2593 = vmatprep.subr.mxu0 0.0
        %2594 = vmatpush2.msra.mxu0 0.0
        %2595 = vmatprep.subr.mxu0 0.0
        %2596 = vmatpush2.msra.mxu0 0.0
        %2597 = vmatprep.mubr.f32.mxu0 0.0
        %2598 = vmatmul.mubr.f32.gmra.mxu0 %v435
        %v2599 = vpop.f32.mrf.mxu0
        %v2600 = vadd.f32 %v352, %v2599
        %v2601 = vpop.f32.mrf.mxu0
        %v2602 = vadd.f32 %v352, %v2601
        %2603 = vmatprep.mubr.f32.mxu0 0.0
        %2604 = vmatmul.mubr.f32.gmra.mxu0 %v438
        %v2605 = vpop.f32.mrf.mxu0
        %v2606 = vadd.f32 %v357, %v2605
        %v2607 = vpop.f32.mrf.mxu0
        %v2608 = vadd.f32 %v357, %v2607
        %2609 = vmatprep.mubr.f32.mxu0 0.0
        %2610 = vmatmul.mubr.f32.gmra.mxu0 %v441
        %v2611 = vpop.f32.mrf.mxu0
        %v2612 = vadd.f32 %v362, %v2611
        %v2613 = vpop.f32.mrf.mxu0
        %v2614 = vadd.f32 %v362, %v2613
        %2615 = vmatprep.mubr.f32.mxu0 0.0
        %2616 = vmatmul.mubr.f32.gmra.mxu0 %v444
        %v2617 = vpop.f32.mrf.mxu0
        %v2618 = vadd.f32 %v367, %v2617
        %v2619 = vpop.f32.mrf.mxu0
        %v2620 = vadd.f32 %v367, %v2619
        %2621 = vdwg.mxu0
        %2622 = vmatprep.subr.mxu0 0.0
        %2623 = vmatpush1.msra.mxu0 0.0
        %2624 = vmatprep.subr.mxu0 0.0
        %2625 = vmatpush1.msra.mxu0 0.0
        %2626 = vmatprep.subr.mxu0 0.0
        %2627 = vmatpush1.msra.mxu0 0.0
        %2628 = vmatprep.subr.mxu0 0.0
        %2629 = vmatpush1.msra.mxu0 0.0
        %2630 = vmatprep.subr.mxu0 0.0
        %2631 = vmatpush1.msra.mxu0 0.0
        %2632 = vmatprep.subr.mxu0 0.0
        %2633 = vmatpush1.msra.mxu0 0.0
        %2634 = vmatprep.subr.mxu0 0.0
        %2635 = vmatpush1.msra.mxu0 0.0
        %2636 = vmatprep.subr.mxu0 0.0
        %2637 = vmatpush1.msra.mxu0 0.0
        %2638 = vmatprep.subr.mxu0 0.0
        %2639 = vmatpush1.msra.mxu0 0.0
        %2640 = vmatprep.subr.mxu0 0.0
        %2641 = vmatpush1.msra.mxu0 0.0
        %2642 = vmatprep.subr.mxu0 0.0
        %2643 = vmatpush1.msra.mxu0 0.0
        %2644 = vmatprep.subr.mxu0 0.0
        %2645 = vmatpush1.msra.mxu0 0.0
        %2646 = vmatprep.subr.mxu0 0.0
        %2647 = vmatpush1.msra.mxu0 0.0
        %2648 = vmatprep.subr.mxu0 0.0
        %2649 = vmatpush1.msra.mxu0 0.0
        %2650 = vmatprep.subr.mxu0 0.0
        %2651 = vmatpush1.msra.mxu0 0.0
        %2652 = vmatprep.subr.mxu0 %v541
        %2653 = vmatpush1.msra.mxu0 %v539
        %2654 = vmatprep.subr.mxu0 0.0
        %2655 = vmatpush2.msra.mxu0 0.0
        %2656 = vmatprep.subr.mxu0 0.0
        %2657 = vmatpush2.msra.mxu0 0.0
        %2658 = vmatprep.subr.mxu0 0.0
        %2659 = vmatpush2.msra.mxu0 0.0
        %2660 = vmatprep.subr.mxu0 0.0
        %2661 = vmatpush2.msra.mxu0 0.0
        %2662 = vmatprep.subr.mxu0 0.0
        %2663 = vmatpush2.msra.mxu0 0.0
        %2664 = vmatprep.subr.mxu0 0.0
        %2665 = vmatpush2.msra.mxu0 0.0
        %2666 = vmatprep.subr.mxu0 0.0
        %2667 = vmatpush2.msra.mxu0 0.0
        %2668 = vmatprep.subr.mxu0 0.0
        %2669 = vmatpush2.msra.mxu0 0.0
        %2670 = vmatprep.subr.mxu0 0.0
        %2671 = vmatpush2.msra.mxu0 0.0
        %2672 = vmatprep.subr.mxu0 0.0
        %2673 = vmatpush2.msra.mxu0 0.0
        %2674 = vmatprep.subr.mxu0 0.0
        %2675 = vmatpush2.msra.mxu0 0.0
        %2676 = vmatprep.subr.mxu0 0.0
        %2677 = vmatpush2.msra.mxu0 0.0
        %2678 = vmatprep.subr.mxu0 0.0
        %2679 = vmatpush2.msra.mxu0 0.0
        %2680 = vmatprep.subr.mxu0 0.0
        %2681 = vmatpush2.msra.mxu0 0.0
        %2682 = vmatprep.subr.mxu0 0.0
        %2683 = vmatpush2.msra.mxu0 0.0
        %2684 = vmatprep.subr.mxu0 0.0
        %2685 = vmatpush2.msra.mxu0 0.0
        %2686 = vmatprep.mubr.f32.mxu0 0.0
        %2687 = vmatmul.mubr.f32.gmra.mxu0 %v435
        %v2688 = vpop.f32.mrf.mxu0
        %v2689 = vadd.f32 %v352, %v2688
        %v2690 = vpop.f32.mrf.mxu0
        %v2691 = vadd.f32 %v352, %v2690
        %2692 = vmatprep.mubr.f32.mxu0 0.0
        %2693 = vmatmul.mubr.f32.gmra.mxu0 %v438
        %v2694 = vpop.f32.mrf.mxu0
        %v2695 = vadd.f32 %v357, %v2694
        %v2696 = vpop.f32.mrf.mxu0
        %v2697 = vadd.f32 %v357, %v2696
        %2698 = vmatprep.mubr.f32.mxu0 0.0
        %2699 = vmatmul.mubr.f32.gmra.mxu0 %v441
        %v2700 = vpop.f32.mrf.mxu0
        %v2701 = vadd.f32 %v362, %v2700
        %v2702 = vpop.f32.mrf.mxu0
        %v2703 = vadd.f32 %v362, %v2702
        %2704 = vmatprep.mubr.f32.mxu0 0.0
        %2705 = vmatmul.mubr.f32.gmra.mxu0 %v444
        %v2706 = vpop.f32.mrf.mxu0
        %v2707 = vadd.f32 %v367, %v2706
        %v2708 = vpop.f32.mrf.mxu0
        %v2709 = vadd.f32 %v367, %v2708
        %2710 = vdwg.mxu0
        %2711 = vmatprep.subr.mxu0 0.0
        %2712 = vmatpush1.msra.mxu0 0.0
        %2713 = vmatprep.subr.mxu0 0.0
        %2714 = vmatpush1.msra.mxu0 0.0
        %2715 = vmatprep.subr.mxu0 0.0
        %2716 = vmatpush1.msra.mxu0 0.0
        %2717 = vmatprep.subr.mxu0 0.0
        %2718 = vmatpush1.msra.mxu0 0.0
        %2719 = vmatprep.subr.mxu0 0.0
        %2720 = vmatpush1.msra.mxu0 0.0
        %2721 = vmatprep.subr.mxu0 0.0
        %2722 = vmatpush1.msra.mxu0 0.0
        %2723 = vmatprep.subr.mxu0 0.0
        %2724 = vmatpush1.msra.mxu0 0.0
        %2725 = vmatprep.subr.mxu0 0.0
        %2726 = vmatpush1.msra.mxu0 0.0
        %2727 = vmatprep.subr.mxu0 0.0
        %2728 = vmatpush1.msra.mxu0 0.0
        %2729 = vmatprep.subr.mxu0 0.0
        %2730 = vmatpush1.msra.mxu0 0.0
        %2731 = vmatprep.subr.mxu0 0.0
        %2732 = vmatpush1.msra.mxu0 0.0
        %2733 = vmatprep.subr.mxu0 0.0
        %2734 = vmatpush1.msra.mxu0 0.0
        %2735 = vmatprep.subr.mxu0 0.0
        %2736 = vmatpush1.msra.mxu0 0.0
        %2737 = vmatprep.subr.mxu0 0.0
        %2738 = vmatpush1.msra.mxu0 0.0
        %2739 = vmatprep.subr.mxu0 0.0
        %2740 = vmatpush1.msra.mxu0 0.0
        %2741 = vmatprep.subr.mxu0 %v545
        %2742 = vmatpush1.msra.mxu0 %v543
        %2743 = vmatprep.subr.mxu0 0.0
        %2744 = vmatpush2.msra.mxu0 0.0
        %2745 = vmatprep.subr.mxu0 0.0
        %2746 = vmatpush2.msra.mxu0 0.0
        %2747 = vmatprep.subr.mxu0 0.0
        %2748 = vmatpush2.msra.mxu0 0.0
        %2749 = vmatprep.subr.mxu0 0.0
        %2750 = vmatpush2.msra.mxu0 0.0
        %2751 = vmatprep.subr.mxu0 0.0
        %2752 = vmatpush2.msra.mxu0 0.0
        %2753 = vmatprep.subr.mxu0 0.0
        %2754 = vmatpush2.msra.mxu0 0.0
        %2755 = vmatprep.subr.mxu0 0.0
        %2756 = vmatpush2.msra.mxu0 0.0
        %2757 = vmatprep.subr.mxu0 0.0
        %2758 = vmatpush2.msra.mxu0 0.0
        %2759 = vmatprep.subr.mxu0 0.0
        %2760 = vmatpush2.msra.mxu0 0.0
        %2761 = vmatprep.subr.mxu0 0.0
        %2762 = vmatpush2.msra.mxu0 0.0
        %2763 = vmatprep.subr.mxu0 0.0
        %2764 = vmatpush2.msra.mxu0 0.0
        %2765 = vmatprep.subr.mxu0 0.0
        %2766 = vmatpush2.msra.mxu0 0.0
        %2767 = vmatprep.subr.mxu0 0.0
        %2768 = vmatpush2.msra.mxu0 0.0
        %2769 = vmatprep.subr.mxu0 0.0
        %2770 = vmatpush2.msra.mxu0 0.0
        %2771 = vmatprep.subr.mxu0 0.0
        %2772 = vmatpush2.msra.mxu0 0.0
        %2773 = vmatprep.subr.mxu0 0.0
        %2774 = vmatpush2.msra.mxu0 0.0
        %2775 = vmatprep.mubr.f32.mxu0 0.0
        %2776 = vmatmul.mubr.f32.gmra.mxu0 %v435
        %v2777 = vpop.f32.mrf.mxu0
        %v2778 = vadd.f32 %v352, %v2777
        %v2779 = vpop.f32.mrf.mxu0
        %v2780 = vadd.f32 %v352, %v2779
        %2781 = vmatprep.mubr.f32.mxu0 0.0
        %2782 = vmatmul.mubr.f32.gmra.mxu0 %v438
        %v2783 = vpop.f32.mrf.mxu0
        %v2784 = vadd.f32 %v357, %v2783
        %v2785 = vpop.f32.mrf.mxu0
        %v2786 = vadd.f32 %v357, %v2785
        %2787 = vmatprep.mubr.f32.mxu0 0.0
        %2788 = vmatmul.mubr.f32.gmra.mxu0 %v441
        %v2789 = vpop.f32.mrf.mxu0
        %v2790 = vadd.f32 %v362, %v2789
        %v2791 = vpop.f32.mrf.mxu0
        %v2792 = vadd.f32 %v362, %v2791
        %2793 = vmatprep.mubr.f32.mxu0 0.0
        %2794 = vmatmul.mubr.f32.gmra.mxu0 %v444
        %v2795 = vpop.f32.mrf.mxu0
        %v2796 = vadd.f32 %v367, %v2795
        %v2797 = vpop.f32.mrf.mxu0
        %v2798 = vadd.f32 %v367, %v2797
        %2799 = vdwg.mxu0
        %2800 = vmatprep.subr.mxu0 0.0
        %2801 = vmatpush1.msra.mxu0 0.0
        %2802 = vmatprep.subr.mxu0 0.0
        %2803 = vmatpush1.msra.mxu0 0.0
        %2804 = vmatprep.subr.mxu0 0.0
        %2805 = vmatpush1.msra.mxu0 0.0
        %2806 = vmatprep.subr.mxu0 0.0
        %2807 = vmatpush1.msra.mxu0 0.0
        %2808 = vmatprep.subr.mxu0 0.0
        %2809 = vmatpush1.msra.mxu0 0.0
        %2810 = vmatprep.subr.mxu0 0.0
        %2811 = vmatpush1.msra.mxu0 0.0
        %2812 = vmatprep.subr.mxu0 0.0
        %2813 = vmatpush1.msra.mxu0 0.0
        %2814 = vmatprep.subr.mxu0 0.0
        %2815 = vmatpush1.msra.mxu0 0.0
        %2816 = vmatprep.subr.mxu0 0.0
        %2817 = vmatpush1.msra.mxu0 0.0
        %2818 = vmatprep.subr.mxu0 0.0
        %2819 = vmatpush1.msra.mxu0 0.0
        %2820 = vmatprep.subr.mxu0 0.0
        %2821 = vmatpush1.msra.mxu0 0.0
        %2822 = vmatprep.subr.mxu0 0.0
        %2823 = vmatpush1.msra.mxu0 0.0
        %2824 = vmatprep.subr.mxu0 0.0
        %2825 = vmatpush1.msra.mxu0 0.0
        %2826 = vmatprep.subr.mxu0 0.0
        %2827 = vmatpush1.msra.mxu0 0.0
        %2828 = vmatprep.subr.mxu0 0.0
        %2829 = vmatpush1.msra.mxu0 0.0
        %2830 = vmatprep.subr.mxu0 %v549
        %2831 = vmatpush1.msra.mxu0 %v547
        %2832 = vmatprep.subr.mxu0 0.0
        %2833 = vmatpush2.msra.mxu0 0.0
        %2834 = vmatprep.subr.mxu0 0.0
        %2835 = vmatpush2.msra.mxu0 0.0
        %2836 = vmatprep.subr.mxu0 0.0
        %2837 = vmatpush2.msra.mxu0 0.0
        %2838 = vmatprep.subr.mxu0 0.0
        %2839 = vmatpush2.msra.mxu0 0.0
        %2840 = vmatprep.subr.mxu0 0.0
        %2841 = vmatpush2.msra.mxu0 0.0
        %2842 = vmatprep.subr.mxu0 0.0
        %2843 = vmatpush2.msra.mxu0 0.0
        %2844 = vmatprep.subr.mxu0 0.0
        %2845 = vmatpush2.msra.mxu0 0.0
        %2846 = vmatprep.subr.mxu0 0.0
        %2847 = vmatpush2.msra.mxu0 0.0
        %2848 = vmatprep.subr.mxu0 0.0
        %2849 = vmatpush2.msra.mxu0 0.0
        %2850 = vmatprep.subr.mxu0 0.0
        %2851 = vmatpush2.msra.mxu0 0.0
        %2852 = vmatprep.subr.mxu0 0.0
        %2853 = vmatpush2.msra.mxu0 0.0
        %2854 = vmatprep.subr.mxu0 0.0
        %2855 = vmatpush2.msra.mxu0 0.0
        %2856 = vmatprep.subr.mxu0 0.0
        %2857 = vmatpush2.msra.mxu0 0.0
        %2858 = vmatprep.subr.mxu0 0.0
        %2859 = vmatpush2.msra.mxu0 0.0
        %2860 = vmatprep.subr.mxu0 0.0
        %2861 = vmatpush2.msra.mxu0 0.0
        %2862 = vmatprep.subr.mxu0 0.0
        %2863 = vmatpush2.msra.mxu0 0.0
        %2864 = vmatprep.mubr.f32.mxu0 0.0
        %2865 = vmatmul.mubr.f32.gmra.mxu0 %v435
        %v2866 = vpop.f32.mrf.mxu0
        %v2867 = vadd.f32 %v352, %v2866
        %v2868 = vpop.f32.mrf.mxu0
        %v2869 = vadd.f32 %v352, %v2868
        %2870 = vmatprep.mubr.f32.mxu0 0.0
        %2871 = vmatmul.mubr.f32.gmra.mxu0 %v438
        %v2872 = vpop.f32.mrf.mxu0
        %v2873 = vadd.f32 %v357, %v2872
        %v2874 = vpop.f32.mrf.mxu0
        %v2875 = vadd.f32 %v357, %v2874
        %2876 = vmatprep.mubr.f32.mxu0 0.0
        %2877 = vmatmul.mubr.f32.gmra.mxu0 %v441
        %v2878 = vpop.f32.mrf.mxu0
        %v2879 = vadd.f32 %v362, %v2878
        %v2880 = vpop.f32.mrf.mxu0
        %v2881 = vadd.f32 %v362, %v2880
        %2882 = vmatprep.mubr.f32.mxu0 0.0
        %2883 = vmatmul.mubr.f32.gmra.mxu0 %v444
        %v2884 = vpop.f32.mrf.mxu0
        %v2885 = vadd.f32 %v367, %v2884
        %v2886 = vpop.f32.mrf.mxu0
        %v2887 = vadd.f32 %v367, %v2886
        %2888 = vdwg.mxu0
        %2889 = vmatprep.subr.mxu0 0.0
        %2890 = vmatpush1.msra.mxu0 0.0
        %2891 = vmatprep.subr.mxu0 0.0
        %2892 = vmatpush1.msra.mxu0 0.0
        %2893 = vmatprep.subr.mxu0 0.0
        %2894 = vmatpush1.msra.mxu0 0.0
        %2895 = vmatprep.subr.mxu0 0.0
        %2896 = vmatpush1.msra.mxu0 0.0
        %2897 = vmatprep.subr.mxu0 0.0
        %2898 = vmatpush1.msra.mxu0 0.0
        %2899 = vmatprep.subr.mxu0 0.0
        %2900 = vmatpush1.msra.mxu0 0.0
        %2901 = vmatprep.subr.mxu0 0.0
        %2902 = vmatpush1.msra.mxu0 0.0
        %2903 = vmatprep.subr.mxu0 0.0
        %2904 = vmatpush1.msra.mxu0 0.0
        %2905 = vmatprep.subr.mxu0 0.0
        %2906 = vmatpush1.msra.mxu0 0.0
        %2907 = vmatprep.subr.mxu0 0.0
        %2908 = vmatpush1.msra.mxu0 0.0
        %2909 = vmatprep.subr.mxu0 0.0
        %2910 = vmatpush1.msra.mxu0 0.0
        %2911 = vmatprep.subr.mxu0 0.0
        %2912 = vmatpush1.msra.mxu0 0.0
        %2913 = vmatprep.subr.mxu0 0.0
        %2914 = vmatpush1.msra.mxu0 0.0
        %2915 = vmatprep.subr.mxu0 0.0
        %2916 = vmatpush1.msra.mxu0 0.0
        %2917 = vmatprep.subr.mxu0 0.0
        %2918 = vmatpush1.msra.mxu0 0.0
        %2919 = vmatprep.subr.mxu0 %v553
        %2920 = vmatpush1.msra.mxu0 %v551
        %2921 = vmatprep.subr.mxu0 0.0
        %2922 = vmatpush2.msra.mxu0 0.0
        %2923 = vmatprep.subr.mxu0 0.0
        %2924 = vmatpush2.msra.mxu0 0.0
        %2925 = vmatprep.subr.mxu0 0.0
        %2926 = vmatpush2.msra.mxu0 0.0
        %2927 = vmatprep.subr.mxu0 0.0
        %2928 = vmatpush2.msra.mxu0 0.0
        %2929 = vmatprep.subr.mxu0 0.0
        %2930 = vmatpush2.msra.mxu0 0.0
        %2931 = vmatprep.subr.mxu0 0.0
        %2932 = vmatpush2.msra.mxu0 0.0
        %2933 = vmatprep.subr.mxu0 0.0
        %2934 = vmatpush2.msra.mxu0 0.0
        %2935 = vmatprep.subr.mxu0 0.0
        %2936 = vmatpush2.msra.mxu0 0.0
        %2937 = vmatprep.subr.mxu0 0.0
        %2938 = vmatpush2.msra.mxu0 0.0
        %2939 = vmatprep.subr.mxu0 0.0
        %2940 = vmatpush2.msra.mxu0 0.0
        %2941 = vmatprep.subr.mxu0 0.0
        %2942 = vmatpush2.msra.mxu0 0.0
        %2943 = vmatprep.subr.mxu0 0.0
        %2944 = vmatpush2.msra.mxu0 0.0
        %2945 = vmatprep.subr.mxu0 0.0
        %2946 = vmatpush2.msra.mxu0 0.0
        %2947 = vmatprep.subr.mxu0 0.0
        %2948 = vmatpush2.msra.mxu0 0.0
        %2949 = vmatprep.subr.mxu0 0.0
        %2950 = vmatpush2.msra.mxu0 0.0
        %2951 = vmatprep.subr.mxu0 0.0
        %2952 = vmatpush2.msra.mxu0 0.0
        %2953 = vmatprep.mubr.f32.mxu0 0.0
        %2954 = vmatmul.mubr.f32.gmra.mxu0 %v435
        %v2955 = vpop.f32.mrf.mxu0
        %v2956 = vadd.f32 %v352, %v2955
        %v2957 = vpop.f32.mrf.mxu0
        %v2958 = vadd.f32 %v352, %v2957
        %2959 = vmatprep.mubr.f32.mxu0 0.0
        %2960 = vmatmul.mubr.f32.gmra.mxu0 %v438
        %v2961 = vpop.f32.mrf.mxu0
        %v2962 = vadd.f32 %v357, %v2961
        %v2963 = vpop.f32.mrf.mxu0
        %v2964 = vadd.f32 %v357, %v2963
        %2965 = vmatprep.mubr.f32.mxu0 0.0
        %2966 = vmatmul.mubr.f32.gmra.mxu0 %v441
        %v2967 = vpop.f32.mrf.mxu0
        %v2968 = vadd.f32 %v362, %v2967
        %v2969 = vpop.f32.mrf.mxu0
        %v2970 = vadd.f32 %v362, %v2969
        %2971 = vmatprep.mubr.f32.mxu0 0.0
        %2972 = vmatmul.mubr.f32.gmra.mxu0 %v444
        %v2973 = vpop.f32.mrf.mxu0
        %v2974 = vadd.f32 %v367, %v2973
        %v2975 = vpop.f32.mrf.mxu0
        %v2976 = vadd.f32 %v367, %v2975
        %2977 = vdwg.mxu0
        %2978 = vmatprep.subr.mxu0 0.0
        %2979 = vmatpush1.msra.mxu0 0.0
        %2980 = vmatprep.subr.mxu0 0.0
        %2981 = vmatpush1.msra.mxu0 0.0
        %2982 = vmatprep.subr.mxu0 0.0
        %2983 = vmatpush1.msra.mxu0 0.0
        %2984 = vmatprep.subr.mxu0 0.0
        %2985 = vmatpush1.msra.mxu0 0.0
        %2986 = vmatprep.subr.mxu0 0.0
        %2987 = vmatpush1.msra.mxu0 0.0
        %2988 = vmatprep.subr.mxu0 0.0
        %2989 = vmatpush1.msra.mxu0 0.0
        %2990 = vmatprep.subr.mxu0 0.0
        %2991 = vmatpush1.msra.mxu0 0.0
        %2992 = vmatprep.subr.mxu0 0.0
        %2993 = vmatpush1.msra.mxu0 0.0
        %2994 = vmatprep.subr.mxu0 0.0
        %2995 = vmatpush1.msra.mxu0 0.0
        %2996 = vmatprep.subr.mxu0 0.0
        %2997 = vmatpush1.msra.mxu0 0.0
        %2998 = vmatprep.subr.mxu0 0.0
        %2999 = vmatpush1.msra.mxu0 0.0
        %3000 = vmatprep.subr.mxu0 0.0
        %3001 = vmatpush1.msra.mxu0 0.0
        %3002 = vmatprep.subr.mxu0 0.0
        %3003 = vmatpush1.msra.mxu0 0.0
        %3004 = vmatprep.subr.mxu0 0.0
        %3005 = vmatpush1.msra.mxu0 0.0
        %3006 = vmatprep.subr.mxu0 0.0
        %3007 = vmatpush1.msra.mxu0 0.0
        %3008 = vmatprep.subr.mxu0 %v557
        %3009 = vmatpush1.msra.mxu0 %v555
        %3010 = vmatprep.subr.mxu0 0.0
        %3011 = vmatpush2.msra.mxu0 0.0
        %3012 = vmatprep.subr.mxu0 0.0
        %3013 = vmatpush2.msra.mxu0 0.0
        %3014 = vmatprep.subr.mxu0 0.0
        %3015 = vmatpush2.msra.mxu0 0.0
        %3016 = vmatprep.subr.mxu0 0.0
        %3017 = vmatpush2.msra.mxu0 0.0
        %3018 = vmatprep.subr.mxu0 0.0
        %3019 = vmatpush2.msra.mxu0 0.0
        %3020 = vmatprep.subr.mxu0 0.0
        %3021 = vmatpush2.msra.mxu0 0.0
        %3022 = vmatprep.subr.mxu0 0.0
        %3023 = vmatpush2.msra.mxu0 0.0
        %3024 = vmatprep.subr.mxu0 0.0
        %3025 = vmatpush2.msra.mxu0 0.0
        %3026 = vmatprep.subr.mxu0 0.0
        %3027 = vmatpush2.msra.mxu0 0.0
        %3028 = vmatprep.subr.mxu0 0.0
        %3029 = vmatpush2.msra.mxu0 0.0
        %3030 = vmatprep.subr.mxu0 0.0
        %3031 = vmatpush2.msra.mxu0 0.0
        %3032 = vmatprep.subr.mxu0 0.0
        %3033 = vmatpush2.msra.mxu0 0.0
        %3034 = vmatprep.subr.mxu0 0.0
        %3035 = vmatpush2.msra.mxu0 0.0
        %3036 = vmatprep.subr.mxu0 0.0
        %3037 = vmatpush2.msra.mxu0 0.0
        %3038 = vmatprep.subr.mxu0 0.0
        %3039 = vmatpush2.msra.mxu0 0.0
        %3040 = vmatprep.subr.mxu0 0.0
        %3041 = vmatpush2.msra.mxu0 0.0
        %3042 = vmatprep.mubr.f32.mxu0 0.0
        %3043 = vmatmul.mubr.f32.gmra.mxu0 %v435
        %v3044 = vpop.f32.mrf.mxu0
        %v3045 = vadd.f32 %v352, %v3044
        %v3046 = vpop.f32.mrf.mxu0
        %v3047 = vadd.f32 %v352, %v3046
        %3048 = vmatprep.mubr.f32.mxu0 0.0
        %3049 = vmatmul.mubr.f32.gmra.mxu0 %v438
        %v3050 = vpop.f32.mrf.mxu0
        %v3051 = vadd.f32 %v357, %v3050
        %v3052 = vpop.f32.mrf.mxu0
        %v3053 = vadd.f32 %v357, %v3052
        %3054 = vmatprep.mubr.f32.mxu0 0.0
        %3055 = vmatmul.mubr.f32.gmra.mxu0 %v441
        %v3056 = vpop.f32.mrf.mxu0
        %v3057 = vadd.f32 %v362, %v3056
        %v3058 = vpop.f32.mrf.mxu0
        %v3059 = vadd.f32 %v362, %v3058
        %3060 = vmatprep.mubr.f32.mxu0 0.0
        %3061 = vmatmul.mubr.f32.gmra.mxu0 %v444
        %v3062 = vpop.f32.mrf.mxu0
        %v3063 = vadd.f32 %v367, %v3062
        %v3064 = vpop.f32.mrf.mxu0
        %v3065 = vadd.f32 %v367, %v3064
        %3066 = vdwg.mxu0
        %3067 = vmatprep.subr.mxu0 0.0
        %3068 = vmatpush1.msra.mxu0 0.0
        %3069 = vmatprep.subr.mxu0 0.0
        %3070 = vmatpush1.msra.mxu0 0.0
        %3071 = vmatprep.subr.mxu0 0.0
        %3072 = vmatpush1.msra.mxu0 0.0
        %3073 = vmatprep.subr.mxu0 0.0
        %3074 = vmatpush1.msra.mxu0 0.0
        %3075 = vmatprep.subr.mxu0 0.0
        %3076 = vmatpush1.msra.mxu0 0.0
        %3077 = vmatprep.subr.mxu0 0.0
        %3078 = vmatpush1.msra.mxu0 0.0
        %3079 = vmatprep.subr.mxu0 0.0
        %3080 = vmatpush1.msra.mxu0 0.0
        %3081 = vmatprep.subr.mxu0 0.0
        %3082 = vmatpush1.msra.mxu0 0.0
        %3083 = vmatprep.subr.mxu0 0.0
        %3084 = vmatpush1.msra.mxu0 0.0
        %3085 = vmatprep.subr.mxu0 0.0
        %3086 = vmatpush1.msra.mxu0 0.0
        %3087 = vmatprep.subr.mxu0 0.0
        %3088 = vmatpush1.msra.mxu0 0.0
        %3089 = vmatprep.subr.mxu0 0.0
        %3090 = vmatpush1.msra.mxu0 0.0
        %3091 = vmatprep.subr.mxu0 0.0
        %3092 = vmatpush1.msra.mxu0 0.0
        %3093 = vmatprep.subr.mxu0 0.0
        %3094 = vmatpush1.msra.mxu0 0.0
        %3095 = vmatprep.subr.mxu0 0.0
        %3096 = vmatpush1.msra.mxu0 0.0
        %3097 = vmatprep.subr.mxu0 %v561
        %3098 = vmatpush1.msra.mxu0 %v559
        %3099 = vmatprep.subr.mxu0 0.0
        %3100 = vmatpush2.msra.mxu0 0.0
        %3101 = vmatprep.subr.mxu0 0.0
        %3102 = vmatpush2.msra.mxu0 0.0
        %3103 = vmatprep.subr.mxu0 0.0
        %3104 = vmatpush2.msra.mxu0 0.0
        %3105 = vmatprep.subr.mxu0 0.0
        %3106 = vmatpush2.msra.mxu0 0.0
        %3107 = vmatprep.subr.mxu0 0.0
        %3108 = vmatpush2.msra.mxu0 0.0
        %3109 = vmatprep.subr.mxu0 0.0
        %3110 = vmatpush2.msra.mxu0 0.0
        %3111 = vmatprep.subr.mxu0 0.0
        %3112 = vmatpush2.msra.mxu0 0.0
        %3113 = vmatprep.subr.mxu0 0.0
        %3114 = vmatpush2.msra.mxu0 0.0
        %3115 = vmatprep.subr.mxu0 0.0
        %3116 = vmatpush2.msra.mxu0 0.0
        %3117 = vmatprep.subr.mxu0 0.0
        %3118 = vmatpush2.msra.mxu0 0.0
        %3119 = vmatprep.subr.mxu0 0.0
        %3120 = vmatpush2.msra.mxu0 0.0
        %3121 = vmatprep.subr.mxu0 0.0
        %3122 = vmatpush2.msra.mxu0 0.0
        %3123 = vmatprep.subr.mxu0 0.0
        %3124 = vmatpush2.msra.mxu0 0.0
        %3125 = vmatprep.subr.mxu0 0.0
        %3126 = vmatpush2.msra.mxu0 0.0
        %3127 = vmatprep.subr.mxu0 0.0
        %3128 = vmatpush2.msra.mxu0 0.0
        %3129 = vmatprep.subr.mxu0 0.0
        %3130 = vmatpush2.msra.mxu0 0.0
        %3131 = vmatprep.mubr.f32.mxu0 0.0
        %3132 = vmatmul.mubr.f32.gmra.mxu0 %v435
        %v3133 = vpop.f32.mrf.mxu0
        %v3134 = vadd.f32 %v352, %v3133
        %v3135 = vpop.f32.mrf.mxu0
        %v3136 = vadd.f32 %v352, %v3135
        %3137 = vmatprep.mubr.f32.mxu0 0.0
        %3138 = vmatmul.mubr.f32.gmra.mxu0 %v438
        %v3139 = vpop.f32.mrf.mxu0
        %v3140 = vadd.f32 %v357, %v3139
        %v3141 = vpop.f32.mrf.mxu0
        %v3142 = vadd.f32 %v357, %v3141
        %3143 = vmatprep.mubr.f32.mxu0 0.0
        %3144 = vmatmul.mubr.f32.gmra.mxu0 %v441
        %v3145 = vpop.f32.mrf.mxu0
        %v3146 = vadd.f32 %v362, %v3145
        %v3147 = vpop.f32.mrf.mxu0
        %v3148 = vadd.f32 %v362, %v3147
        %3149 = vmatprep.mubr.f32.mxu0 0.0
        %3150 = vmatmul.mubr.f32.gmra.mxu0 %v444
        %v3151 = vpop.f32.mrf.mxu0
        %v3152 = vadd.f32 %v367, %v3151
        %v3153 = vpop.f32.mrf.mxu0
        %v3154 = vadd.f32 %v367, %v3153
        %3155 = vdwg.mxu0
        %3156 = vmatprep.subr.mxu0 0.0
        %3157 = vmatpush1.msra.mxu0 0.0
        %3158 = vmatprep.subr.mxu0 0.0
        %3159 = vmatpush1.msra.mxu0 0.0
        %3160 = vmatprep.subr.mxu0 0.0
        %3161 = vmatpush1.msra.mxu0 0.0
        %3162 = vmatprep.subr.mxu0 0.0
        %3163 = vmatpush1.msra.mxu0 0.0
        %3164 = vmatprep.subr.mxu0 0.0
        %3165 = vmatpush1.msra.mxu0 0.0
        %3166 = vmatprep.subr.mxu0 0.0
        %3167 = vmatpush1.msra.mxu0 0.0
        %3168 = vmatprep.subr.mxu0 0.0
        %3169 = vmatpush1.msra.mxu0 0.0
        %3170 = vmatprep.subr.mxu0 0.0
        %3171 = vmatpush1.msra.mxu0 0.0
        %3172 = vmatprep.subr.mxu0 0.0
        %3173 = vmatpush1.msra.mxu0 0.0
        %3174 = vmatprep.subr.mxu0 0.0
        %3175 = vmatpush1.msra.mxu0 0.0
        %3176 = vmatprep.subr.mxu0 0.0
        %3177 = vmatpush1.msra.mxu0 0.0
        %3178 = vmatprep.subr.mxu0 0.0
        %3179 = vmatpush1.msra.mxu0 0.0
        %3180 = vmatprep.subr.mxu0 0.0
        %3181 = vmatpush1.msra.mxu0 0.0
        %3182 = vmatprep.subr.mxu0 0.0
        %3183 = vmatpush1.msra.mxu0 0.0
        %3184 = vmatprep.subr.mxu0 0.0
        %3185 = vmatpush1.msra.mxu0 0.0
        %3186 = vmatprep.subr.mxu0 %v565
        %3187 = vmatpush1.msra.mxu0 %v563
        %3188 = vmatprep.subr.mxu0 0.0
        %3189 = vmatpush2.msra.mxu0 0.0
        %3190 = vmatprep.subr.mxu0 0.0
        %3191 = vmatpush2.msra.mxu0 0.0
        %3192 = vmatprep.subr.mxu0 0.0
        %3193 = vmatpush2.msra.mxu0 0.0
        %3194 = vmatprep.subr.mxu0 0.0
        %3195 = vmatpush2.msra.mxu0 0.0
        %3196 = vmatprep.subr.mxu0 0.0
        %3197 = vmatpush2.msra.mxu0 0.0
        %3198 = vmatprep.subr.mxu0 0.0
        %3199 = vmatpush2.msra.mxu0 0.0
        %3200 = vmatprep.subr.mxu0 0.0
        %3201 = vmatpush2.msra.mxu0 0.0
        %3202 = vmatprep.subr.mxu0 0.0
        %3203 = vmatpush2.msra.mxu0 0.0
        %3204 = vmatprep.subr.mxu0 0.0
        %3205 = vmatpush2.msra.mxu0 0.0
        %3206 = vmatprep.subr.mxu0 0.0
        %3207 = vmatpush2.msra.mxu0 0.0
        %3208 = vmatprep.subr.mxu0 0.0
        %3209 = vmatpush2.msra.mxu0 0.0
        %3210 = vmatprep.subr.mxu0 0.0
        %3211 = vmatpush2.msra.mxu0 0.0
        %3212 = vmatprep.subr.mxu0 0.0
        %3213 = vmatpush2.msra.mxu0 0.0
        %3214 = vmatprep.subr.mxu0 0.0
        %3215 = vmatpush2.msra.mxu0 0.0
        %3216 = vmatprep.subr.mxu0 0.0
        %3217 = vmatpush2.msra.mxu0 0.0
        %3218 = vmatprep.subr.mxu0 0.0
        %3219 = vmatpush2.msra.mxu0 0.0
        %3220 = vmatprep.mubr.f32.mxu0 0.0
        %3221 = vmatmul.mubr.f32.gmra.mxu0 %v435
        %v3222 = vpop.f32.mrf.mxu0
        %v3223 = vadd.f32 %v352, %v3222
        %v3224 = vpop.f32.mrf.mxu0
        %v3225 = vadd.f32 %v352, %v3224
        %3226 = vmatprep.mubr.f32.mxu0 0.0
        %3227 = vmatmul.mubr.f32.gmra.mxu0 %v438
        %v3228 = vpop.f32.mrf.mxu0
        %v3229 = vadd.f32 %v357, %v3228
        %v3230 = vpop.f32.mrf.mxu0
        %v3231 = vadd.f32 %v357, %v3230
        %3232 = vmatprep.mubr.f32.mxu0 0.0
        %3233 = vmatmul.mubr.f32.gmra.mxu0 %v441
        %v3234 = vpop.f32.mrf.mxu0
        %v3235 = vadd.f32 %v362, %v3234
        %v3236 = vpop.f32.mrf.mxu0
        %v3237 = vadd.f32 %v362, %v3236
        %3238 = vmatprep.mubr.f32.mxu0 0.0
        %3239 = vmatmul.mubr.f32.gmra.mxu0 %v444
        %v3240 = vpop.f32.mrf.mxu0
        %v3241 = vadd.f32 %v367, %v3240
        %v3242 = vpop.f32.mrf.mxu0
        %v3243 = vadd.f32 %v367, %v3242
        %3244 = vdwg.mxu0
        %3245 = vmatprep.subr.mxu0 0.0
        %3246 = vmatpush1.msra.mxu0 0.0
        %3247 = vmatprep.subr.mxu0 0.0
        %3248 = vmatpush1.msra.mxu0 0.0
        %3249 = vmatprep.subr.mxu0 0.0
        %3250 = vmatpush1.msra.mxu0 0.0
        %3251 = vmatprep.subr.mxu0 0.0
        %3252 = vmatpush1.msra.mxu0 0.0
        %3253 = vmatprep.subr.mxu0 0.0
        %3254 = vmatpush1.msra.mxu0 0.0
        %3255 = vmatprep.subr.mxu0 0.0
        %3256 = vmatpush1.msra.mxu0 0.0
        %3257 = vmatprep.subr.mxu0 0.0
        %3258 = vmatpush1.msra.mxu0 0.0
        %3259 = vmatprep.subr.mxu0 0.0
        %3260 = vmatpush1.msra.mxu0 0.0
        %3261 = vmatprep.subr.mxu0 0.0
        %3262 = vmatpush1.msra.mxu0 0.0
        %3263 = vmatprep.subr.mxu0 0.0
        %3264 = vmatpush1.msra.mxu0 0.0
        %3265 = vmatprep.subr.mxu0 0.0
        %3266 = vmatpush1.msra.mxu0 0.0
        %3267 = vmatprep.subr.mxu0 0.0
        %3268 = vmatpush1.msra.mxu0 0.0
        %3269 = vmatprep.subr.mxu0 0.0
        %3270 = vmatpush1.msra.mxu0 0.0
        %3271 = vmatprep.subr.mxu0 0.0
        %3272 = vmatpush1.msra.mxu0 0.0
        %3273 = vmatprep.subr.mxu0 0.0
        %3274 = vmatpush1.msra.mxu0 0.0
        %3275 = vmatprep.subr.mxu0 %v569
        %3276 = vmatpush1.msra.mxu0 %v567
        %3277 = vmatprep.subr.mxu0 0.0
        %3278 = vmatpush2.msra.mxu0 0.0
        %3279 = vmatprep.subr.mxu0 0.0
        %3280 = vmatpush2.msra.mxu0 0.0
        %3281 = vmatprep.subr.mxu0 0.0
        %3282 = vmatpush2.msra.mxu0 0.0
        %3283 = vmatprep.subr.mxu0 0.0
        %3284 = vmatpush2.msra.mxu0 0.0
        %3285 = vmatprep.subr.mxu0 0.0
        %3286 = vmatpush2.msra.mxu0 0.0
        %3287 = vmatprep.subr.mxu0 0.0
        %3288 = vmatpush2.msra.mxu0 0.0
        %3289 = vmatprep.subr.mxu0 0.0
        %3290 = vmatpush2.msra.mxu0 0.0
        %3291 = vmatprep.subr.mxu0 0.0
        %3292 = vmatpush2.msra.mxu0 0.0
        %3293 = vmatprep.subr.mxu0 0.0
        %3294 = vmatpush2.msra.mxu0 0.0
        %3295 = vmatprep.subr.mxu0 0.0
        %3296 = vmatpush2.msra.mxu0 0.0
        %3297 = vmatprep.subr.mxu0 0.0
        %3298 = vmatpush2.msra.mxu0 0.0
        %3299 = vmatprep.subr.mxu0 0.0
        %3300 = vmatpush2.msra.mxu0 0.0
        %3301 = vmatprep.subr.mxu0 0.0
        %3302 = vmatpush2.msra.mxu0 0.0
        %3303 = vmatprep.subr.mxu0 0.0
        %3304 = vmatpush2.msra.mxu0 0.0
        %3305 = vmatprep.subr.mxu0 0.0
        %3306 = vmatpush2.msra.mxu0 0.0
        %3307 = vmatprep.subr.mxu0 0.0
        %3308 = vmatpush2.msra.mxu0 0.0
        %3309 = vmatprep.mubr.f32.mxu0 0.0
        %3310 = vmatmul.mubr.f32.gmra.mxu0 %v435
        %v3311 = vpop.f32.mrf.mxu0
        %v3312 = vadd.f32 %v352, %v3311
        %v3313 = vpop.f32.mrf.mxu0
        %v3314 = vadd.f32 %v352, %v3313
        %3315 = vmatprep.mubr.f32.mxu0 0.0
        %3316 = vmatmul.mubr.f32.gmra.mxu0 %v438
        %v3317 = vpop.f32.mrf.mxu0
        %v3318 = vadd.f32 %v357, %v3317
        %v3319 = vpop.f32.mrf.mxu0
        %v3320 = vadd.f32 %v357, %v3319
        %3321 = vmatprep.mubr.f32.mxu0 0.0
        %3322 = vmatmul.mubr.f32.gmra.mxu0 %v441
        %v3323 = vpop.f32.mrf.mxu0
        %v3324 = vadd.f32 %v362, %v3323
        %v3325 = vpop.f32.mrf.mxu0
        %v3326 = vadd.f32 %v362, %v3325
        %3327 = vmatprep.mubr.f32.mxu0 0.0
        %3328 = vmatmul.mubr.f32.gmra.mxu0 %v444
        %v3329 = vpop.f32.mrf.mxu0
        %v3330 = vadd.f32 %v367, %v3329
        %v3331 = vpop.f32.mrf.mxu0
        %v3332 = vadd.f32 %v367, %v3331
        %3333 = vdwg.mxu0
        %3334 = vmatprep.subr.mxu0 0.0
        %3335 = vmatpush1.msra.mxu0 0.0
        %3336 = vmatprep.subr.mxu0 0.0
        %3337 = vmatpush1.msra.mxu0 0.0
        %3338 = vmatprep.subr.mxu0 0.0
        %3339 = vmatpush1.msra.mxu0 0.0
        %3340 = vmatprep.subr.mxu0 0.0
        %3341 = vmatpush1.msra.mxu0 0.0
        %3342 = vmatprep.subr.mxu0 0.0
        %3343 = vmatpush1.msra.mxu0 0.0
        %3344 = vmatprep.subr.mxu0 0.0
        %3345 = vmatpush1.msra.mxu0 0.0
        %3346 = vmatprep.subr.mxu0 0.0
        %3347 = vmatpush1.msra.mxu0 0.0
        %3348 = vmatprep.subr.mxu0 0.0
        %3349 = vmatpush1.msra.mxu0 0.0
        %3350 = vmatprep.subr.mxu0 0.0
        %3351 = vmatpush1.msra.mxu0 0.0
        %3352 = vmatprep.subr.mxu0 0.0
        %3353 = vmatpush1.msra.mxu0 0.0
        %3354 = vmatprep.subr.mxu0 0.0
        %3355 = vmatpush1.msra.mxu0 0.0
        %3356 = vmatprep.subr.mxu0 0.0
        %3357 = vmatpush1.msra.mxu0 0.0
        %3358 = vmatprep.subr.mxu0 0.0
        %3359 = vmatpush1.msra.mxu0 0.0
        %3360 = vmatprep.subr.mxu0 0.0
        %3361 = vmatpush1.msra.mxu0 0.0
        %3362 = vmatprep.subr.mxu0 0.0
        %3363 = vmatpush1.msra.mxu0 0.0
        %3364 = vmatprep.subr.mxu0 %v573
        %3365 = vmatpush1.msra.mxu0 %v571
        %3366 = vmatprep.subr.mxu0 0.0
        %3367 = vmatpush2.msra.mxu0 0.0
        %3368 = vmatprep.subr.mxu0 0.0
        %3369 = vmatpush2.msra.mxu0 0.0
        %3370 = vmatprep.subr.mxu0 0.0
        %3371 = vmatpush2.msra.mxu0 0.0
        %3372 = vmatprep.subr.mxu0 0.0
        %3373 = vmatpush2.msra.mxu0 0.0
        %3374 = vmatprep.subr.mxu0 0.0
        %3375 = vmatpush2.msra.mxu0 0.0
        %3376 = vmatprep.subr.mxu0 0.0
        %3377 = vmatpush2.msra.mxu0 0.0
        %3378 = vmatprep.subr.mxu0 0.0
        %3379 = vmatpush2.msra.mxu0 0.0
        %3380 = vmatprep.subr.mxu0 0.0
        %3381 = vmatpush2.msra.mxu0 0.0
        %3382 = vmatprep.subr.mxu0 0.0
        %3383 = vmatpush2.msra.mxu0 0.0
        %3384 = vmatprep.subr.mxu0 0.0
        %3385 = vmatpush2.msra.mxu0 0.0
        %3386 = vmatprep.subr.mxu0 0.0
        %3387 = vmatpush2.msra.mxu0 0.0
        %3388 = vmatprep.subr.mxu0 0.0
        %3389 = vmatpush2.msra.mxu0 0.0
        %3390 = vmatprep.subr.mxu0 0.0
        %3391 = vmatpush2.msra.mxu0 0.0
        %3392 = vmatprep.subr.mxu0 0.0
        %3393 = vmatpush2.msra.mxu0 0.0
        %3394 = vmatprep.subr.mxu0 0.0
        %3395 = vmatpush2.msra.mxu0 0.0
        %3396 = vmatprep.subr.mxu0 0.0
        %3397 = vmatpush2.msra.mxu0 0.0
        %3398 = vmatprep.mubr.f32.mxu0 0.0
        %3399 = vmatmul.mubr.f32.gmra.mxu0 %v435
        %v3400 = vpop.f32.mrf.mxu0
        %v3401 = vadd.f32 %v352, %v3400
        %v3402 = vpop.f32.mrf.mxu0
        %v3403 = vadd.f32 %v352, %v3402
        %3404 = vmatprep.mubr.f32.mxu0 0.0
        %3405 = vmatmul.mubr.f32.gmra.mxu0 %v438
        %v3406 = vpop.f32.mrf.mxu0
        %v3407 = vadd.f32 %v357, %v3406
        %v3408 = vpop.f32.mrf.mxu0
        %v3409 = vadd.f32 %v357, %v3408
        %3410 = vmatprep.mubr.f32.mxu0 0.0
        %3411 = vmatmul.mubr.f32.gmra.mxu0 %v441
        %v3412 = vpop.f32.mrf.mxu0
        %v3413 = vadd.f32 %v362, %v3412
        %v3414 = vpop.f32.mrf.mxu0
        %v3415 = vadd.f32 %v362, %v3414
        %3416 = vmatprep.mubr.f32.mxu0 0.0
        %3417 = vmatmul.mubr.f32.gmra.mxu0 %v444
        %v3418 = vpop.f32.mrf.mxu0
        %v3419 = vadd.f32 %v367, %v3418
        %v3420 = vpop.f32.mrf.mxu0
        %v3421 = vadd.f32 %v367, %v3420
        %3422 = vdwg.mxu0
        %v3423 = vmax.f32 %v642, 0.0
        %v3424 = vmax.f32 %v644, 0.0
        %v3425 = vmax.f32 %v731, 0.0
        %v3426 = vmax.f32 %v733, 0.0
        %v3427 = vmax.f32 %v820, 0.0
        %v3428 = vmax.f32 %v822, 0.0
        %v3429 = vmax.f32 %v909, 0.0
        %v3430 = vmax.f32 %v911, 0.0
        %v3431 = vmax.f32 %v998, 0.0
        %v3432 = vmax.f32 %v1000, 0.0
        %v3433 = vmax.f32 %v1087, 0.0
        %v3434 = vmax.f32 %v1089, 0.0
        %v3435 = vmax.f32 %v1176, 0.0
        %v3436 = vmax.f32 %v1178, 0.0
        %v3437 = vmax.f32 %v1265, 0.0
        %v3438 = vmax.f32 %v1267, 0.0
        %v3439 = vmax.f32 %v1354, 0.0
        %v3440 = vmax.f32 %v1356, 0.0
        %v3441 = vmax.f32 %v1443, 0.0
        %v3442 = vmax.f32 %v1445, 0.0
        %v3443 = vmax.f32 %v1532, 0.0
        %v3444 = vmax.f32 %v1534, 0.0
        %v3445 = vmax.f32 %v1621, 0.0
        %v3446 = vmax.f32 %v1623, 0.0
        %v3447 = vmax.f32 %v1710, 0.0
        %v3448 = vmax.f32 %v1712, 0.0
        %v3449 = vmax.f32 %v1799, 0.0
        %v3450 = vmax.f32 %v1801, 0.0
        %v3451 = vmax.f32 %v1888, 0.0
        %v3452 = vmax.f32 %v1890, 0.0
        %v3453 = vmax.f32 %v1977, 0.0
        %v3454 = vmax.f32 %v1979, 0.0
        %v3455 = vmax.f32 %v2066, 0.0
        %v3456 = vmax.f32 %v2068, 0.0
        %v3457 = vmax.f32 %v2155, 0.0
        %v3458 = vmax.f32 %v2157, 0.0
        %v3459 = vmax.f32 %v2244, 0.0
        %v3460 = vmax.f32 %v2246, 0.0
        %v3461 = vmax.f32 %v2333, 0.0
        %v3462 = vmax.f32 %v2335, 0.0
        %v3463 = vmax.f32 %v2422, 0.0
        %v3464 = vmax.f32 %v2424, 0.0
        %v3465 = vmax.f32 %v2511, 0.0
        %v3466 = vmax.f32 %v2513, 0.0
        %v3467 = vmax.f32 %v2600, 0.0
        %v3468 = vmax.f32 %v2602, 0.0
        %v3469 = vmax.f32 %v2689, 0.0
        %v3470 = vmax.f32 %v2691, 0.0
        %v3471 = vmax.f32 %v2778, 0.0
        %v3472 = vmax.f32 %v2780, 0.0
        %v3473 = vmax.f32 %v2867, 0.0
        %v3474 = vmax.f32 %v2869, 0.0
        %v3475 = vmax.f32 %v2956, 0.0
        %v3476 = vmax.f32 %v2958, 0.0
        %v3477 = vmax.f32 %v3045, 0.0
        %v3478 = vmax.f32 %v3047, 0.0
        %v3479 = vmax.f32 %v3134, 0.0
        %v3480 = vmax.f32 %v3136, 0.0
        %v3481 = vmax.f32 %v3223, 0.0
        %v3482 = vmax.f32 %v3225, 0.0
        %v3483 = vmax.f32 %v3312, 0.0
        %v3484 = vmax.f32 %v3314, 0.0
        %v3485 = vmax.f32 %v3401, 0.0
        %v3486 = vmax.f32 %v3403, 0.0
        %v3487 = vmax.f32 %v648, 0.0
        %v3488 = vmax.f32 %v650, 0.0
        %v3489 = vmax.f32 %v737, 0.0
        %v3490 = vmax.f32 %v739, 0.0
        %v3491 = vmax.f32 %v826, 0.0
        %v3492 = vmax.f32 %v828, 0.0
        %v3493 = vmax.f32 %v915, 0.0
        %v3494 = vmax.f32 %v917, 0.0
        %v3495 = vmax.f32 %v1004, 0.0
        %v3496 = vmax.f32 %v1006, 0.0
        %v3497 = vmax.f32 %v1093, 0.0
        %v3498 = vmax.f32 %v1095, 0.0
        %v3499 = vmax.f32 %v1182, 0.0
        %v3500 = vmax.f32 %v1184, 0.0
        %v3501 = vmax.f32 %v1271, 0.0
        %v3502 = vmax.f32 %v1273, 0.0
        %v3503 = vmax.f32 %v1360, 0.0
        %v3504 = vmax.f32 %v1362, 0.0
        %v3505 = vmax.f32 %v1449, 0.0
        %v3506 = vmax.f32 %v1451, 0.0
        %v3507 = vmax.f32 %v1538, 0.0
        %v3508 = vmax.f32 %v1540, 0.0
        %v3509 = vmax.f32 %v1627, 0.0
        %v3510 = vmax.f32 %v1629, 0.0
        %v3511 = vmax.f32 %v1716, 0.0
        %v3512 = vmax.f32 %v1718, 0.0
        %v3513 = vmax.f32 %v1805, 0.0
        %v3514 = vmax.f32 %v1807, 0.0
        %v3515 = vmax.f32 %v1894, 0.0
        %v3516 = vmax.f32 %v1896, 0.0
        %v3517 = vmax.f32 %v1983, 0.0
        %v3518 = vmax.f32 %v1985, 0.0
        %v3519 = vmax.f32 %v2072, 0.0
        %v3520 = vmax.f32 %v2074, 0.0
        %v3521 = vmax.f32 %v2161, 0.0
        %v3522 = vmax.f32 %v2163, 0.0
        %v3523 = vmax.f32 %v2250, 0.0
        %v3524 = vmax.f32 %v2252, 0.0
        %v3525 = vmax.f32 %v2339, 0.0
        %v3526 = vmax.f32 %v2341, 0.0
        %v3527 = vmax.f32 %v2428, 0.0
        %v3528 = vmax.f32 %v2430, 0.0
        %v3529 = vmax.f32 %v2517, 0.0
        %v3530 = vmax.f32 %v2519, 0.0
        %v3531 = vmax.f32 %v2606, 0.0
        %v3532 = vmax.f32 %v2608, 0.0
        %v3533 = vmax.f32 %v2695, 0.0
        %v3534 = vmax.f32 %v2697, 0.0
        %v3535 = vmax.f32 %v2784, 0.0
        %v3536 = vmax.f32 %v2786, 0.0
        %v3537 = vmax.f32 %v2873, 0.0
        %v3538 = vmax.f32 %v2875, 0.0
        %v3539 = vmax.f32 %v2962, 0.0
        %v3540 = vmax.f32 %v2964, 0.0
        %v3541 = vmax.f32 %v3051, 0.0
        %v3542 = vmax.f32 %v3053, 0.0
        %v3543 = vmax.f32 %v3140, 0.0
        %v3544 = vmax.f32 %v3142, 0.0
        %v3545 = vmax.f32 %v3229, 0.0
        %v3546 = vmax.f32 %v3231, 0.0
        %v3547 = vmax.f32 %v3318, 0.0
        %v3548 = vmax.f32 %v3320, 0.0
        %v3549 = vmax.f32 %v3407, 0.0
        %v3550 = vmax.f32 %v3409, 0.0
        %v3551 = vmax.f32 %v654, 0.0
        %v3552 = vmax.f32 %v656, 0.0
        %v3553 = vmax.f32 %v743, 0.0
        %v3554 = vmax.f32 %v745, 0.0
        %v3555 = vmax.f32 %v832, 0.0
        %v3556 = vmax.f32 %v834, 0.0
        %v3557 = vmax.f32 %v921, 0.0
        %v3558 = vmax.f32 %v923, 0.0
        %v3559 = vmax.f32 %v1010, 0.0
        %v3560 = vmax.f32 %v1012, 0.0
        %v3561 = vmax.f32 %v1099, 0.0
        %v3562 = vmax.f32 %v1101, 0.0
        %v3563 = vmax.f32 %v1188, 0.0
        %v3564 = vmax.f32 %v1190, 0.0
        %v3565 = vmax.f32 %v1277, 0.0
        %v3566 = vmax.f32 %v1279, 0.0
        %v3567 = vmax.f32 %v1366, 0.0
        %v3568 = vmax.f32 %v1368, 0.0
        %v3569 = vmax.f32 %v1455, 0.0
        %v3570 = vmax.f32 %v1457, 0.0
        %v3571 = vmax.f32 %v1544, 0.0
        %v3572 = vmax.f32 %v1546, 0.0
        %v3573 = vmax.f32 %v1633, 0.0
        %v3574 = vmax.f32 %v1635, 0.0
        %v3575 = vmax.f32 %v1722, 0.0
        %v3576 = vmax.f32 %v1724, 0.0
        %v3577 = vmax.f32 %v1811, 0.0
        %v3578 = vmax.f32 %v1813, 0.0
        %v3579 = vmax.f32 %v1900, 0.0
        %v3580 = vmax.f32 %v1902, 0.0
        %v3581 = vmax.f32 %v1989, 0.0
        %v3582 = vmax.f32 %v1991, 0.0
        %v3583 = vmax.f32 %v2078, 0.0
        %v3584 = vmax.f32 %v2080, 0.0
        %v3585 = vmax.f32 %v2167, 0.0
        %v3586 = vmax.f32 %v2169, 0.0
        %v3587 = vmax.f32 %v2256, 0.0
        %v3588 = vmax.f32 %v2258, 0.0
        %v3589 = vmax.f32 %v2345, 0.0
        %v3590 = vmax.f32 %v2347, 0.0
        %v3591 = vmax.f32 %v2434, 0.0
        %v3592 = vmax.f32 %v2436, 0.0
        %v3593 = vmax.f32 %v2523, 0.0
        %v3594 = vmax.f32 %v2525, 0.0
        %v3595 = vmax.f32 %v2612, 0.0
        %v3596 = vmax.f32 %v2614, 0.0
        %v3597 = vmax.f32 %v2701, 0.0
        %v3598 = vmax.f32 %v2703, 0.0
        %v3599 = vmax.f32 %v2790, 0.0
        %v3600 = vmax.f32 %v2792, 0.0
        %v3601 = vmax.f32 %v2879, 0.0
        %v3602 = vmax.f32 %v2881, 0.0
        %v3603 = vmax.f32 %v2968, 0.0
        %v3604 = vmax.f32 %v2970, 0.0
        %v3605 = vmax.f32 %v3057, 0.0
        %v3606 = vmax.f32 %v3059, 0.0
        %v3607 = vmax.f32 %v3146, 0.0
        %v3608 = vmax.f32 %v3148, 0.0
        %v3609 = vmax.f32 %v3235, 0.0
        %v3610 = vmax.f32 %v3237, 0.0
        %v3611 = vmax.f32 %v3324, 0.0
        %v3612 = vmax.f32 %v3326, 0.0
        %v3613 = vmax.f32 %v3413, 0.0
        %v3614 = vmax.f32 %v3415, 0.0
        %v3615 = vmax.f32 %v660, 0.0
        %v3616 = vmax.f32 %v662, 0.0
        %v3617 = vmax.f32 %v749, 0.0
        %v3618 = vmax.f32 %v751, 0.0
        %v3619 = vmax.f32 %v838, 0.0
        %v3620 = vmax.f32 %v840, 0.0
        %v3621 = vmax.f32 %v927, 0.0
        %v3622 = vmax.f32 %v929, 0.0
        %v3623 = vmax.f32 %v1016, 0.0
        %v3624 = vmax.f32 %v1018, 0.0
        %v3625 = vmax.f32 %v1105, 0.0
        %v3626 = vmax.f32 %v1107, 0.0
        %v3627 = vmax.f32 %v1194, 0.0
        %v3628 = vmax.f32 %v1196, 0.0
        %v3629 = vmax.f32 %v1283, 0.0
        %v3630 = vmax.f32 %v1285, 0.0
        %v3631 = vmax.f32 %v1372, 0.0
        %v3632 = vmax.f32 %v1374, 0.0
        %v3633 = vmax.f32 %v1461, 0.0
        %v3634 = vmax.f32 %v1463, 0.0
        %v3635 = vmax.f32 %v1550, 0.0
        %v3636 = vmax.f32 %v1552, 0.0
        %v3637 = vmax.f32 %v1639, 0.0
        %v3638 = vmax.f32 %v1641, 0.0
        %v3639 = vmax.f32 %v1728, 0.0
        %v3640 = vmax.f32 %v1730, 0.0
        %v3641 = vmax.f32 %v1817, 0.0
        %v3642 = vmax.f32 %v1819, 0.0
        %v3643 = vmax.f32 %v1906, 0.0
        %v3644 = vmax.f32 %v1908, 0.0
        %v3645 = vmax.f32 %v1995, 0.0
        %v3646 = vmax.f32 %v1997, 0.0
        %v3647 = vmax.f32 %v2084, 0.0
        %v3648 = vmax.f32 %v2086, 0.0
        %v3649 = vmax.f32 %v2173, 0.0
        %v3650 = vmax.f32 %v2175, 0.0
        %v3651 = vmax.f32 %v2262, 0.0
        %v3652 = vmax.f32 %v2264, 0.0
        %v3653 = vmax.f32 %v2351, 0.0
        %v3654 = vmax.f32 %v2353, 0.0
        %v3655 = vmax.f32 %v2440, 0.0
        %v3656 = vmax.f32 %v2442, 0.0
        %v3657 = vmax.f32 %v2529, 0.0
        %v3658 = vmax.f32 %v2531, 0.0
        %v3659 = vmax.f32 %v2618, 0.0
        %v3660 = vmax.f32 %v2620, 0.0
        %v3661 = vmax.f32 %v2707, 0.0
        %v3662 = vmax.f32 %v2709, 0.0
        %v3663 = vmax.f32 %v2796, 0.0
        %v3664 = vmax.f32 %v2798, 0.0
        %v3665 = vmax.f32 %v2885, 0.0
        %v3666 = vmax.f32 %v2887, 0.0
        %v3667 = vmax.f32 %v2974, 0.0
        %v3668 = vmax.f32 %v2976, 0.0
        %v3669 = vmax.f32 %v3063, 0.0
        %v3670 = vmax.f32 %v3065, 0.0
        %v3671 = vmax.f32 %v3152, 0.0
        %v3672 = vmax.f32 %v3154, 0.0
        %v3673 = vmax.f32 %v3241, 0.0
        %v3674 = vmax.f32 %v3243, 0.0
        %v3675 = vmax.f32 %v3330, 0.0
        %v3676 = vmax.f32 %v3332, 0.0
        %v3677 = vmax.f32 %v3419, 0.0
        %v3678 = vmax.f32 %v3421, 0.0
        %v3679 = vld [vmem:[%s4] sm:$0x3]
        %v3680 = vld [vmem:[%s5] sm:$0x3]
        %3682 = vset.pattern.permute.xlu0 0
        %3683 = vperm.xlu0 %3682, %v3680
        %v3684 = vpop.permute.xlu0 %3683
        %vm3686 = vcmask 261120
        %v3688 = vsel %vm3686, %v3679, 0
        %3690 = vmatprep.subr.mxu0 0.0
        %3691 = vmatpush1.msra.mxu0 0.0
        %3692 = vmatprep.subr.mxu0 0.0
        %3693 = vmatpush1.msra.mxu0 0.0
        %3694 = vmatprep.subr.mxu0 0.0
        %3695 = vmatpush1.msra.mxu0 0.0
        %3696 = vmatprep.subr.mxu0 0.0
        %3697 = vmatpush1.msra.mxu0 0.0
        %3698 = vmatprep.subr.mxu0 0.0
        %3699 = vmatpush1.msra.mxu0 0.0
        %3700 = vmatprep.subr.mxu0 0.0
        %3701 = vmatpush1.msra.mxu0 0.0
        %3702 = vmatprep.subr.mxu0 0.0
        %3703 = vmatpush1.msra.mxu0 0.0
        %3704 = vmatprep.subr.mxu0 0.0
        %3705 = vmatpush1.msra.mxu0 0.0
        %3706 = vmatprep.subr.mxu0 0.0
        %3707 = vmatpush1.msra.mxu0 0.0
        %3708 = vmatprep.subr.mxu0 0.0
        %3709 = vmatpush1.msra.mxu0 0.0
        %3710 = vmatprep.subr.mxu0 0.0
        %3711 = vmatpush1.msra.mxu0 0.0
        %3712 = vmatprep.subr.mxu0 0.0
        %3713 = vmatpush1.msra.mxu0 0.0
        %3714 = vmatprep.subr.mxu0 %v3616
        %3715 = vmatpush1.msra.mxu0 %v3615
        %3716 = vmatprep.subr.mxu0 %v3552
        %3717 = vmatpush1.msra.mxu0 %v3551
        %3718 = vmatprep.subr.mxu0 %v3488
        %3719 = vmatpush1.msra.mxu0 %v3487
        %3720 = vmatprep.subr.mxu0 %v3424
        %3721 = vmatpush1.msra.mxu0 %v3423
        %3722 = vmatprep.subr.mxu0 0.0
        %3723 = vmatpush2.msra.mxu0 0.0
        %3724 = vmatprep.subr.mxu0 0.0
        %3725 = vmatpush2.msra.mxu0 0.0
        %3726 = vmatprep.subr.mxu0 0.0
        %3727 = vmatpush2.msra.mxu0 0.0
        %3728 = vmatprep.subr.mxu0 0.0
        %3729 = vmatpush2.msra.mxu0 0.0
        %3730 = vmatprep.subr.mxu0 0.0
        %3731 = vmatpush2.msra.mxu0 0.0
        %3732 = vmatprep.subr.mxu0 0.0
        %3733 = vmatpush2.msra.mxu0 0.0
        %3734 = vmatprep.subr.mxu0 0.0
        %3735 = vmatpush2.msra.mxu0 0.0
        %3736 = vmatprep.subr.mxu0 0.0
        %3737 = vmatpush2.msra.mxu0 0.0
        %3738 = vmatprep.subr.mxu0 0.0
        %3739 = vmatpush2.msra.mxu0 0.0
        %3740 = vmatprep.subr.mxu0 0.0
        %3741 = vmatpush2.msra.mxu0 0.0
        %3742 = vmatprep.subr.mxu0 0.0
        %3743 = vmatpush2.msra.mxu0 0.0
        %3744 = vmatprep.subr.mxu0 0.0
        %3745 = vmatpush2.msra.mxu0 0.0
        %3746 = vmatprep.subr.mxu0 0.0
        %3747 = vmatpush2.msra.mxu0 0.0
        %3748 = vmatprep.subr.mxu0 0.0
        %3749 = vmatpush2.msra.mxu0 0.0
        %3750 = vmatprep.subr.mxu0 0.0
        %3751 = vmatpush2.msra.mxu0 0.0
        %3752 = vmatprep.subr.mxu0 0.0
        %3753 = vmatpush2.msra.mxu0 0.0
        %3754 = vmatprep.mubr.f32.mxu0 0.0
        %3755 = vmatmul.mubr.f32.gmra.mxu0 %v3688
        %v3756 = vpop.f32.mrf.mxu0
        %v3757 = vadd.f32 %v3684, %v3756
        %v3758 = vpop.f32.mrf.mxu0
        %v3759 = vadd.f32 %v3684, %v3758
        %3760 = vdwg.mxu0
        %3761 = vmatprep.subr.mxu0 0.0
        %3762 = vmatpush1.msra.mxu0 0.0
        %3763 = vmatprep.subr.mxu0 0.0
        %3764 = vmatpush1.msra.mxu0 0.0
        %3765 = vmatprep.subr.mxu0 0.0
        %3766 = vmatpush1.msra.mxu0 0.0
        %3767 = vmatprep.subr.mxu0 0.0
        %3768 = vmatpush1.msra.mxu0 0.0
        %3769 = vmatprep.subr.mxu0 0.0
        %3770 = vmatpush1.msra.mxu0 0.0
        %3771 = vmatprep.subr.mxu0 0.0
        %3772 = vmatpush1.msra.mxu0 0.0
        %3773 = vmatprep.subr.mxu0 0.0
        %3774 = vmatpush1.msra.mxu0 0.0
        %3775 = vmatprep.subr.mxu0 0.0
        %3776 = vmatpush1.msra.mxu0 0.0
        %3777 = vmatprep.subr.mxu0 0.0
        %3778 = vmatpush1.msra.mxu0 0.0
        %3779 = vmatprep.subr.mxu0 0.0
        %3780 = vmatpush1.msra.mxu0 0.0
        %3781 = vmatprep.subr.mxu0 0.0
        %3782 = vmatpush1.msra.mxu0 0.0
        %3783 = vmatprep.subr.mxu0 0.0
        %3784 = vmatpush1.msra.mxu0 0.0
        %3785 = vmatprep.subr.mxu0 %v3618
        %3786 = vmatpush1.msra.mxu0 %v3617
        %3787 = vmatprep.subr.mxu0 %v3554
        %3788 = vmatpush1.msra.mxu0 %v3553
        %3789 = vmatprep.subr.mxu0 %v3490
        %3790 = vmatpush1.msra.mxu0 %v3489
        %3791 = vmatprep.subr.mxu0 %v3426
        %3792 = vmatpush1.msra.mxu0 %v3425
        %3793 = vmatprep.subr.mxu0 0.0
        %3794 = vmatpush2.msra.mxu0 0.0
        %3795 = vmatprep.subr.mxu0 0.0
        %3796 = vmatpush2.msra.mxu0 0.0
        %3797 = vmatprep.subr.mxu0 0.0
        %3798 = vmatpush2.msra.mxu0 0.0
        %3799 = vmatprep.subr.mxu0 0.0
        %3800 = vmatpush2.msra.mxu0 0.0
        %3801 = vmatprep.subr.mxu0 0.0
        %3802 = vmatpush2.msra.mxu0 0.0
        %3803 = vmatprep.subr.mxu0 0.0
        %3804 = vmatpush2.msra.mxu0 0.0
        %3805 = vmatprep.subr.mxu0 0.0
        %3806 = vmatpush2.msra.mxu0 0.0
        %3807 = vmatprep.subr.mxu0 0.0
        %3808 = vmatpush2.msra.mxu0 0.0
        %3809 = vmatprep.subr.mxu0 0.0
        %3810 = vmatpush2.msra.mxu0 0.0
        %3811 = vmatprep.subr.mxu0 0.0
        %3812 = vmatpush2.msra.mxu0 0.0
        %3813 = vmatprep.subr.mxu0 0.0
        %3814 = vmatpush2.msra.mxu0 0.0
        %3815 = vmatprep.subr.mxu0 0.0
        %3816 = vmatpush2.msra.mxu0 0.0
        %3817 = vmatprep.subr.mxu0 0.0
        %3818 = vmatpush2.msra.mxu0 0.0
        %3819 = vmatprep.subr.mxu0 0.0
        %3820 = vmatpush2.msra.mxu0 0.0
        %3821 = vmatprep.subr.mxu0 0.0
        %3822 = vmatpush2.msra.mxu0 0.0
        %3823 = vmatprep.subr.mxu0 0.0
        %3824 = vmatpush2.msra.mxu0 0.0
        %3825 = vmatprep.mubr.f32.mxu0 0.0
        %3826 = vmatmul.mubr.f32.gmra.mxu0 %v3688
        %v3827 = vpop.f32.mrf.mxu0
        %v3828 = vadd.f32 %v3684, %v3827
        %v3829 = vpop.f32.mrf.mxu0
        %v3830 = vadd.f32 %v3684, %v3829
        %3831 = vdwg.mxu0
        %3832 = vmatprep.subr.mxu0 0.0
        %3833 = vmatpush1.msra.mxu0 0.0
        %3834 = vmatprep.subr.mxu0 0.0
        %3835 = vmatpush1.msra.mxu0 0.0
        %3836 = vmatprep.subr.mxu0 0.0
        %3837 = vmatpush1.msra.mxu0 0.0
        %3838 = vmatprep.subr.mxu0 0.0
        %3839 = vmatpush1.msra.mxu0 0.0
        %3840 = vmatprep.subr.mxu0 0.0
        %3841 = vmatpush1.msra.mxu0 0.0
        %3842 = vmatprep.subr.mxu0 0.0
        %3843 = vmatpush1.msra.mxu0 0.0
        %3844 = vmatprep.subr.mxu0 0.0
        %3845 = vmatpush1.msra.mxu0 0.0
        %3846 = vmatprep.subr.mxu0 0.0
        %3847 = vmatpush1.msra.mxu0 0.0
        %3848 = vmatprep.subr.mxu0 0.0
        %3849 = vmatpush1.msra.mxu0 0.0
        %3850 = vmatprep.subr.mxu0 0.0
        %3851 = vmatpush1.msra.mxu0 0.0
        %3852 = vmatprep.subr.mxu0 0.0
        %3853 = vmatpush1.msra.mxu0 0.0
        %3854 = vmatprep.subr.mxu0 0.0
        %3855 = vmatpush1.msra.mxu0 0.0
        %3856 = vmatprep.subr.mxu0 %v3620
        %3857 = vmatpush1.msra.mxu0 %v3619
        %3858 = vmatprep.subr.mxu0 %v3556
        %3859 = vmatpush1.msra.mxu0 %v3555
        %3860 = vmatprep.subr.mxu0 %v3492
        %3861 = vmatpush1.msra.mxu0 %v3491
        %3862 = vmatprep.subr.mxu0 %v3428
        %3863 = vmatpush1.msra.mxu0 %v3427
        %3864 = vmatprep.subr.mxu0 0.0
        %3865 = vmatpush2.msra.mxu0 0.0
        %3866 = vmatprep.subr.mxu0 0.0
        %3867 = vmatpush2.msra.mxu0 0.0
        %3868 = vmatprep.subr.mxu0 0.0
        %3869 = vmatpush2.msra.mxu0 0.0
        %3870 = vmatprep.subr.mxu0 0.0
        %3871 = vmatpush2.msra.mxu0 0.0
        %3872 = vmatprep.subr.mxu0 0.0
        %3873 = vmatpush2.msra.mxu0 0.0
        %3874 = vmatprep.subr.mxu0 0.0
        %3875 = vmatpush2.msra.mxu0 0.0
        %3876 = vmatprep.subr.mxu0 0.0
        %3877 = vmatpush2.msra.mxu0 0.0
        %3878 = vmatprep.subr.mxu0 0.0
        %3879 = vmatpush2.msra.mxu0 0.0
        %3880 = vmatprep.subr.mxu0 0.0
        %3881 = vmatpush2.msra.mxu0 0.0
        %3882 = vmatprep.subr.mxu0 0.0
        %3883 = vmatpush2.msra.mxu0 0.0
        %3884 = vmatprep.subr.mxu0 0.0
        %3885 = vmatpush2.msra.mxu0 0.0
        %3886 = vmatprep.subr.mxu0 0.0
        %3887 = vmatpush2.msra.mxu0 0.0
        %3888 = vmatprep.subr.mxu0 0.0
        %3889 = vmatpush2.msra.mxu0 0.0
        %3890 = vmatprep.subr.mxu0 0.0
        %3891 = vmatpush2.msra.mxu0 0.0
        %3892 = vmatprep.subr.mxu0 0.0
        %3893 = vmatpush2.msra.mxu0 0.0
        %3894 = vmatprep.subr.mxu0 0.0
        %3895 = vmatpush2.msra.mxu0 0.0
        %3896 = vmatprep.mubr.f32.mxu0 0.0
        %3897 = vmatmul.mubr.f32.gmra.mxu0 %v3688
        %v3898 = vpop.f32.mrf.mxu0
        %v3899 = vadd.f32 %v3684, %v3898
        %v3900 = vpop.f32.mrf.mxu0
        %v3901 = vadd.f32 %v3684, %v3900
        %3902 = vdwg.mxu0
        %3903 = vmatprep.subr.mxu0 0.0
        %3904 = vmatpush1.msra.mxu0 0.0
        %3905 = vmatprep.subr.mxu0 0.0
        %3906 = vmatpush1.msra.mxu0 0.0
        %3907 = vmatprep.subr.mxu0 0.0
        %3908 = vmatpush1.msra.mxu0 0.0
        %3909 = vmatprep.subr.mxu0 0.0
        %3910 = vmatpush1.msra.mxu0 0.0
        %3911 = vmatprep.subr.mxu0 0.0
        %3912 = vmatpush1.msra.mxu0 0.0
        %3913 = vmatprep.subr.mxu0 0.0
        %3914 = vmatpush1.msra.mxu0 0.0
        %3915 = vmatprep.subr.mxu0 0.0
        %3916 = vmatpush1.msra.mxu0 0.0
        %3917 = vmatprep.subr.mxu0 0.0
        %3918 = vmatpush1.msra.mxu0 0.0
        %3919 = vmatprep.subr.mxu0 0.0
        %3920 = vmatpush1.msra.mxu0 0.0
        %3921 = vmatprep.subr.mxu0 0.0
        %3922 = vmatpush1.msra.mxu0 0.0
        %3923 = vmatprep.subr.mxu0 0.0
        %3924 = vmatpush1.msra.mxu0 0.0
        %3925 = vmatprep.subr.mxu0 0.0
        %3926 = vmatpush1.msra.mxu0 0.0
        %3927 = vmatprep.subr.mxu0 %v3622
        %3928 = vmatpush1.msra.mxu0 %v3621
        %3929 = vmatprep.subr.mxu0 %v3558
        %3930 = vmatpush1.msra.mxu0 %v3557
        %3931 = vmatprep.subr.mxu0 %v3494
        %3932 = vmatpush1.msra.mxu0 %v3493
        %3933 = vmatprep.subr.mxu0 %v3430
        %3934 = vmatpush1.msra.mxu0 %v3429
        %3935 = vmatprep.subr.mxu0 0.0
        %3936 = vmatpush2.msra.mxu0 0.0
        %3937 = vmatprep.subr.mxu0 0.0
        %3938 = vmatpush2.msra.mxu0 0.0
        %3939 = vmatprep.subr.mxu0 0.0
        %3940 = vmatpush2.msra.mxu0 0.0
        %3941 = vmatprep.subr.mxu0 0.0
        %3942 = vmatpush2.msra.mxu0 0.0
        %3943 = vmatprep.subr.mxu0 0.0
        %3944 = vmatpush2.msra.mxu0 0.0
        %3945 = vmatprep.subr.mxu0 0.0
        %3946 = vmatpush2.msra.mxu0 0.0
        %3947 = vmatprep.subr.mxu0 0.0
        %3948 = vmatpush2.msra.mxu0 0.0
        %3949 = vmatprep.subr.mxu0 0.0
        %3950 = vmatpush2.msra.mxu0 0.0
        %3951 = vmatprep.subr.mxu0 0.0
        %3952 = vmatpush2.msra.mxu0 0.0
        %3953 = vmatprep.subr.mxu0 0.0
        %3954 = vmatpush2.msra.mxu0 0.0
        %3955 = vmatprep.subr.mxu0 0.0
        %3956 = vmatpush2.msra.mxu0 0.0
        %3957 = vmatprep.subr.mxu0 0.0
        %3958 = vmatpush2.msra.mxu0 0.0
        %3959 = vmatprep.subr.mxu0 0.0
        %3960 = vmatpush2.msra.mxu0 0.0
        %3961 = vmatprep.subr.mxu0 0.0
        %3962 = vmatpush2.msra.mxu0 0.0
        %3963 = vmatprep.subr.mxu0 0.0
        %3964 = vmatpush2.msra.mxu0 0.0
        %3965 = vmatprep.subr.mxu0 0.0
        %3966 = vmatpush2.msra.mxu0 0.0
        %3967 = vmatprep.mubr.f32.mxu0 0.0
        %3968 = vmatmul.mubr.f32.gmra.mxu0 %v3688
        %v3969 = vpop.f32.mrf.mxu0
        %v3970 = vadd.f32 %v3684, %v3969
        %v3971 = vpop.f32.mrf.mxu0
        %v3972 = vadd.f32 %v3684, %v3971
        %3973 = vdwg.mxu0
        %3974 = vmatprep.subr.mxu0 0.0
        %3975 = vmatpush1.msra.mxu0 0.0
        %3976 = vmatprep.subr.mxu0 0.0
        %3977 = vmatpush1.msra.mxu0 0.0
        %3978 = vmatprep.subr.mxu0 0.0
        %3979 = vmatpush1.msra.mxu0 0.0
        %3980 = vmatprep.subr.mxu0 0.0
        %3981 = vmatpush1.msra.mxu0 0.0
        %3982 = vmatprep.subr.mxu0 0.0
        %3983 = vmatpush1.msra.mxu0 0.0
        %3984 = vmatprep.subr.mxu0 0.0
        %3985 = vmatpush1.msra.mxu0 0.0
        %3986 = vmatprep.subr.mxu0 0.0
        %3987 = vmatpush1.msra.mxu0 0.0
        %3988 = vmatprep.subr.mxu0 0.0
        %3989 = vmatpush1.msra.mxu0 0.0
        %3990 = vmatprep.subr.mxu0 0.0
        %3991 = vmatpush1.msra.mxu0 0.0
        %3992 = vmatprep.subr.mxu0 0.0
        %3993 = vmatpush1.msra.mxu0 0.0
        %3994 = vmatprep.subr.mxu0 0.0
        %3995 = vmatpush1.msra.mxu0 0.0
        %3996 = vmatprep.subr.mxu0 0.0
        %3997 = vmatpush1.msra.mxu0 0.0
        %3998 = vmatprep.subr.mxu0 %v3624
        %3999 = vmatpush1.msra.mxu0 %v3623
        %4000 = vmatprep.subr.mxu0 %v3560
        %4001 = vmatpush1.msra.mxu0 %v3559
        %4002 = vmatprep.subr.mxu0 %v3496
        %4003 = vmatpush1.msra.mxu0 %v3495
        %4004 = vmatprep.subr.mxu0 %v3432
        %4005 = vmatpush1.msra.mxu0 %v3431
        %4006 = vmatprep.subr.mxu0 0.0
        %4007 = vmatpush2.msra.mxu0 0.0
        %4008 = vmatprep.subr.mxu0 0.0
        %4009 = vmatpush2.msra.mxu0 0.0
        %4010 = vmatprep.subr.mxu0 0.0
        %4011 = vmatpush2.msra.mxu0 0.0
        %4012 = vmatprep.subr.mxu0 0.0
        %4013 = vmatpush2.msra.mxu0 0.0
        %4014 = vmatprep.subr.mxu0 0.0
        %4015 = vmatpush2.msra.mxu0 0.0
        %4016 = vmatprep.subr.mxu0 0.0
        %4017 = vmatpush2.msra.mxu0 0.0
        %4018 = vmatprep.subr.mxu0 0.0
        %4019 = vmatpush2.msra.mxu0 0.0
        %4020 = vmatprep.subr.mxu0 0.0
        %4021 = vmatpush2.msra.mxu0 0.0
        %4022 = vmatprep.subr.mxu0 0.0
        %4023 = vmatpush2.msra.mxu0 0.0
        %4024 = vmatprep.subr.mxu0 0.0
        %4025 = vmatpush2.msra.mxu0 0.0
        %4026 = vmatprep.subr.mxu0 0.0
        %4027 = vmatpush2.msra.mxu0 0.0
        %4028 = vmatprep.subr.mxu0 0.0
        %4029 = vmatpush2.msra.mxu0 0.0
        %4030 = vmatprep.subr.mxu0 0.0
        %4031 = vmatpush2.msra.mxu0 0.0
        %4032 = vmatprep.subr.mxu0 0.0
        %4033 = vmatpush2.msra.mxu0 0.0
        %4034 = vmatprep.subr.mxu0 0.0
        %4035 = vmatpush2.msra.mxu0 0.0
        %4036 = vmatprep.subr.mxu0 0.0
        %4037 = vmatpush2.msra.mxu0 0.0
        %4038 = vmatprep.mubr.f32.mxu0 0.0
        %4039 = vmatmul.mubr.f32.gmra.mxu0 %v3688
        %v4040 = vpop.f32.mrf.mxu0
        %v4041 = vadd.f32 %v3684, %v4040
        %v4042 = vpop.f32.mrf.mxu0
        %v4043 = vadd.f32 %v3684, %v4042
        %4044 = vdwg.mxu0
        %4045 = vmatprep.subr.mxu0 0.0
        %4046 = vmatpush1.msra.mxu0 0.0
        %4047 = vmatprep.subr.mxu0 0.0
        %4048 = vmatpush1.msra.mxu0 0.0
        %4049 = vmatprep.subr.mxu0 0.0
        %4050 = vmatpush1.msra.mxu0 0.0
        %4051 = vmatprep.subr.mxu0 0.0
        %4052 = vmatpush1.msra.mxu0 0.0
        %4053 = vmatprep.subr.mxu0 0.0
        %4054 = vmatpush1.msra.mxu0 0.0
        %4055 = vmatprep.subr.mxu0 0.0
        %4056 = vmatpush1.msra.mxu0 0.0
        %4057 = vmatprep.subr.mxu0 0.0
        %4058 = vmatpush1.msra.mxu0 0.0
        %4059 = vmatprep.subr.mxu0 0.0
        %4060 = vmatpush1.msra.mxu0 0.0
        %4061 = vmatprep.subr.mxu0 0.0
        %4062 = vmatpush1.msra.mxu0 0.0
        %4063 = vmatprep.subr.mxu0 0.0
        %4064 = vmatpush1.msra.mxu0 0.0
        %4065 = vmatprep.subr.mxu0 0.0
        %4066 = vmatpush1.msra.mxu0 0.0
        %4067 = vmatprep.subr.mxu0 0.0
        %4068 = vmatpush1.msra.mxu0 0.0
        %4069 = vmatprep.subr.mxu0 %v3626
        %4070 = vmatpush1.msra.mxu0 %v3625
        %4071 = vmatprep.subr.mxu0 %v3562
        %4072 = vmatpush1.msra.mxu0 %v3561
        %4073 = vmatprep.subr.mxu0 %v3498
        %4074 = vmatpush1.msra.mxu0 %v3497
        %4075 = vmatprep.subr.mxu0 %v3434
        %4076 = vmatpush1.msra.mxu0 %v3433
        %4077 = vmatprep.subr.mxu0 0.0
        %4078 = vmatpush2.msra.mxu0 0.0
        %4079 = vmatprep.subr.mxu0 0.0
        %4080 = vmatpush2.msra.mxu0 0.0
        %4081 = vmatprep.subr.mxu0 0.0
        %4082 = vmatpush2.msra.mxu0 0.0
        %4083 = vmatprep.subr.mxu0 0.0
        %4084 = vmatpush2.msra.mxu0 0.0
        %4085 = vmatprep.subr.mxu0 0.0
        %4086 = vmatpush2.msra.mxu0 0.0
        %4087 = vmatprep.subr.mxu0 0.0
        %4088 = vmatpush2.msra.mxu0 0.0
        %4089 = vmatprep.subr.mxu0 0.0
        %4090 = vmatpush2.msra.mxu0 0.0
        %4091 = vmatprep.subr.mxu0 0.0
        %4092 = vmatpush2.msra.mxu0 0.0
        %4093 = vmatprep.subr.mxu0 0.0
        %4094 = vmatpush2.msra.mxu0 0.0
        %4095 = vmatprep.subr.mxu0 0.0
        %4096 = vmatpush2.msra.mxu0 0.0
        %4097 = vmatprep.subr.mxu0 0.0
        %4098 = vmatpush2.msra.mxu0 0.0
        %4099 = vmatprep.subr.mxu0 0.0
        %4100 = vmatpush2.msra.mxu0 0.0
        %4101 = vmatprep.subr.mxu0 0.0
        %4102 = vmatpush2.msra.mxu0 0.0
        %4103 = vmatprep.subr.mxu0 0.0
        %4104 = vmatpush2.msra.mxu0 0.0
        %4105 = vmatprep.subr.mxu0 0.0
        %4106 = vmatpush2.msra.mxu0 0.0
        %4107 = vmatprep.subr.mxu0 0.0
        %4108 = vmatpush2.msra.mxu0 0.0
        %4109 = vmatprep.mubr.f32.mxu0 0.0
        %4110 = vmatmul.mubr.f32.gmra.mxu0 %v3688
        %v4111 = vpop.f32.mrf.mxu0
        %v4112 = vadd.f32 %v3684, %v4111
        %v4113 = vpop.f32.mrf.mxu0
        %v4114 = vadd.f32 %v3684, %v4113
        %4115 = vdwg.mxu0
        %4116 = vmatprep.subr.mxu0 0.0
        %4117 = vmatpush1.msra.mxu0 0.0
        %4118 = vmatprep.subr.mxu0 0.0
        %4119 = vmatpush1.msra.mxu0 0.0
        %4120 = vmatprep.subr.mxu0 0.0
        %4121 = vmatpush1.msra.mxu0 0.0
        %4122 = vmatprep.subr.mxu0 0.0
        %4123 = vmatpush1.msra.mxu0 0.0
        %4124 = vmatprep.subr.mxu0 0.0
        %4125 = vmatpush1.msra.mxu0 0.0
        %4126 = vmatprep.subr.mxu0 0.0
        %4127 = vmatpush1.msra.mxu0 0.0
        %4128 = vmatprep.subr.mxu0 0.0
        %4129 = vmatpush1.msra.mxu0 0.0
        %4130 = vmatprep.subr.mxu0 0.0
        %4131 = vmatpush1.msra.mxu0 0.0
        %4132 = vmatprep.subr.mxu0 0.0
        %4133 = vmatpush1.msra.mxu0 0.0
        %4134 = vmatprep.subr.mxu0 0.0
        %4135 = vmatpush1.msra.mxu0 0.0
        %4136 = vmatprep.subr.mxu0 0.0
        %4137 = vmatpush1.msra.mxu0 0.0
        %4138 = vmatprep.subr.mxu0 0.0
        %4139 = vmatpush1.msra.mxu0 0.0
        %4140 = vmatprep.subr.mxu0 %v3628
        %4141 = vmatpush1.msra.mxu0 %v3627
        %4142 = vmatprep.subr.mxu0 %v3564
        %4143 = vmatpush1.msra.mxu0 %v3563
        %4144 = vmatprep.subr.mxu0 %v3500
        %4145 = vmatpush1.msra.mxu0 %v3499
        %4146 = vmatprep.subr.mxu0 %v3436
        %4147 = vmatpush1.msra.mxu0 %v3435
        %4148 = vmatprep.subr.mxu0 0.0
        %4149 = vmatpush2.msra.mxu0 0.0
        %4150 = vmatprep.subr.mxu0 0.0
        %4151 = vmatpush2.msra.mxu0 0.0
        %4152 = vmatprep.subr.mxu0 0.0
        %4153 = vmatpush2.msra.mxu0 0.0
        %4154 = vmatprep.subr.mxu0 0.0
        %4155 = vmatpush2.msra.mxu0 0.0
        %4156 = vmatprep.subr.mxu0 0.0
        %4157 = vmatpush2.msra.mxu0 0.0
        %4158 = vmatprep.subr.mxu0 0.0
        %4159 = vmatpush2.msra.mxu0 0.0
        %4160 = vmatprep.subr.mxu0 0.0
        %4161 = vmatpush2.msra.mxu0 0.0
        %4162 = vmatprep.subr.mxu0 0.0
        %4163 = vmatpush2.msra.mxu0 0.0
        %4164 = vmatprep.subr.mxu0 0.0
        %4165 = vmatpush2.msra.mxu0 0.0
        %4166 = vmatprep.subr.mxu0 0.0
        %4167 = vmatpush2.msra.mxu0 0.0
        %4168 = vmatprep.subr.mxu0 0.0
        %4169 = vmatpush2.msra.mxu0 0.0
        %4170 = vmatprep.subr.mxu0 0.0
        %4171 = vmatpush2.msra.mxu0 0.0
        %4172 = vmatprep.subr.mxu0 0.0
        %4173 = vmatpush2.msra.mxu0 0.0
        %4174 = vmatprep.subr.mxu0 0.0
        %4175 = vmatpush2.msra.mxu0 0.0
        %4176 = vmatprep.subr.mxu0 0.0
        %4177 = vmatpush2.msra.mxu0 0.0
        %4178 = vmatprep.subr.mxu0 0.0
        %4179 = vmatpush2.msra.mxu0 0.0
        %4180 = vmatprep.mubr.f32.mxu0 0.0
        %4181 = vmatmul.mubr.f32.gmra.mxu0 %v3688
        %v4182 = vpop.f32.mrf.mxu0
        %v4183 = vadd.f32 %v3684, %v4182
        %v4184 = vpop.f32.mrf.mxu0
        %v4185 = vadd.f32 %v3684, %v4184
        %4186 = vdwg.mxu0
        %4187 = vmatprep.subr.mxu0 0.0
        %4188 = vmatpush1.msra.mxu0 0.0
        %4189 = vmatprep.subr.mxu0 0.0
        %4190 = vmatpush1.msra.mxu0 0.0
        %4191 = vmatprep.subr.mxu0 0.0
        %4192 = vmatpush1.msra.mxu0 0.0
        %4193 = vmatprep.subr.mxu0 0.0
        %4194 = vmatpush1.msra.mxu0 0.0
        %4195 = vmatprep.subr.mxu0 0.0
        %4196 = vmatpush1.msra.mxu0 0.0
        %4197 = vmatprep.subr.mxu0 0.0
        %4198 = vmatpush1.msra.mxu0 0.0
        %4199 = vmatprep.subr.mxu0 0.0
        %4200 = vmatpush1.msra.mxu0 0.0
        %4201 = vmatprep.subr.mxu0 0.0
        %4202 = vmatpush1.msra.mxu0 0.0
        %4203 = vmatprep.subr.mxu0 0.0
        %4204 = vmatpush1.msra.mxu0 0.0
        %4205 = vmatprep.subr.mxu0 0.0
        %4206 = vmatpush1.msra.mxu0 0.0
        %4207 = vmatprep.subr.mxu0 0.0
        %4208 = vmatpush1.msra.mxu0 0.0
        %4209 = vmatprep.subr.mxu0 0.0
        %4210 = vmatpush1.msra.mxu0 0.0
        %4211 = vmatprep.subr.mxu0 %v3630
        %4212 = vmatpush1.msra.mxu0 %v3629
        %4213 = vmatprep.subr.mxu0 %v3566
        %4214 = vmatpush1.msra.mxu0 %v3565
        %4215 = vmatprep.subr.mxu0 %v3502
        %4216 = vmatpush1.msra.mxu0 %v3501
        %4217 = vmatprep.subr.mxu0 %v3438
        %4218 = vmatpush1.msra.mxu0 %v3437
        %4219 = vmatprep.subr.mxu0 0.0
        %4220 = vmatpush2.msra.mxu0 0.0
        %4221 = vmatprep.subr.mxu0 0.0
        %4222 = vmatpush2.msra.mxu0 0.0
        %4223 = vmatprep.subr.mxu0 0.0
        %4224 = vmatpush2.msra.mxu0 0.0
        %4225 = vmatprep.subr.mxu0 0.0
        %4226 = vmatpush2.msra.mxu0 0.0
        %4227 = vmatprep.subr.mxu0 0.0
        %4228 = vmatpush2.msra.mxu0 0.0
        %4229 = vmatprep.subr.mxu0 0.0
        %4230 = vmatpush2.msra.mxu0 0.0
        %4231 = vmatprep.subr.mxu0 0.0
        %4232 = vmatpush2.msra.mxu0 0.0
        %4233 = vmatprep.subr.mxu0 0.0
        %4234 = vmatpush2.msra.mxu0 0.0
        %4235 = vmatprep.subr.mxu0 0.0
        %4236 = vmatpush2.msra.mxu0 0.0
        %4237 = vmatprep.subr.mxu0 0.0
        %4238 = vmatpush2.msra.mxu0 0.0
        %4239 = vmatprep.subr.mxu0 0.0
        %4240 = vmatpush2.msra.mxu0 0.0
        %4241 = vmatprep.subr.mxu0 0.0
        %4242 = vmatpush2.msra.mxu0 0.0
        %4243 = vmatprep.subr.mxu0 0.0
        %4244 = vmatpush2.msra.mxu0 0.0
        %4245 = vmatprep.subr.mxu0 0.0
        %4246 = vmatpush2.msra.mxu0 0.0
        %4247 = vmatprep.subr.mxu0 0.0
        %4248 = vmatpush2.msra.mxu0 0.0
        %4249 = vmatprep.subr.mxu0 0.0
        %4250 = vmatpush2.msra.mxu0 0.0
        %4251 = vmatprep.mubr.f32.mxu0 0.0
        %4252 = vmatmul.mubr.f32.gmra.mxu0 %v3688
        %v4253 = vpop.f32.mrf.mxu0
        %v4254 = vadd.f32 %v3684, %v4253
        %v4255 = vpop.f32.mrf.mxu0
        %v4256 = vadd.f32 %v3684, %v4255
        %4257 = vdwg.mxu0
        %4258 = vmatprep.subr.mxu0 0.0
        %4259 = vmatpush1.msra.mxu0 0.0
        %4260 = vmatprep.subr.mxu0 0.0
        %4261 = vmatpush1.msra.mxu0 0.0
        %4262 = vmatprep.subr.mxu0 0.0
        %4263 = vmatpush1.msra.mxu0 0.0
        %4264 = vmatprep.subr.mxu0 0.0
        %4265 = vmatpush1.msra.mxu0 0.0
        %4266 = vmatprep.subr.mxu0 0.0
        %4267 = vmatpush1.msra.mxu0 0.0
        %4268 = vmatprep.subr.mxu0 0.0
        %4269 = vmatpush1.msra.mxu0 0.0
        %4270 = vmatprep.subr.mxu0 0.0
        %4271 = vmatpush1.msra.mxu0 0.0
        %4272 = vmatprep.subr.mxu0 0.0
        %4273 = vmatpush1.msra.mxu0 0.0
        %4274 = vmatprep.subr.mxu0 0.0
        %4275 = vmatpush1.msra.mxu0 0.0
        %4276 = vmatprep.subr.mxu0 0.0
        %4277 = vmatpush1.msra.mxu0 0.0
        %4278 = vmatprep.subr.mxu0 0.0
        %4279 = vmatpush1.msra.mxu0 0.0
        %4280 = vmatprep.subr.mxu0 0.0
        %4281 = vmatpush1.msra.mxu0 0.0
        %4282 = vmatprep.subr.mxu0 %v3632
        %4283 = vmatpush1.msra.mxu0 %v3631
        %4284 = vmatprep.subr.mxu0 %v3568
        %4285 = vmatpush1.msra.mxu0 %v3567
        %4286 = vmatprep.subr.mxu0 %v3504
        %4287 = vmatpush1.msra.mxu0 %v3503
        %4288 = vmatprep.subr.mxu0 %v3440
        %4289 = vmatpush1.msra.mxu0 %v3439
        %4290 = vmatprep.subr.mxu0 0.0
        %4291 = vmatpush2.msra.mxu0 0.0
        %4292 = vmatprep.subr.mxu0 0.0
        %4293 = vmatpush2.msra.mxu0 0.0
        %4294 = vmatprep.subr.mxu0 0.0
        %4295 = vmatpush2.msra.mxu0 0.0
        %4296 = vmatprep.subr.mxu0 0.0
        %4297 = vmatpush2.msra.mxu0 0.0
        %4298 = vmatprep.subr.mxu0 0.0
        %4299 = vmatpush2.msra.mxu0 0.0
        %4300 = vmatprep.subr.mxu0 0.0
        %4301 = vmatpush2.msra.mxu0 0.0
        %4302 = vmatprep.subr.mxu0 0.0
        %4303 = vmatpush2.msra.mxu0 0.0
        %4304 = vmatprep.subr.mxu0 0.0
        %4305 = vmatpush2.msra.mxu0 0.0
        %4306 = vmatprep.subr.mxu0 0.0
        %4307 = vmatpush2.msra.mxu0 0.0
        %4308 = vmatprep.subr.mxu0 0.0
        %4309 = vmatpush2.msra.mxu0 0.0
        %4310 = vmatprep.subr.mxu0 0.0
        %4311 = vmatpush2.msra.mxu0 0.0
        %4312 = vmatprep.subr.mxu0 0.0
        %4313 = vmatpush2.msra.mxu0 0.0
        %4314 = vmatprep.subr.mxu0 0.0
        %4315 = vmatpush2.msra.mxu0 0.0
        %4316 = vmatprep.subr.mxu0 0.0
        %4317 = vmatpush2.msra.mxu0 0.0
        %4318 = vmatprep.subr.mxu0 0.0
        %4319 = vmatpush2.msra.mxu0 0.0
        %4320 = vmatprep.subr.mxu0 0.0
        %4321 = vmatpush2.msra.mxu0 0.0
        %4322 = vmatprep.mubr.f32.mxu0 0.0
        %4323 = vmatmul.mubr.f32.gmra.mxu0 %v3688
        %v4324 = vpop.f32.mrf.mxu0
        %v4325 = vadd.f32 %v3684, %v4324
        %v4326 = vpop.f32.mrf.mxu0
        %v4327 = vadd.f32 %v3684, %v4326
        %4328 = vdwg.mxu0
        %4329 = vmatprep.subr.mxu0 0.0
        %4330 = vmatpush1.msra.mxu0 0.0
        %4331 = vmatprep.subr.mxu0 0.0
        %4332 = vmatpush1.msra.mxu0 0.0
        %4333 = vmatprep.subr.mxu0 0.0
        %4334 = vmatpush1.msra.mxu0 0.0
        %4335 = vmatprep.subr.mxu0 0.0
        %4336 = vmatpush1.msra.mxu0 0.0
        %4337 = vmatprep.subr.mxu0 0.0
        %4338 = vmatpush1.msra.mxu0 0.0
        %4339 = vmatprep.subr.mxu0 0.0
        %4340 = vmatpush1.msra.mxu0 0.0
        %4341 = vmatprep.subr.mxu0 0.0
        %4342 = vmatpush1.msra.mxu0 0.0
        %4343 = vmatprep.subr.mxu0 0.0
        %4344 = vmatpush1.msra.mxu0 0.0
        %4345 = vmatprep.subr.mxu0 0.0
        %4346 = vmatpush1.msra.mxu0 0.0
        %4347 = vmatprep.subr.mxu0 0.0
        %4348 = vmatpush1.msra.mxu0 0.0
        %4349 = vmatprep.subr.mxu0 0.0
        %4350 = vmatpush1.msra.mxu0 0.0
        %4351 = vmatprep.subr.mxu0 0.0
        %4352 = vmatpush1.msra.mxu0 0.0
        %4353 = vmatprep.subr.mxu0 %v3634
        %4354 = vmatpush1.msra.mxu0 %v3633
        %4355 = vmatprep.subr.mxu0 %v3570
        %4356 = vmatpush1.msra.mxu0 %v3569
        %4357 = vmatprep.subr.mxu0 %v3506
        %4358 = vmatpush1.msra.mxu0 %v3505
        %4359 = vmatprep.subr.mxu0 %v3442
        %4360 = vmatpush1.msra.mxu0 %v3441
        %4361 = vmatprep.subr.mxu0 0.0
        %4362 = vmatpush2.msra.mxu0 0.0
        %4363 = vmatprep.subr.mxu0 0.0
        %4364 = vmatpush2.msra.mxu0 0.0
        %4365 = vmatprep.subr.mxu0 0.0
        %4366 = vmatpush2.msra.mxu0 0.0
        %4367 = vmatprep.subr.mxu0 0.0
        %4368 = vmatpush2.msra.mxu0 0.0
        %4369 = vmatprep.subr.mxu0 0.0
        %4370 = vmatpush2.msra.mxu0 0.0
        %4371 = vmatprep.subr.mxu0 0.0
        %4372 = vmatpush2.msra.mxu0 0.0
        %4373 = vmatprep.subr.mxu0 0.0
        %4374 = vmatpush2.msra.mxu0 0.0
        %4375 = vmatprep.subr.mxu0 0.0
        %4376 = vmatpush2.msra.mxu0 0.0
        %4377 = vmatprep.subr.mxu0 0.0
        %4378 = vmatpush2.msra.mxu0 0.0
        %4379 = vmatprep.subr.mxu0 0.0
        %4380 = vmatpush2.msra.mxu0 0.0
        %4381 = vmatprep.subr.mxu0 0.0
        %4382 = vmatpush2.msra.mxu0 0.0
        %4383 = vmatprep.subr.mxu0 0.0
        %4384 = vmatpush2.msra.mxu0 0.0
        %4385 = vmatprep.subr.mxu0 0.0
        %4386 = vmatpush2.msra.mxu0 0.0
        %4387 = vmatprep.subr.mxu0 0.0
        %4388 = vmatpush2.msra.mxu0 0.0
        %4389 = vmatprep.subr.mxu0 0.0
        %4390 = vmatpush2.msra.mxu0 0.0
        %4391 = vmatprep.subr.mxu0 0.0
        %4392 = vmatpush2.msra.mxu0 0.0
        %4393 = vmatprep.mubr.f32.mxu0 0.0
        %4394 = vmatmul.mubr.f32.gmra.mxu0 %v3688
        %v4395 = vpop.f32.mrf.mxu0
        %v4396 = vadd.f32 %v3684, %v4395
        %v4397 = vpop.f32.mrf.mxu0
        %v4398 = vadd.f32 %v3684, %v4397
        %4399 = vdwg.mxu0
        %4400 = vmatprep.subr.mxu0 0.0
        %4401 = vmatpush1.msra.mxu0 0.0
        %4402 = vmatprep.subr.mxu0 0.0
        %4403 = vmatpush1.msra.mxu0 0.0
        %4404 = vmatprep.subr.mxu0 0.0
        %4405 = vmatpush1.msra.mxu0 0.0
        %4406 = vmatprep.subr.mxu0 0.0
        %4407 = vmatpush1.msra.mxu0 0.0
        %4408 = vmatprep.subr.mxu0 0.0
        %4409 = vmatpush1.msra.mxu0 0.0
        %4410 = vmatprep.subr.mxu0 0.0
        %4411 = vmatpush1.msra.mxu0 0.0
        %4412 = vmatprep.subr.mxu0 0.0
        %4413 = vmatpush1.msra.mxu0 0.0
        %4414 = vmatprep.subr.mxu0 0.0
        %4415 = vmatpush1.msra.mxu0 0.0
        %4416 = vmatprep.subr.mxu0 0.0
        %4417 = vmatpush1.msra.mxu0 0.0
        %4418 = vmatprep.subr.mxu0 0.0
        %4419 = vmatpush1.msra.mxu0 0.0
        %4420 = vmatprep.subr.mxu0 0.0
        %4421 = vmatpush1.msra.mxu0 0.0
        %4422 = vmatprep.subr.mxu0 0.0
        %4423 = vmatpush1.msra.mxu0 0.0
        %4424 = vmatprep.subr.mxu0 %v3636
        %4425 = vmatpush1.msra.mxu0 %v3635
        %4426 = vmatprep.subr.mxu0 %v3572
        %4427 = vmatpush1.msra.mxu0 %v3571
        %4428 = vmatprep.subr.mxu0 %v3508
        %4429 = vmatpush1.msra.mxu0 %v3507
        %4430 = vmatprep.subr.mxu0 %v3444
        %4431 = vmatpush1.msra.mxu0 %v3443
        %4432 = vmatprep.subr.mxu0 0.0
        %4433 = vmatpush2.msra.mxu0 0.0
        %4434 = vmatprep.subr.mxu0 0.0
        %4435 = vmatpush2.msra.mxu0 0.0
        %4436 = vmatprep.subr.mxu0 0.0
        %4437 = vmatpush2.msra.mxu0 0.0
        %4438 = vmatprep.subr.mxu0 0.0
        %4439 = vmatpush2.msra.mxu0 0.0
        %4440 = vmatprep.subr.mxu0 0.0
        %4441 = vmatpush2.msra.mxu0 0.0
        %4442 = vmatprep.subr.mxu0 0.0
        %4443 = vmatpush2.msra.mxu0 0.0
        %4444 = vmatprep.subr.mxu0 0.0
        %4445 = vmatpush2.msra.mxu0 0.0
        %4446 = vmatprep.subr.mxu0 0.0
        %4447 = vmatpush2.msra.mxu0 0.0
        %4448 = vmatprep.subr.mxu0 0.0
        %4449 = vmatpush2.msra.mxu0 0.0
        %4450 = vmatprep.subr.mxu0 0.0
        %4451 = vmatpush2.msra.mxu0 0.0
        %4452 = vmatprep.subr.mxu0 0.0
        %4453 = vmatpush2.msra.mxu0 0.0
        %4454 = vmatprep.subr.mxu0 0.0
        %4455 = vmatpush2.msra.mxu0 0.0
        %4456 = vmatprep.subr.mxu0 0.0
        %4457 = vmatpush2.msra.mxu0 0.0
        %4458 = vmatprep.subr.mxu0 0.0
        %4459 = vmatpush2.msra.mxu0 0.0
        %4460 = vmatprep.subr.mxu0 0.0
        %4461 = vmatpush2.msra.mxu0 0.0
        %4462 = vmatprep.subr.mxu0 0.0
        %4463 = vmatpush2.msra.mxu0 0.0
        %4464 = vmatprep.mubr.f32.mxu0 0.0
        %4465 = vmatmul.mubr.f32.gmra.mxu0 %v3688
        %v4466 = vpop.f32.mrf.mxu0
        %v4467 = vadd.f32 %v3684, %v4466
        %v4468 = vpop.f32.mrf.mxu0
        %v4469 = vadd.f32 %v3684, %v4468
        %4470 = vdwg.mxu0
        %4471 = vmatprep.subr.mxu0 0.0
        %4472 = vmatpush1.msra.mxu0 0.0
        %4473 = vmatprep.subr.mxu0 0.0
        %4474 = vmatpush1.msra.mxu0 0.0
        %4475 = vmatprep.subr.mxu0 0.0
        %4476 = vmatpush1.msra.mxu0 0.0
        %4477 = vmatprep.subr.mxu0 0.0
        %4478 = vmatpush1.msra.mxu0 0.0
        %4479 = vmatprep.subr.mxu0 0.0
        %4480 = vmatpush1.msra.mxu0 0.0
        %4481 = vmatprep.subr.mxu0 0.0
        %4482 = vmatpush1.msra.mxu0 0.0
        %4483 = vmatprep.subr.mxu0 0.0
        %4484 = vmatpush1.msra.mxu0 0.0
        %4485 = vmatprep.subr.mxu0 0.0
        %4486 = vmatpush1.msra.mxu0 0.0
        %4487 = vmatprep.subr.mxu0 0.0
        %4488 = vmatpush1.msra.mxu0 0.0
        %4489 = vmatprep.subr.mxu0 0.0
        %4490 = vmatpush1.msra.mxu0 0.0
        %4491 = vmatprep.subr.mxu0 0.0
        %4492 = vmatpush1.msra.mxu0 0.0
        %4493 = vmatprep.subr.mxu0 0.0
        %4494 = vmatpush1.msra.mxu0 0.0
        %4495 = vmatprep.subr.mxu0 %v3638
        %4496 = vmatpush1.msra.mxu0 %v3637
        %4497 = vmatprep.subr.mxu0 %v3574
        %4498 = vmatpush1.msra.mxu0 %v3573
        %4499 = vmatprep.subr.mxu0 %v3510
        %4500 = vmatpush1.msra.mxu0 %v3509
        %4501 = vmatprep.subr.mxu0 %v3446
        %4502 = vmatpush1.msra.mxu0 %v3445
        %4503 = vmatprep.subr.mxu0 0.0
        %4504 = vmatpush2.msra.mxu0 0.0
        %4505 = vmatprep.subr.mxu0 0.0
        %4506 = vmatpush2.msra.mxu0 0.0
        %4507 = vmatprep.subr.mxu0 0.0
        %4508 = vmatpush2.msra.mxu0 0.0
        %4509 = vmatprep.subr.mxu0 0.0
        %4510 = vmatpush2.msra.mxu0 0.0
        %4511 = vmatprep.subr.mxu0 0.0
        %4512 = vmatpush2.msra.mxu0 0.0
        %4513 = vmatprep.subr.mxu0 0.0
        %4514 = vmatpush2.msra.mxu0 0.0
        %4515 = vmatprep.subr.mxu0 0.0
        %4516 = vmatpush2.msra.mxu0 0.0
        %4517 = vmatprep.subr.mxu0 0.0
        %4518 = vmatpush2.msra.mxu0 0.0
        %4519 = vmatprep.subr.mxu0 0.0
        %4520 = vmatpush2.msra.mxu0 0.0
        %4521 = vmatprep.subr.mxu0 0.0
        %4522 = vmatpush2.msra.mxu0 0.0
        %4523 = vmatprep.subr.mxu0 0.0
        %4524 = vmatpush2.msra.mxu0 0.0
        %4525 = vmatprep.subr.mxu0 0.0
        %4526 = vmatpush2.msra.mxu0 0.0
        %4527 = vmatprep.subr.mxu0 0.0
        %4528 = vmatpush2.msra.mxu0 0.0
        %4529 = vmatprep.subr.mxu0 0.0
        %4530 = vmatpush2.msra.mxu0 0.0
        %4531 = vmatprep.subr.mxu0 0.0
        %4532 = vmatpush2.msra.mxu0 0.0
        %4533 = vmatprep.subr.mxu0 0.0
        %4534 = vmatpush2.msra.mxu0 0.0
        %4535 = vmatprep.mubr.f32.mxu0 0.0
        %4536 = vmatmul.mubr.f32.gmra.mxu0 %v3688
        %v4537 = vpop.f32.mrf.mxu0
        %v4538 = vadd.f32 %v3684, %v4537
        %v4539 = vpop.f32.mrf.mxu0
        %v4540 = vadd.f32 %v3684, %v4539
        %4541 = vdwg.mxu0
        %4542 = vmatprep.subr.mxu0 0.0
        %4543 = vmatpush1.msra.mxu0 0.0
        %4544 = vmatprep.subr.mxu0 0.0
        %4545 = vmatpush1.msra.mxu0 0.0
        %4546 = vmatprep.subr.mxu0 0.0
        %4547 = vmatpush1.msra.mxu0 0.0
        %4548 = vmatprep.subr.mxu0 0.0
        %4549 = vmatpush1.msra.mxu0 0.0
        %4550 = vmatprep.subr.mxu0 0.0
        %4551 = vmatpush1.msra.mxu0 0.0
        %4552 = vmatprep.subr.mxu0 0.0
        %4553 = vmatpush1.msra.mxu0 0.0
        %4554 = vmatprep.subr.mxu0 0.0
        %4555 = vmatpush1.msra.mxu0 0.0
        %4556 = vmatprep.subr.mxu0 0.0
        %4557 = vmatpush1.msra.mxu0 0.0
        %4558 = vmatprep.subr.mxu0 0.0
        %4559 = vmatpush1.msra.mxu0 0.0
        %4560 = vmatprep.subr.mxu0 0.0
        %4561 = vmatpush1.msra.mxu0 0.0
        %4562 = vmatprep.subr.mxu0 0.0
        %4563 = vmatpush1.msra.mxu0 0.0
        %4564 = vmatprep.subr.mxu0 0.0
        %4565 = vmatpush1.msra.mxu0 0.0
        %4566 = vmatprep.subr.mxu0 %v3640
        %4567 = vmatpush1.msra.mxu0 %v3639
        %4568 = vmatprep.subr.mxu0 %v3576
        %4569 = vmatpush1.msra.mxu0 %v3575
        %4570 = vmatprep.subr.mxu0 %v3512
        %4571 = vmatpush1.msra.mxu0 %v3511
        %4572 = vmatprep.subr.mxu0 %v3448
        %4573 = vmatpush1.msra.mxu0 %v3447
        %4574 = vmatprep.subr.mxu0 0.0
        %4575 = vmatpush2.msra.mxu0 0.0
        %4576 = vmatprep.subr.mxu0 0.0
        %4577 = vmatpush2.msra.mxu0 0.0
        %4578 = vmatprep.subr.mxu0 0.0
        %4579 = vmatpush2.msra.mxu0 0.0
        %4580 = vmatprep.subr.mxu0 0.0
        %4581 = vmatpush2.msra.mxu0 0.0
        %4582 = vmatprep.subr.mxu0 0.0
        %4583 = vmatpush2.msra.mxu0 0.0
        %4584 = vmatprep.subr.mxu0 0.0
        %4585 = vmatpush2.msra.mxu0 0.0
        %4586 = vmatprep.subr.mxu0 0.0
        %4587 = vmatpush2.msra.mxu0 0.0
        %4588 = vmatprep.subr.mxu0 0.0
        %4589 = vmatpush2.msra.mxu0 0.0
        %4590 = vmatprep.subr.mxu0 0.0
        %4591 = vmatpush2.msra.mxu0 0.0
        %4592 = vmatprep.subr.mxu0 0.0
        %4593 = vmatpush2.msra.mxu0 0.0
        %4594 = vmatprep.subr.mxu0 0.0
        %4595 = vmatpush2.msra.mxu0 0.0
        %4596 = vmatprep.subr.mxu0 0.0
        %4597 = vmatpush2.msra.mxu0 0.0
        %4598 = vmatprep.subr.mxu0 0.0
        %4599 = vmatpush2.msra.mxu0 0.0
        %4600 = vmatprep.subr.mxu0 0.0
        %4601 = vmatpush2.msra.mxu0 0.0
        %4602 = vmatprep.subr.mxu0 0.0
        %4603 = vmatpush2.msra.mxu0 0.0
        %4604 = vmatprep.subr.mxu0 0.0
        %4605 = vmatpush2.msra.mxu0 0.0
        %4606 = vmatprep.mubr.f32.mxu0 0.0
        %4607 = vmatmul.mubr.f32.gmra.mxu0 %v3688
        %v4608 = vpop.f32.mrf.mxu0
        %v4609 = vadd.f32 %v3684, %v4608
        %v4610 = vpop.f32.mrf.mxu0
        %v4611 = vadd.f32 %v3684, %v4610
        %4612 = vdwg.mxu0
        %4613 = vmatprep.subr.mxu0 0.0
        %4614 = vmatpush1.msra.mxu0 0.0
        %4615 = vmatprep.subr.mxu0 0.0
        %4616 = vmatpush1.msra.mxu0 0.0
        %4617 = vmatprep.subr.mxu0 0.0
        %4618 = vmatpush1.msra.mxu0 0.0
        %4619 = vmatprep.subr.mxu0 0.0
        %4620 = vmatpush1.msra.mxu0 0.0
        %4621 = vmatprep.subr.mxu0 0.0
        %4622 = vmatpush1.msra.mxu0 0.0
        %4623 = vmatprep.subr.mxu0 0.0
        %4624 = vmatpush1.msra.mxu0 0.0
        %4625 = vmatprep.subr.mxu0 0.0
        %4626 = vmatpush1.msra.mxu0 0.0
        %4627 = vmatprep.subr.mxu0 0.0
        %4628 = vmatpush1.msra.mxu0 0.0
        %4629 = vmatprep.subr.mxu0 0.0
        %4630 = vmatpush1.msra.mxu0 0.0
        %4631 = vmatprep.subr.mxu0 0.0
        %4632 = vmatpush1.msra.mxu0 0.0
        %4633 = vmatprep.subr.mxu0 0.0
        %4634 = vmatpush1.msra.mxu0 0.0
        %4635 = vmatprep.subr.mxu0 0.0
        %4636 = vmatpush1.msra.mxu0 0.0
        %4637 = vmatprep.subr.mxu0 %v3642
        %4638 = vmatpush1.msra.mxu0 %v3641
        %4639 = vmatprep.subr.mxu0 %v3578
        %4640 = vmatpush1.msra.mxu0 %v3577
        %4641 = vmatprep.subr.mxu0 %v3514
        %4642 = vmatpush1.msra.mxu0 %v3513
        %4643 = vmatprep.subr.mxu0 %v3450
        %4644 = vmatpush1.msra.mxu0 %v3449
        %4645 = vmatprep.subr.mxu0 0.0
        %4646 = vmatpush2.msra.mxu0 0.0
        %4647 = vmatprep.subr.mxu0 0.0
        %4648 = vmatpush2.msra.mxu0 0.0
        %4649 = vmatprep.subr.mxu0 0.0
        %4650 = vmatpush2.msra.mxu0 0.0
        %4651 = vmatprep.subr.mxu0 0.0
        %4652 = vmatpush2.msra.mxu0 0.0
        %4653 = vmatprep.subr.mxu0 0.0
        %4654 = vmatpush2.msra.mxu0 0.0
        %4655 = vmatprep.subr.mxu0 0.0
        %4656 = vmatpush2.msra.mxu0 0.0
        %4657 = vmatprep.subr.mxu0 0.0
        %4658 = vmatpush2.msra.mxu0 0.0
        %4659 = vmatprep.subr.mxu0 0.0
        %4660 = vmatpush2.msra.mxu0 0.0
        %4661 = vmatprep.subr.mxu0 0.0
        %4662 = vmatpush2.msra.mxu0 0.0
        %4663 = vmatprep.subr.mxu0 0.0
        %4664 = vmatpush2.msra.mxu0 0.0
        %4665 = vmatprep.subr.mxu0 0.0
        %4666 = vmatpush2.msra.mxu0 0.0
        %4667 = vmatprep.subr.mxu0 0.0
        %4668 = vmatpush2.msra.mxu0 0.0
        %4669 = vmatprep.subr.mxu0 0.0
        %4670 = vmatpush2.msra.mxu0 0.0
        %4671 = vmatprep.subr.mxu0 0.0
        %4672 = vmatpush2.msra.mxu0 0.0
        %4673 = vmatprep.subr.mxu0 0.0
        %4674 = vmatpush2.msra.mxu0 0.0
        %4675 = vmatprep.subr.mxu0 0.0
        %4676 = vmatpush2.msra.mxu0 0.0
        %4677 = vmatprep.mubr.f32.mxu0 0.0
        %4678 = vmatmul.mubr.f32.gmra.mxu0 %v3688
        %v4679 = vpop.f32.mrf.mxu0
        %v4680 = vadd.f32 %v3684, %v4679
        %v4681 = vpop.f32.mrf.mxu0
        %v4682 = vadd.f32 %v3684, %v4681
        %4683 = vdwg.mxu0
        %4684 = vmatprep.subr.mxu0 0.0
        %4685 = vmatpush1.msra.mxu0 0.0
        %4686 = vmatprep.subr.mxu0 0.0
        %4687 = vmatpush1.msra.mxu0 0.0
        %4688 = vmatprep.subr.mxu0 0.0
        %4689 = vmatpush1.msra.mxu0 0.0
        %4690 = vmatprep.subr.mxu0 0.0
        %4691 = vmatpush1.msra.mxu0 0.0
        %4692 = vmatprep.subr.mxu0 0.0
        %4693 = vmatpush1.msra.mxu0 0.0
        %4694 = vmatprep.subr.mxu0 0.0
        %4695 = vmatpush1.msra.mxu0 0.0
        %4696 = vmatprep.subr.mxu0 0.0
        %4697 = vmatpush1.msra.mxu0 0.0
        %4698 = vmatprep.subr.mxu0 0.0
        %4699 = vmatpush1.msra.mxu0 0.0
        %4700 = vmatprep.subr.mxu0 0.0
        %4701 = vmatpush1.msra.mxu0 0.0
        %4702 = vmatprep.subr.mxu0 0.0
        %4703 = vmatpush1.msra.mxu0 0.0
        %4704 = vmatprep.subr.mxu0 0.0
        %4705 = vmatpush1.msra.mxu0 0.0
        %4706 = vmatprep.subr.mxu0 0.0
        %4707 = vmatpush1.msra.mxu0 0.0
        %4708 = vmatprep.subr.mxu0 %v3644
        %4709 = vmatpush1.msra.mxu0 %v3643
        %4710 = vmatprep.subr.mxu0 %v3580
        %4711 = vmatpush1.msra.mxu0 %v3579
        %4712 = vmatprep.subr.mxu0 %v3516
        %4713 = vmatpush1.msra.mxu0 %v3515
        %4714 = vmatprep.subr.mxu0 %v3452
        %4715 = vmatpush1.msra.mxu0 %v3451
        %4716 = vmatprep.subr.mxu0 0.0
        %4717 = vmatpush2.msra.mxu0 0.0
        %4718 = vmatprep.subr.mxu0 0.0
        %4719 = vmatpush2.msra.mxu0 0.0
        %4720 = vmatprep.subr.mxu0 0.0
        %4721 = vmatpush2.msra.mxu0 0.0
        %4722 = vmatprep.subr.mxu0 0.0
        %4723 = vmatpush2.msra.mxu0 0.0
        %4724 = vmatprep.subr.mxu0 0.0
        %4725 = vmatpush2.msra.mxu0 0.0
        %4726 = vmatprep.subr.mxu0 0.0
        %4727 = vmatpush2.msra.mxu0 0.0
        %4728 = vmatprep.subr.mxu0 0.0
        %4729 = vmatpush2.msra.mxu0 0.0
        %4730 = vmatprep.subr.mxu0 0.0
        %4731 = vmatpush2.msra.mxu0 0.0
        %4732 = vmatprep.subr.mxu0 0.0
        %4733 = vmatpush2.msra.mxu0 0.0
        %4734 = vmatprep.subr.mxu0 0.0
        %4735 = vmatpush2.msra.mxu0 0.0
        %4736 = vmatprep.subr.mxu0 0.0
        %4737 = vmatpush2.msra.mxu0 0.0
        %4738 = vmatprep.subr.mxu0 0.0
        %4739 = vmatpush2.msra.mxu0 0.0
        %4740 = vmatprep.subr.mxu0 0.0
        %4741 = vmatpush2.msra.mxu0 0.0
        %4742 = vmatprep.subr.mxu0 0.0
        %4743 = vmatpush2.msra.mxu0 0.0
        %4744 = vmatprep.subr.mxu0 0.0
        %4745 = vmatpush2.msra.mxu0 0.0
        %4746 = vmatprep.subr.mxu0 0.0
        %4747 = vmatpush2.msra.mxu0 0.0
        %4748 = vmatprep.mubr.f32.mxu0 0.0
        %4749 = vmatmul.mubr.f32.gmra.mxu0 %v3688
        %v4750 = vpop.f32.mrf.mxu0
        %v4751 = vadd.f32 %v3684, %v4750
        %v4752 = vpop.f32.mrf.mxu0
        %v4753 = vadd.f32 %v3684, %v4752
        %4754 = vdwg.mxu0
        %4755 = vmatprep.subr.mxu0 0.0
        %4756 = vmatpush1.msra.mxu0 0.0
        %4757 = vmatprep.subr.mxu0 0.0
        %4758 = vmatpush1.msra.mxu0 0.0
        %4759 = vmatprep.subr.mxu0 0.0
        %4760 = vmatpush1.msra.mxu0 0.0
        %4761 = vmatprep.subr.mxu0 0.0
        %4762 = vmatpush1.msra.mxu0 0.0
        %4763 = vmatprep.subr.mxu0 0.0
        %4764 = vmatpush1.msra.mxu0 0.0
        %4765 = vmatprep.subr.mxu0 0.0
        %4766 = vmatpush1.msra.mxu0 0.0
        %4767 = vmatprep.subr.mxu0 0.0
        %4768 = vmatpush1.msra.mxu0 0.0
        %4769 = vmatprep.subr.mxu0 0.0
        %4770 = vmatpush1.msra.mxu0 0.0
        %4771 = vmatprep.subr.mxu0 0.0
        %4772 = vmatpush1.msra.mxu0 0.0
        %4773 = vmatprep.subr.mxu0 0.0
        %4774 = vmatpush1.msra.mxu0 0.0
        %4775 = vmatprep.subr.mxu0 0.0
        %4776 = vmatpush1.msra.mxu0 0.0
        %4777 = vmatprep.subr.mxu0 0.0
        %4778 = vmatpush1.msra.mxu0 0.0
        %4779 = vmatprep.subr.mxu0 %v3646
        %4780 = vmatpush1.msra.mxu0 %v3645
        %4781 = vmatprep.subr.mxu0 %v3582
        %4782 = vmatpush1.msra.mxu0 %v3581
        %4783 = vmatprep.subr.mxu0 %v3518
        %4784 = vmatpush1.msra.mxu0 %v3517
        %4785 = vmatprep.subr.mxu0 %v3454
        %4786 = vmatpush1.msra.mxu0 %v3453
        %4787 = vmatprep.subr.mxu0 0.0
        %4788 = vmatpush2.msra.mxu0 0.0
        %4789 = vmatprep.subr.mxu0 0.0
        %4790 = vmatpush2.msra.mxu0 0.0
        %4791 = vmatprep.subr.mxu0 0.0
        %4792 = vmatpush2.msra.mxu0 0.0
        %4793 = vmatprep.subr.mxu0 0.0
        %4794 = vmatpush2.msra.mxu0 0.0
        %4795 = vmatprep.subr.mxu0 0.0
        %4796 = vmatpush2.msra.mxu0 0.0
        %4797 = vmatprep.subr.mxu0 0.0
        %4798 = vmatpush2.msra.mxu0 0.0
        %4799 = vmatprep.subr.mxu0 0.0
        %4800 = vmatpush2.msra.mxu0 0.0
        %4801 = vmatprep.subr.mxu0 0.0
        %4802 = vmatpush2.msra.mxu0 0.0
        %4803 = vmatprep.subr.mxu0 0.0
        %4804 = vmatpush2.msra.mxu0 0.0
        %4805 = vmatprep.subr.mxu0 0.0
        %4806 = vmatpush2.msra.mxu0 0.0
        %4807 = vmatprep.subr.mxu0 0.0
        %4808 = vmatpush2.msra.mxu0 0.0
        %4809 = vmatprep.subr.mxu0 0.0
        %4810 = vmatpush2.msra.mxu0 0.0
        %4811 = vmatprep.subr.mxu0 0.0
        %4812 = vmatpush2.msra.mxu0 0.0
        %4813 = vmatprep.subr.mxu0 0.0
        %4814 = vmatpush2.msra.mxu0 0.0
        %4815 = vmatprep.subr.mxu0 0.0
        %4816 = vmatpush2.msra.mxu0 0.0
        %4817 = vmatprep.subr.mxu0 0.0
        %4818 = vmatpush2.msra.mxu0 0.0
        %4819 = vmatprep.mubr.f32.mxu0 0.0
        %4820 = vmatmul.mubr.f32.gmra.mxu0 %v3688
        %v4821 = vpop.f32.mrf.mxu0
        %v4822 = vadd.f32 %v3684, %v4821
        %v4823 = vpop.f32.mrf.mxu0
        %v4824 = vadd.f32 %v3684, %v4823
        %4825 = vdwg.mxu0
        %4826 = vmatprep.subr.mxu0 0.0
        %4827 = vmatpush1.msra.mxu0 0.0
        %4828 = vmatprep.subr.mxu0 0.0
        %4829 = vmatpush1.msra.mxu0 0.0
        %4830 = vmatprep.subr.mxu0 0.0
        %4831 = vmatpush1.msra.mxu0 0.0
        %4832 = vmatprep.subr.mxu0 0.0
        %4833 = vmatpush1.msra.mxu0 0.0
        %4834 = vmatprep.subr.mxu0 0.0
        %4835 = vmatpush1.msra.mxu0 0.0
        %4836 = vmatprep.subr.mxu0 0.0
        %4837 = vmatpush1.msra.mxu0 0.0
        %4838 = vmatprep.subr.mxu0 0.0
        %4839 = vmatpush1.msra.mxu0 0.0
        %4840 = vmatprep.subr.mxu0 0.0
        %4841 = vmatpush1.msra.mxu0 0.0
        %4842 = vmatprep.subr.mxu0 0.0
        %4843 = vmatpush1.msra.mxu0 0.0
        %4844 = vmatprep.subr.mxu0 0.0
        %4845 = vmatpush1.msra.mxu0 0.0
        %4846 = vmatprep.subr.mxu0 0.0
        %4847 = vmatpush1.msra.mxu0 0.0
        %4848 = vmatprep.subr.mxu0 0.0
        %4849 = vmatpush1.msra.mxu0 0.0
        %4850 = vmatprep.subr.mxu0 %v3648
        %4851 = vmatpush1.msra.mxu0 %v3647
        %4852 = vmatprep.subr.mxu0 %v3584
        %4853 = vmatpush1.msra.mxu0 %v3583
        %4854 = vmatprep.subr.mxu0 %v3520
        %4855 = vmatpush1.msra.mxu0 %v3519
        %4856 = vmatprep.subr.mxu0 %v3456
        %4857 = vmatpush1.msra.mxu0 %v3455
        %4858 = vmatprep.subr.mxu0 0.0
        %4859 = vmatpush2.msra.mxu0 0.0
        %4860 = vmatprep.subr.mxu0 0.0
        %4861 = vmatpush2.msra.mxu0 0.0
        %4862 = vmatprep.subr.mxu0 0.0
        %4863 = vmatpush2.msra.mxu0 0.0
        %4864 = vmatprep.subr.mxu0 0.0
        %4865 = vmatpush2.msra.mxu0 0.0
        %4866 = vmatprep.subr.mxu0 0.0
        %4867 = vmatpush2.msra.mxu0 0.0
        %4868 = vmatprep.subr.mxu0 0.0
        %4869 = vmatpush2.msra.mxu0 0.0
        %4870 = vmatprep.subr.mxu0 0.0
        %4871 = vmatpush2.msra.mxu0 0.0
        %4872 = vmatprep.subr.mxu0 0.0
        %4873 = vmatpush2.msra.mxu0 0.0
        %4874 = vmatprep.subr.mxu0 0.0
        %4875 = vmatpush2.msra.mxu0 0.0
        %4876 = vmatprep.subr.mxu0 0.0
        %4877 = vmatpush2.msra.mxu0 0.0
        %4878 = vmatprep.subr.mxu0 0.0
        %4879 = vmatpush2.msra.mxu0 0.0
        %4880 = vmatprep.subr.mxu0 0.0
        %4881 = vmatpush2.msra.mxu0 0.0
        %4882 = vmatprep.subr.mxu0 0.0
        %4883 = vmatpush2.msra.mxu0 0.0
        %4884 = vmatprep.subr.mxu0 0.0
        %4885 = vmatpush2.msra.mxu0 0.0
        %4886 = vmatprep.subr.mxu0 0.0
        %4887 = vmatpush2.msra.mxu0 0.0
        %4888 = vmatprep.subr.mxu0 0.0
        %4889 = vmatpush2.msra.mxu0 0.0
        %4890 = vmatprep.mubr.f32.mxu0 0.0
        %4891 = vmatmul.mubr.f32.gmra.mxu0 %v3688
        %v4892 = vpop.f32.mrf.mxu0
        %v4893 = vadd.f32 %v3684, %v4892
        %v4894 = vpop.f32.mrf.mxu0
        %v4895 = vadd.f32 %v3684, %v4894
        %4896 = vdwg.mxu0
        %4897 = vmatprep.subr.mxu0 0.0
        %4898 = vmatpush1.msra.mxu0 0.0
        %4899 = vmatprep.subr.mxu0 0.0
        %4900 = vmatpush1.msra.mxu0 0.0
        %4901 = vmatprep.subr.mxu0 0.0
        %4902 = vmatpush1.msra.mxu0 0.0
        %4903 = vmatprep.subr.mxu0 0.0
        %4904 = vmatpush1.msra.mxu0 0.0
        %4905 = vmatprep.subr.mxu0 0.0
        %4906 = vmatpush1.msra.mxu0 0.0
        %4907 = vmatprep.subr.mxu0 0.0
        %4908 = vmatpush1.msra.mxu0 0.0
        %4909 = vmatprep.subr.mxu0 0.0
        %4910 = vmatpush1.msra.mxu0 0.0
        %4911 = vmatprep.subr.mxu0 0.0
        %4912 = vmatpush1.msra.mxu0 0.0
        %4913 = vmatprep.subr.mxu0 0.0
        %4914 = vmatpush1.msra.mxu0 0.0
        %4915 = vmatprep.subr.mxu0 0.0
        %4916 = vmatpush1.msra.mxu0 0.0
        %4917 = vmatprep.subr.mxu0 0.0
        %4918 = vmatpush1.msra.mxu0 0.0
        %4919 = vmatprep.subr.mxu0 0.0
        %4920 = vmatpush1.msra.mxu0 0.0
        %4921 = vmatprep.subr.mxu0 %v3650
        %4922 = vmatpush1.msra.mxu0 %v3649
        %4923 = vmatprep.subr.mxu0 %v3586
        %4924 = vmatpush1.msra.mxu0 %v3585
        %4925 = vmatprep.subr.mxu0 %v3522
        %4926 = vmatpush1.msra.mxu0 %v3521
        %4927 = vmatprep.subr.mxu0 %v3458
        %4928 = vmatpush1.msra.mxu0 %v3457
        %4929 = vmatprep.subr.mxu0 0.0
        %4930 = vmatpush2.msra.mxu0 0.0
        %4931 = vmatprep.subr.mxu0 0.0
        %4932 = vmatpush2.msra.mxu0 0.0
        %4933 = vmatprep.subr.mxu0 0.0
        %4934 = vmatpush2.msra.mxu0 0.0
        %4935 = vmatprep.subr.mxu0 0.0
        %4936 = vmatpush2.msra.mxu0 0.0
        %4937 = vmatprep.subr.mxu0 0.0
        %4938 = vmatpush2.msra.mxu0 0.0
        %4939 = vmatprep.subr.mxu0 0.0
        %4940 = vmatpush2.msra.mxu0 0.0
        %4941 = vmatprep.subr.mxu0 0.0
        %4942 = vmatpush2.msra.mxu0 0.0
        %4943 = vmatprep.subr.mxu0 0.0
        %4944 = vmatpush2.msra.mxu0 0.0
        %4945 = vmatprep.subr.mxu0 0.0
        %4946 = vmatpush2.msra.mxu0 0.0
        %4947 = vmatprep.subr.mxu0 0.0
        %4948 = vmatpush2.msra.mxu0 0.0
        %4949 = vmatprep.subr.mxu0 0.0
        %4950 = vmatpush2.msra.mxu0 0.0
        %4951 = vmatprep.subr.mxu0 0.0
        %4952 = vmatpush2.msra.mxu0 0.0
        %4953 = vmatprep.subr.mxu0 0.0
        %4954 = vmatpush2.msra.mxu0 0.0
        %4955 = vmatprep.subr.mxu0 0.0
        %4956 = vmatpush2.msra.mxu0 0.0
        %4957 = vmatprep.subr.mxu0 0.0
        %4958 = vmatpush2.msra.mxu0 0.0
        %4959 = vmatprep.subr.mxu0 0.0
        %4960 = vmatpush2.msra.mxu0 0.0
        %4961 = vmatprep.mubr.f32.mxu0 0.0
        %4962 = vmatmul.mubr.f32.gmra.mxu0 %v3688
        %v4963 = vpop.f32.mrf.mxu0
        %v4964 = vadd.f32 %v3684, %v4963
        %v4965 = vpop.f32.mrf.mxu0
        %v4966 = vadd.f32 %v3684, %v4965
        %4967 = vdwg.mxu0
        %4968 = vmatprep.subr.mxu0 0.0
        %4969 = vmatpush1.msra.mxu0 0.0
        %4970 = vmatprep.subr.mxu0 0.0
        %4971 = vmatpush1.msra.mxu0 0.0
        %4972 = vmatprep.subr.mxu0 0.0
        %4973 = vmatpush1.msra.mxu0 0.0
        %4974 = vmatprep.subr.mxu0 0.0
        %4975 = vmatpush1.msra.mxu0 0.0
        %4976 = vmatprep.subr.mxu0 0.0
        %4977 = vmatpush1.msra.mxu0 0.0
        %4978 = vmatprep.subr.mxu0 0.0
        %4979 = vmatpush1.msra.mxu0 0.0
        %4980 = vmatprep.subr.mxu0 0.0
        %4981 = vmatpush1.msra.mxu0 0.0
        %4982 = vmatprep.subr.mxu0 0.0
        %4983 = vmatpush1.msra.mxu0 0.0
        %4984 = vmatprep.subr.mxu0 0.0
        %4985 = vmatpush1.msra.mxu0 0.0
        %4986 = vmatprep.subr.mxu0 0.0
        %4987 = vmatpush1.msra.mxu0 0.0
        %4988 = vmatprep.subr.mxu0 0.0
        %4989 = vmatpush1.msra.mxu0 0.0
        %4990 = vmatprep.subr.mxu0 0.0
        %4991 = vmatpush1.msra.mxu0 0.0
        %4992 = vmatprep.subr.mxu0 %v3652
        %4993 = vmatpush1.msra.mxu0 %v3651
        %4994 = vmatprep.subr.mxu0 %v3588
        %4995 = vmatpush1.msra.mxu0 %v3587
        %4996 = vmatprep.subr.mxu0 %v3524
        %4997 = vmatpush1.msra.mxu0 %v3523
        %4998 = vmatprep.subr.mxu0 %v3460
        %4999 = vmatpush1.msra.mxu0 %v3459
        %5000 = vmatprep.subr.mxu0 0.0
        %5001 = vmatpush2.msra.mxu0 0.0
        %5002 = vmatprep.subr.mxu0 0.0
        %5003 = vmatpush2.msra.mxu0 0.0
        %5004 = vmatprep.subr.mxu0 0.0
        %5005 = vmatpush2.msra.mxu0 0.0
        %5006 = vmatprep.subr.mxu0 0.0
        %5007 = vmatpush2.msra.mxu0 0.0
        %5008 = vmatprep.subr.mxu0 0.0
        %5009 = vmatpush2.msra.mxu0 0.0
        %5010 = vmatprep.subr.mxu0 0.0
        %5011 = vmatpush2.msra.mxu0 0.0
        %5012 = vmatprep.subr.mxu0 0.0
        %5013 = vmatpush2.msra.mxu0 0.0
        %5014 = vmatprep.subr.mxu0 0.0
        %5015 = vmatpush2.msra.mxu0 0.0
        %5016 = vmatprep.subr.mxu0 0.0
        %5017 = vmatpush2.msra.mxu0 0.0
        %5018 = vmatprep.subr.mxu0 0.0
        %5019 = vmatpush2.msra.mxu0 0.0
        %5020 = vmatprep.subr.mxu0 0.0
        %5021 = vmatpush2.msra.mxu0 0.0
        %5022 = vmatprep.subr.mxu0 0.0
        %5023 = vmatpush2.msra.mxu0 0.0
        %5024 = vmatprep.subr.mxu0 0.0
        %5025 = vmatpush2.msra.mxu0 0.0
        %5026 = vmatprep.subr.mxu0 0.0
        %5027 = vmatpush2.msra.mxu0 0.0
        %5028 = vmatprep.subr.mxu0 0.0
        %5029 = vmatpush2.msra.mxu0 0.0
        %5030 = vmatprep.subr.mxu0 0.0
        %5031 = vmatpush2.msra.mxu0 0.0
        %5032 = vmatprep.mubr.f32.mxu0 0.0
        %5033 = vmatmul.mubr.f32.gmra.mxu0 %v3688
        %v5034 = vpop.f32.mrf.mxu0
        %v5035 = vadd.f32 %v3684, %v5034
        %v5036 = vpop.f32.mrf.mxu0
        %v5037 = vadd.f32 %v3684, %v5036
        %5038 = vdwg.mxu0
        %5039 = vmatprep.subr.mxu0 0.0
        %5040 = vmatpush1.msra.mxu0 0.0
        %5041 = vmatprep.subr.mxu0 0.0
        %5042 = vmatpush1.msra.mxu0 0.0
        %5043 = vmatprep.subr.mxu0 0.0
        %5044 = vmatpush1.msra.mxu0 0.0
        %5045 = vmatprep.subr.mxu0 0.0
        %5046 = vmatpush1.msra.mxu0 0.0
        %5047 = vmatprep.subr.mxu0 0.0
        %5048 = vmatpush1.msra.mxu0 0.0
        %5049 = vmatprep.subr.mxu0 0.0
        %5050 = vmatpush1.msra.mxu0 0.0
        %5051 = vmatprep.subr.mxu0 0.0
        %5052 = vmatpush1.msra.mxu0 0.0
        %5053 = vmatprep.subr.mxu0 0.0
        %5054 = vmatpush1.msra.mxu0 0.0
        %5055 = vmatprep.subr.mxu0 0.0
        %5056 = vmatpush1.msra.mxu0 0.0
        %5057 = vmatprep.subr.mxu0 0.0
        %5058 = vmatpush1.msra.mxu0 0.0
        %5059 = vmatprep.subr.mxu0 0.0
        %5060 = vmatpush1.msra.mxu0 0.0
        %5061 = vmatprep.subr.mxu0 0.0
        %5062 = vmatpush1.msra.mxu0 0.0
        %5063 = vmatprep.subr.mxu0 %v3654
        %5064 = vmatpush1.msra.mxu0 %v3653
        %5065 = vmatprep.subr.mxu0 %v3590
        %5066 = vmatpush1.msra.mxu0 %v3589
        %5067 = vmatprep.subr.mxu0 %v3526
        %5068 = vmatpush1.msra.mxu0 %v3525
        %5069 = vmatprep.subr.mxu0 %v3462
        %5070 = vmatpush1.msra.mxu0 %v3461
        %5071 = vmatprep.subr.mxu0 0.0
        %5072 = vmatpush2.msra.mxu0 0.0
        %5073 = vmatprep.subr.mxu0 0.0
        %5074 = vmatpush2.msra.mxu0 0.0
        %5075 = vmatprep.subr.mxu0 0.0
        %5076 = vmatpush2.msra.mxu0 0.0
        %5077 = vmatprep.subr.mxu0 0.0
        %5078 = vmatpush2.msra.mxu0 0.0
        %5079 = vmatprep.subr.mxu0 0.0
        %5080 = vmatpush2.msra.mxu0 0.0
        %5081 = vmatprep.subr.mxu0 0.0
        %5082 = vmatpush2.msra.mxu0 0.0
        %5083 = vmatprep.subr.mxu0 0.0
        %5084 = vmatpush2.msra.mxu0 0.0
        %5085 = vmatprep.subr.mxu0 0.0
        %5086 = vmatpush2.msra.mxu0 0.0
        %5087 = vmatprep.subr.mxu0 0.0
        %5088 = vmatpush2.msra.mxu0 0.0
        %5089 = vmatprep.subr.mxu0 0.0
        %5090 = vmatpush2.msra.mxu0 0.0
        %5091 = vmatprep.subr.mxu0 0.0
        %5092 = vmatpush2.msra.mxu0 0.0
        %5093 = vmatprep.subr.mxu0 0.0
        %5094 = vmatpush2.msra.mxu0 0.0
        %5095 = vmatprep.subr.mxu0 0.0
        %5096 = vmatpush2.msra.mxu0 0.0
        %5097 = vmatprep.subr.mxu0 0.0
        %5098 = vmatpush2.msra.mxu0 0.0
        %5099 = vmatprep.subr.mxu0 0.0
        %5100 = vmatpush2.msra.mxu0 0.0
        %5101 = vmatprep.subr.mxu0 0.0
        %5102 = vmatpush2.msra.mxu0 0.0
        %5103 = vmatprep.mubr.f32.mxu0 0.0
        %5104 = vmatmul.mubr.f32.gmra.mxu0 %v3688
        %v5105 = vpop.f32.mrf.mxu0
        %v5106 = vadd.f32 %v3684, %v5105
        %v5107 = vpop.f32.mrf.mxu0
        %v5108 = vadd.f32 %v3684, %v5107
        %5109 = vdwg.mxu0
        %5110 = vmatprep.subr.mxu0 0.0
        %5111 = vmatpush1.msra.mxu0 0.0
        %5112 = vmatprep.subr.mxu0 0.0
        %5113 = vmatpush1.msra.mxu0 0.0
        %5114 = vmatprep.subr.mxu0 0.0
        %5115 = vmatpush1.msra.mxu0 0.0
        %5116 = vmatprep.subr.mxu0 0.0
        %5117 = vmatpush1.msra.mxu0 0.0
        %5118 = vmatprep.subr.mxu0 0.0
        %5119 = vmatpush1.msra.mxu0 0.0
        %5120 = vmatprep.subr.mxu0 0.0
        %5121 = vmatpush1.msra.mxu0 0.0
        %5122 = vmatprep.subr.mxu0 0.0
        %5123 = vmatpush1.msra.mxu0 0.0
        %5124 = vmatprep.subr.mxu0 0.0
        %5125 = vmatpush1.msra.mxu0 0.0
        %5126 = vmatprep.subr.mxu0 0.0
        %5127 = vmatpush1.msra.mxu0 0.0
        %5128 = vmatprep.subr.mxu0 0.0
        %5129 = vmatpush1.msra.mxu0 0.0
        %5130 = vmatprep.subr.mxu0 0.0
        %5131 = vmatpush1.msra.mxu0 0.0
        %5132 = vmatprep.subr.mxu0 0.0
        %5133 = vmatpush1.msra.mxu0 0.0
        %5134 = vmatprep.subr.mxu0 %v3656
        %5135 = vmatpush1.msra.mxu0 %v3655
        %5136 = vmatprep.subr.mxu0 %v3592
        %5137 = vmatpush1.msra.mxu0 %v3591
        %5138 = vmatprep.subr.mxu0 %v3528
        %5139 = vmatpush1.msra.mxu0 %v3527
        %5140 = vmatprep.subr.mxu0 %v3464
        %5141 = vmatpush1.msra.mxu0 %v3463
        %5142 = vmatprep.subr.mxu0 0.0
        %5143 = vmatpush2.msra.mxu0 0.0
        %5144 = vmatprep.subr.mxu0 0.0
        %5145 = vmatpush2.msra.mxu0 0.0
        %5146 = vmatprep.subr.mxu0 0.0
        %5147 = vmatpush2.msra.mxu0 0.0
        %5148 = vmatprep.subr.mxu0 0.0
        %5149 = vmatpush2.msra.mxu0 0.0
        %5150 = vmatprep.subr.mxu0 0.0
        %5151 = vmatpush2.msra.mxu0 0.0
        %5152 = vmatprep.subr.mxu0 0.0
        %5153 = vmatpush2.msra.mxu0 0.0
        %5154 = vmatprep.subr.mxu0 0.0
        %5155 = vmatpush2.msra.mxu0 0.0
        %5156 = vmatprep.subr.mxu0 0.0
        %5157 = vmatpush2.msra.mxu0 0.0
        %5158 = vmatprep.subr.mxu0 0.0
        %5159 = vmatpush2.msra.mxu0 0.0
        %5160 = vmatprep.subr.mxu0 0.0
        %5161 = vmatpush2.msra.mxu0 0.0
        %5162 = vmatprep.subr.mxu0 0.0
        %5163 = vmatpush2.msra.mxu0 0.0
        %5164 = vmatprep.subr.mxu0 0.0
        %5165 = vmatpush2.msra.mxu0 0.0
        %5166 = vmatprep.subr.mxu0 0.0
        %5167 = vmatpush2.msra.mxu0 0.0
        %5168 = vmatprep.subr.mxu0 0.0
        %5169 = vmatpush2.msra.mxu0 0.0
        %5170 = vmatprep.subr.mxu0 0.0
        %5171 = vmatpush2.msra.mxu0 0.0
        %5172 = vmatprep.subr.mxu0 0.0
        %5173 = vmatpush2.msra.mxu0 0.0
        %5174 = vmatprep.mubr.f32.mxu0 0.0
        %5175 = vmatmul.mubr.f32.gmra.mxu0 %v3688
        %v5176 = vpop.f32.mrf.mxu0
        %v5177 = vadd.f32 %v3684, %v5176
        %v5178 = vpop.f32.mrf.mxu0
        %v5179 = vadd.f32 %v3684, %v5178
        %5180 = vdwg.mxu0
        %5181 = vmatprep.subr.mxu0 0.0
        %5182 = vmatpush1.msra.mxu0 0.0
        %5183 = vmatprep.subr.mxu0 0.0
        %5184 = vmatpush1.msra.mxu0 0.0
        %5185 = vmatprep.subr.mxu0 0.0
        %5186 = vmatpush1.msra.mxu0 0.0
        %5187 = vmatprep.subr.mxu0 0.0
        %5188 = vmatpush1.msra.mxu0 0.0
        %5189 = vmatprep.subr.mxu0 0.0
        %5190 = vmatpush1.msra.mxu0 0.0
        %5191 = vmatprep.subr.mxu0 0.0
        %5192 = vmatpush1.msra.mxu0 0.0
        %5193 = vmatprep.subr.mxu0 0.0
        %5194 = vmatpush1.msra.mxu0 0.0
        %5195 = vmatprep.subr.mxu0 0.0
        %5196 = vmatpush1.msra.mxu0 0.0
        %5197 = vmatprep.subr.mxu0 0.0
        %5198 = vmatpush1.msra.mxu0 0.0
        %5199 = vmatprep.subr.mxu0 0.0
        %5200 = vmatpush1.msra.mxu0 0.0
        %5201 = vmatprep.subr.mxu0 0.0
        %5202 = vmatpush1.msra.mxu0 0.0
        %5203 = vmatprep.subr.mxu0 0.0
        %5204 = vmatpush1.msra.mxu0 0.0
        %5205 = vmatprep.subr.mxu0 %v3658
        %5206 = vmatpush1.msra.mxu0 %v3657
        %5207 = vmatprep.subr.mxu0 %v3594
        %5208 = vmatpush1.msra.mxu0 %v3593
        %5209 = vmatprep.subr.mxu0 %v3530
        %5210 = vmatpush1.msra.mxu0 %v3529
        %5211 = vmatprep.subr.mxu0 %v3466
        %5212 = vmatpush1.msra.mxu0 %v3465
        %5213 = vmatprep.subr.mxu0 0.0
        %5214 = vmatpush2.msra.mxu0 0.0
        %5215 = vmatprep.subr.mxu0 0.0
        %5216 = vmatpush2.msra.mxu0 0.0
        %5217 = vmatprep.subr.mxu0 0.0
        %5218 = vmatpush2.msra.mxu0 0.0
        %5219 = vmatprep.subr.mxu0 0.0
        %5220 = vmatpush2.msra.mxu0 0.0
        %5221 = vmatprep.subr.mxu0 0.0
        %5222 = vmatpush2.msra.mxu0 0.0
        %5223 = vmatprep.subr.mxu0 0.0
        %5224 = vmatpush2.msra.mxu0 0.0
        %5225 = vmatprep.subr.mxu0 0.0
        %5226 = vmatpush2.msra.mxu0 0.0
        %5227 = vmatprep.subr.mxu0 0.0
        %5228 = vmatpush2.msra.mxu0 0.0
        %5229 = vmatprep.subr.mxu0 0.0
        %5230 = vmatpush2.msra.mxu0 0.0
        %5231 = vmatprep.subr.mxu0 0.0
        %5232 = vmatpush2.msra.mxu0 0.0
        %5233 = vmatprep.subr.mxu0 0.0
        %5234 = vmatpush2.msra.mxu0 0.0
        %5235 = vmatprep.subr.mxu0 0.0
        %5236 = vmatpush2.msra.mxu0 0.0
        %5237 = vmatprep.subr.mxu0 0.0
        %5238 = vmatpush2.msra.mxu0 0.0
        %5239 = vmatprep.subr.mxu0 0.0
        %5240 = vmatpush2.msra.mxu0 0.0
        %5241 = vmatprep.subr.mxu0 0.0
        %5242 = vmatpush2.msra.mxu0 0.0
        %5243 = vmatprep.subr.mxu0 0.0
        %5244 = vmatpush2.msra.mxu0 0.0
        %5245 = vmatprep.mubr.f32.mxu0 0.0
        %5246 = vmatmul.mubr.f32.gmra.mxu0 %v3688
        %v5247 = vpop.f32.mrf.mxu0
        %v5248 = vadd.f32 %v3684, %v5247
        %v5249 = vpop.f32.mrf.mxu0
        %v5250 = vadd.f32 %v3684, %v5249
        %5251 = vdwg.mxu0
        %5252 = vmatprep.subr.mxu0 0.0
        %5253 = vmatpush1.msra.mxu0 0.0
        %5254 = vmatprep.subr.mxu0 0.0
        %5255 = vmatpush1.msra.mxu0 0.0
        %5256 = vmatprep.subr.mxu0 0.0
        %5257 = vmatpush1.msra.mxu0 0.0
        %5258 = vmatprep.subr.mxu0 0.0
        %5259 = vmatpush1.msra.mxu0 0.0
        %5260 = vmatprep.subr.mxu0 0.0
        %5261 = vmatpush1.msra.mxu0 0.0
        %5262 = vmatprep.subr.mxu0 0.0
        %5263 = vmatpush1.msra.mxu0 0.0
        %5264 = vmatprep.subr.mxu0 0.0
        %5265 = vmatpush1.msra.mxu0 0.0
        %5266 = vmatprep.subr.mxu0 0.0
        %5267 = vmatpush1.msra.mxu0 0.0
        %5268 = vmatprep.subr.mxu0 0.0
        %5269 = vmatpush1.msra.mxu0 0.0
        %5270 = vmatprep.subr.mxu0 0.0
        %5271 = vmatpush1.msra.mxu0 0.0
        %5272 = vmatprep.subr.mxu0 0.0
        %5273 = vmatpush1.msra.mxu0 0.0
        %5274 = vmatprep.subr.mxu0 0.0
        %5275 = vmatpush1.msra.mxu0 0.0
        %5276 = vmatprep.subr.mxu0 %v3660
        %5277 = vmatpush1.msra.mxu0 %v3659
        %5278 = vmatprep.subr.mxu0 %v3596
        %5279 = vmatpush1.msra.mxu0 %v3595
        %5280 = vmatprep.subr.mxu0 %v3532
        %5281 = vmatpush1.msra.mxu0 %v3531
        %5282 = vmatprep.subr.mxu0 %v3468
        %5283 = vmatpush1.msra.mxu0 %v3467
        %5284 = vmatprep.subr.mxu0 0.0
        %5285 = vmatpush2.msra.mxu0 0.0
        %5286 = vmatprep.subr.mxu0 0.0
        %5287 = vmatpush2.msra.mxu0 0.0
        %5288 = vmatprep.subr.mxu0 0.0
        %5289 = vmatpush2.msra.mxu0 0.0
        %5290 = vmatprep.subr.mxu0 0.0
        %5291 = vmatpush2.msra.mxu0 0.0
        %5292 = vmatprep.subr.mxu0 0.0
        %5293 = vmatpush2.msra.mxu0 0.0
        %5294 = vmatprep.subr.mxu0 0.0
        %5295 = vmatpush2.msra.mxu0 0.0
        %5296 = vmatprep.subr.mxu0 0.0
        %5297 = vmatpush2.msra.mxu0 0.0
        %5298 = vmatprep.subr.mxu0 0.0
        %5299 = vmatpush2.msra.mxu0 0.0
        %5300 = vmatprep.subr.mxu0 0.0
        %5301 = vmatpush2.msra.mxu0 0.0
        %5302 = vmatprep.subr.mxu0 0.0
        %5303 = vmatpush2.msra.mxu0 0.0
        %5304 = vmatprep.subr.mxu0 0.0
        %5305 = vmatpush2.msra.mxu0 0.0
        %5306 = vmatprep.subr.mxu0 0.0
        %5307 = vmatpush2.msra.mxu0 0.0
        %5308 = vmatprep.subr.mxu0 0.0
        %5309 = vmatpush2.msra.mxu0 0.0
        %5310 = vmatprep.subr.mxu0 0.0
        %5311 = vmatpush2.msra.mxu0 0.0
        %5312 = vmatprep.subr.mxu0 0.0
        %5313 = vmatpush2.msra.mxu0 0.0
        %5314 = vmatprep.subr.mxu0 0.0
        %5315 = vmatpush2.msra.mxu0 0.0
        %5316 = vmatprep.mubr.f32.mxu0 0.0
        %5317 = vmatmul.mubr.f32.gmra.mxu0 %v3688
        %v5318 = vpop.f32.mrf.mxu0
        %v5319 = vadd.f32 %v3684, %v5318
        %v5320 = vpop.f32.mrf.mxu0
        %v5321 = vadd.f32 %v3684, %v5320
        %5322 = vdwg.mxu0
        %5323 = vmatprep.subr.mxu0 0.0
        %5324 = vmatpush1.msra.mxu0 0.0
        %5325 = vmatprep.subr.mxu0 0.0
        %5326 = vmatpush1.msra.mxu0 0.0
        %5327 = vmatprep.subr.mxu0 0.0
        %5328 = vmatpush1.msra.mxu0 0.0
        %5329 = vmatprep.subr.mxu0 0.0
        %5330 = vmatpush1.msra.mxu0 0.0
        %5331 = vmatprep.subr.mxu0 0.0
        %5332 = vmatpush1.msra.mxu0 0.0
        %5333 = vmatprep.subr.mxu0 0.0
        %5334 = vmatpush1.msra.mxu0 0.0
        %5335 = vmatprep.subr.mxu0 0.0
        %5336 = vmatpush1.msra.mxu0 0.0
        %5337 = vmatprep.subr.mxu0 0.0
        %5338 = vmatpush1.msra.mxu0 0.0
        %5339 = vmatprep.subr.mxu0 0.0
        %5340 = vmatpush1.msra.mxu0 0.0
        %5341 = vmatprep.subr.mxu0 0.0
        %5342 = vmatpush1.msra.mxu0 0.0
        %5343 = vmatprep.subr.mxu0 0.0
        %5344 = vmatpush1.msra.mxu0 0.0
        %5345 = vmatprep.subr.mxu0 0.0
        %5346 = vmatpush1.msra.mxu0 0.0
        %5347 = vmatprep.subr.mxu0 %v3662
        %5348 = vmatpush1.msra.mxu0 %v3661
        %5349 = vmatprep.subr.mxu0 %v3598
        %5350 = vmatpush1.msra.mxu0 %v3597
        %5351 = vmatprep.subr.mxu0 %v3534
        %5352 = vmatpush1.msra.mxu0 %v3533
        %5353 = vmatprep.subr.mxu0 %v3470
        %5354 = vmatpush1.msra.mxu0 %v3469
        %5355 = vmatprep.subr.mxu0 0.0
        %5356 = vmatpush2.msra.mxu0 0.0
        %5357 = vmatprep.subr.mxu0 0.0
        %5358 = vmatpush2.msra.mxu0 0.0
        %5359 = vmatprep.subr.mxu0 0.0
        %5360 = vmatpush2.msra.mxu0 0.0
        %5361 = vmatprep.subr.mxu0 0.0
        %5362 = vmatpush2.msra.mxu0 0.0
        %5363 = vmatprep.subr.mxu0 0.0
        %5364 = vmatpush2.msra.mxu0 0.0
        %5365 = vmatprep.subr.mxu0 0.0
        %5366 = vmatpush2.msra.mxu0 0.0
        %5367 = vmatprep.subr.mxu0 0.0
        %5368 = vmatpush2.msra.mxu0 0.0
        %5369 = vmatprep.subr.mxu0 0.0
        %5370 = vmatpush2.msra.mxu0 0.0
        %5371 = vmatprep.subr.mxu0 0.0
        %5372 = vmatpush2.msra.mxu0 0.0
        %5373 = vmatprep.subr.mxu0 0.0
        %5374 = vmatpush2.msra.mxu0 0.0
        %5375 = vmatprep.subr.mxu0 0.0
        %5376 = vmatpush2.msra.mxu0 0.0
        %5377 = vmatprep.subr.mxu0 0.0
        %5378 = vmatpush2.msra.mxu0 0.0
        %5379 = vmatprep.subr.mxu0 0.0
        %5380 = vmatpush2.msra.mxu0 0.0
        %5381 = vmatprep.subr.mxu0 0.0
        %5382 = vmatpush2.msra.mxu0 0.0
        %5383 = vmatprep.subr.mxu0 0.0
        %5384 = vmatpush2.msra.mxu0 0.0
        %5385 = vmatprep.subr.mxu0 0.0
        %5386 = vmatpush2.msra.mxu0 0.0
        %5387 = vmatprep.mubr.f32.mxu0 0.0
        %5388 = vmatmul.mubr.f32.gmra.mxu0 %v3688
        %v5389 = vpop.f32.mrf.mxu0
        %v5390 = vadd.f32 %v3684, %v5389
        %v5391 = vpop.f32.mrf.mxu0
        %v5392 = vadd.f32 %v3684, %v5391
        %5393 = vdwg.mxu0
        %5394 = vmatprep.subr.mxu0 0.0
        %5395 = vmatpush1.msra.mxu0 0.0
        %5396 = vmatprep.subr.mxu0 0.0
        %5397 = vmatpush1.msra.mxu0 0.0
        %5398 = vmatprep.subr.mxu0 0.0
        %5399 = vmatpush1.msra.mxu0 0.0
        %5400 = vmatprep.subr.mxu0 0.0
        %5401 = vmatpush1.msra.mxu0 0.0
        %5402 = vmatprep.subr.mxu0 0.0
        %5403 = vmatpush1.msra.mxu0 0.0
        %5404 = vmatprep.subr.mxu0 0.0
        %5405 = vmatpush1.msra.mxu0 0.0
        %5406 = vmatprep.subr.mxu0 0.0
        %5407 = vmatpush1.msra.mxu0 0.0
        %5408 = vmatprep.subr.mxu0 0.0
        %5409 = vmatpush1.msra.mxu0 0.0
        %5410 = vmatprep.subr.mxu0 0.0
        %5411 = vmatpush1.msra.mxu0 0.0
        %5412 = vmatprep.subr.mxu0 0.0
        %5413 = vmatpush1.msra.mxu0 0.0
        %5414 = vmatprep.subr.mxu0 0.0
        %5415 = vmatpush1.msra.mxu0 0.0
        %5416 = vmatprep.subr.mxu0 0.0
        %5417 = vmatpush1.msra.mxu0 0.0
        %5418 = vmatprep.subr.mxu0 %v3664
        %5419 = vmatpush1.msra.mxu0 %v3663
        %5420 = vmatprep.subr.mxu0 %v3600
        %5421 = vmatpush1.msra.mxu0 %v3599
        %5422 = vmatprep.subr.mxu0 %v3536
        %5423 = vmatpush1.msra.mxu0 %v3535
        %5424 = vmatprep.subr.mxu0 %v3472
        %5425 = vmatpush1.msra.mxu0 %v3471
        %5426 = vmatprep.subr.mxu0 0.0
        %5427 = vmatpush2.msra.mxu0 0.0
        %5428 = vmatprep.subr.mxu0 0.0
        %5429 = vmatpush2.msra.mxu0 0.0
        %5430 = vmatprep.subr.mxu0 0.0
        %5431 = vmatpush2.msra.mxu0 0.0
        %5432 = vmatprep.subr.mxu0 0.0
        %5433 = vmatpush2.msra.mxu0 0.0
        %5434 = vmatprep.subr.mxu0 0.0
        %5435 = vmatpush2.msra.mxu0 0.0
        %5436 = vmatprep.subr.mxu0 0.0
        %5437 = vmatpush2.msra.mxu0 0.0
        %5438 = vmatprep.subr.mxu0 0.0
        %5439 = vmatpush2.msra.mxu0 0.0
        %5440 = vmatprep.subr.mxu0 0.0
        %5441 = vmatpush2.msra.mxu0 0.0
        %5442 = vmatprep.subr.mxu0 0.0
        %5443 = vmatpush2.msra.mxu0 0.0
        %5444 = vmatprep.subr.mxu0 0.0
        %5445 = vmatpush2.msra.mxu0 0.0
        %5446 = vmatprep.subr.mxu0 0.0
        %5447 = vmatpush2.msra.mxu0 0.0
        %5448 = vmatprep.subr.mxu0 0.0
        %5449 = vmatpush2.msra.mxu0 0.0
        %5450 = vmatprep.subr.mxu0 0.0
        %5451 = vmatpush2.msra.mxu0 0.0
        %5452 = vmatprep.subr.mxu0 0.0
        %5453 = vmatpush2.msra.mxu0 0.0
        %5454 = vmatprep.subr.mxu0 0.0
        %5455 = vmatpush2.msra.mxu0 0.0
        %5456 = vmatprep.subr.mxu0 0.0
        %5457 = vmatpush2.msra.mxu0 0.0
        %5458 = vmatprep.mubr.f32.mxu0 0.0
        %5459 = vmatmul.mubr.f32.gmra.mxu0 %v3688
        %v5460 = vpop.f32.mrf.mxu0
        %v5461 = vadd.f32 %v3684, %v5460
        %v5462 = vpop.f32.mrf.mxu0
        %v5463 = vadd.f32 %v3684, %v5462
        %5464 = vdwg.mxu0
        %5465 = vmatprep.subr.mxu0 0.0
        %5466 = vmatpush1.msra.mxu0 0.0
        %5467 = vmatprep.subr.mxu0 0.0
        %5468 = vmatpush1.msra.mxu0 0.0
        %5469 = vmatprep.subr.mxu0 0.0
        %5470 = vmatpush1.msra.mxu0 0.0
        %5471 = vmatprep.subr.mxu0 0.0
        %5472 = vmatpush1.msra.mxu0 0.0
        %5473 = vmatprep.subr.mxu0 0.0
        %5474 = vmatpush1.msra.mxu0 0.0
        %5475 = vmatprep.subr.mxu0 0.0
        %5476 = vmatpush1.msra.mxu0 0.0
        %5477 = vmatprep.subr.mxu0 0.0
        %5478 = vmatpush1.msra.mxu0 0.0
        %5479 = vmatprep.subr.mxu0 0.0
        %5480 = vmatpush1.msra.mxu0 0.0
        %5481 = vmatprep.subr.mxu0 0.0
        %5482 = vmatpush1.msra.mxu0 0.0
        %5483 = vmatprep.subr.mxu0 0.0
        %5484 = vmatpush1.msra.mxu0 0.0
        %5485 = vmatprep.subr.mxu0 0.0
        %5486 = vmatpush1.msra.mxu0 0.0
        %5487 = vmatprep.subr.mxu0 0.0
        %5488 = vmatpush1.msra.mxu0 0.0
        %5489 = vmatprep.subr.mxu0 %v3666
        %5490 = vmatpush1.msra.mxu0 %v3665
        %5491 = vmatprep.subr.mxu0 %v3602
        %5492 = vmatpush1.msra.mxu0 %v3601
        %5493 = vmatprep.subr.mxu0 %v3538
        %5494 = vmatpush1.msra.mxu0 %v3537
        %5495 = vmatprep.subr.mxu0 %v3474
        %5496 = vmatpush1.msra.mxu0 %v3473
        %5497 = vmatprep.subr.mxu0 0.0
        %5498 = vmatpush2.msra.mxu0 0.0
        %5499 = vmatprep.subr.mxu0 0.0
        %5500 = vmatpush2.msra.mxu0 0.0
        %5501 = vmatprep.subr.mxu0 0.0
        %5502 = vmatpush2.msra.mxu0 0.0
        %5503 = vmatprep.subr.mxu0 0.0
        %5504 = vmatpush2.msra.mxu0 0.0
        %5505 = vmatprep.subr.mxu0 0.0
        %5506 = vmatpush2.msra.mxu0 0.0
        %5507 = vmatprep.subr.mxu0 0.0
        %5508 = vmatpush2.msra.mxu0 0.0
        %5509 = vmatprep.subr.mxu0 0.0
        %5510 = vmatpush2.msra.mxu0 0.0
        %5511 = vmatprep.subr.mxu0 0.0
        %5512 = vmatpush2.msra.mxu0 0.0
        %5513 = vmatprep.subr.mxu0 0.0
        %5514 = vmatpush2.msra.mxu0 0.0
        %5515 = vmatprep.subr.mxu0 0.0
        %5516 = vmatpush2.msra.mxu0 0.0
        %5517 = vmatprep.subr.mxu0 0.0
        %5518 = vmatpush2.msra.mxu0 0.0
        %5519 = vmatprep.subr.mxu0 0.0
        %5520 = vmatpush2.msra.mxu0 0.0
        %5521 = vmatprep.subr.mxu0 0.0
        %5522 = vmatpush2.msra.mxu0 0.0
        %5523 = vmatprep.subr.mxu0 0.0
        %5524 = vmatpush2.msra.mxu0 0.0
        %5525 = vmatprep.subr.mxu0 0.0
        %5526 = vmatpush2.msra.mxu0 0.0
        %5527 = vmatprep.subr.mxu0 0.0
        %5528 = vmatpush2.msra.mxu0 0.0
        %5529 = vmatprep.mubr.f32.mxu0 0.0
        %5530 = vmatmul.mubr.f32.gmra.mxu0 %v3688
        %v5531 = vpop.f32.mrf.mxu0
        %v5532 = vadd.f32 %v3684, %v5531
        %v5533 = vpop.f32.mrf.mxu0
        %v5534 = vadd.f32 %v3684, %v5533
        %5535 = vdwg.mxu0
        %5536 = vmatprep.subr.mxu0 0.0
        %5537 = vmatpush1.msra.mxu0 0.0
        %5538 = vmatprep.subr.mxu0 0.0
        %5539 = vmatpush1.msra.mxu0 0.0
        %5540 = vmatprep.subr.mxu0 0.0
        %5541 = vmatpush1.msra.mxu0 0.0
        %5542 = vmatprep.subr.mxu0 0.0
        %5543 = vmatpush1.msra.mxu0 0.0
        %5544 = vmatprep.subr.mxu0 0.0
        %5545 = vmatpush1.msra.mxu0 0.0
        %5546 = vmatprep.subr.mxu0 0.0
        %5547 = vmatpush1.msra.mxu0 0.0
        %5548 = vmatprep.subr.mxu0 0.0
        %5549 = vmatpush1.msra.mxu0 0.0
        %5550 = vmatprep.subr.mxu0 0.0
        %5551 = vmatpush1.msra.mxu0 0.0
        %5552 = vmatprep.subr.mxu0 0.0
        %5553 = vmatpush1.msra.mxu0 0.0
        %5554 = vmatprep.subr.mxu0 0.0
        %5555 = vmatpush1.msra.mxu0 0.0
        %5556 = vmatprep.subr.mxu0 0.0
        %5557 = vmatpush1.msra.mxu0 0.0
        %5558 = vmatprep.subr.mxu0 0.0
        %5559 = vmatpush1.msra.mxu0 0.0
        %5560 = vmatprep.subr.mxu0 %v3668
        %5561 = vmatpush1.msra.mxu0 %v3667
        %5562 = vmatprep.subr.mxu0 %v3604
        %5563 = vmatpush1.msra.mxu0 %v3603
        %5564 = vmatprep.subr.mxu0 %v3540
        %5565 = vmatpush1.msra.mxu0 %v3539
        %5566 = vmatprep.subr.mxu0 %v3476
        %5567 = vmatpush1.msra.mxu0 %v3475
        %5568 = vmatprep.subr.mxu0 0.0
        %5569 = vmatpush2.msra.mxu0 0.0
        %5570 = vmatprep.subr.mxu0 0.0
        %5571 = vmatpush2.msra.mxu0 0.0
        %5572 = vmatprep.subr.mxu0 0.0
        %5573 = vmatpush2.msra.mxu0 0.0
        %5574 = vmatprep.subr.mxu0 0.0
        %5575 = vmatpush2.msra.mxu0 0.0
        %5576 = vmatprep.subr.mxu0 0.0
        %5577 = vmatpush2.msra.mxu0 0.0
        %5578 = vmatprep.subr.mxu0 0.0
        %5579 = vmatpush2.msra.mxu0 0.0
        %5580 = vmatprep.subr.mxu0 0.0
        %5581 = vmatpush2.msra.mxu0 0.0
        %5582 = vmatprep.subr.mxu0 0.0
        %5583 = vmatpush2.msra.mxu0 0.0
        %5584 = vmatprep.subr.mxu0 0.0
        %5585 = vmatpush2.msra.mxu0 0.0
        %5586 = vmatprep.subr.mxu0 0.0
        %5587 = vmatpush2.msra.mxu0 0.0
        %5588 = vmatprep.subr.mxu0 0.0
        %5589 = vmatpush2.msra.mxu0 0.0
        %5590 = vmatprep.subr.mxu0 0.0
        %5591 = vmatpush2.msra.mxu0 0.0
        %5592 = vmatprep.subr.mxu0 0.0
        %5593 = vmatpush2.msra.mxu0 0.0
        %5594 = vmatprep.subr.mxu0 0.0
        %5595 = vmatpush2.msra.mxu0 0.0
        %5596 = vmatprep.subr.mxu0 0.0
        %5597 = vmatpush2.msra.mxu0 0.0
        %5598 = vmatprep.subr.mxu0 0.0
        %5599 = vmatpush2.msra.mxu0 0.0
        %5600 = vmatprep.mubr.f32.mxu0 0.0
        %5601 = vmatmul.mubr.f32.gmra.mxu0 %v3688
        %v5602 = vpop.f32.mrf.mxu0
        %v5603 = vadd.f32 %v3684, %v5602
        %v5604 = vpop.f32.mrf.mxu0
        %v5605 = vadd.f32 %v3684, %v5604
        %5606 = vdwg.mxu0
        %5607 = vmatprep.subr.mxu0 0.0
        %5608 = vmatpush1.msra.mxu0 0.0
        %5609 = vmatprep.subr.mxu0 0.0
        %5610 = vmatpush1.msra.mxu0 0.0
        %5611 = vmatprep.subr.mxu0 0.0
        %5612 = vmatpush1.msra.mxu0 0.0
        %5613 = vmatprep.subr.mxu0 0.0
        %5614 = vmatpush1.msra.mxu0 0.0
        %5615 = vmatprep.subr.mxu0 0.0
        %5616 = vmatpush1.msra.mxu0 0.0
        %5617 = vmatprep.subr.mxu0 0.0
        %5618 = vmatpush1.msra.mxu0 0.0
        %5619 = vmatprep.subr.mxu0 0.0
        %5620 = vmatpush1.msra.mxu0 0.0
        %5621 = vmatprep.subr.mxu0 0.0
        %5622 = vmatpush1.msra.mxu0 0.0
        %5623 = vmatprep.subr.mxu0 0.0
        %5624 = vmatpush1.msra.mxu0 0.0
        %5625 = vmatprep.subr.mxu0 0.0
        %5626 = vmatpush1.msra.mxu0 0.0
        %5627 = vmatprep.subr.mxu0 0.0
        %5628 = vmatpush1.msra.mxu0 0.0
        %5629 = vmatprep.subr.mxu0 0.0
        %5630 = vmatpush1.msra.mxu0 0.0
        %5631 = vmatprep.subr.mxu0 %v3670
        %5632 = vmatpush1.msra.mxu0 %v3669
        %5633 = vmatprep.subr.mxu0 %v3606
        %5634 = vmatpush1.msra.mxu0 %v3605
        %5635 = vmatprep.subr.mxu0 %v3542
        %5636 = vmatpush1.msra.mxu0 %v3541
        %5637 = vmatprep.subr.mxu0 %v3478
        %5638 = vmatpush1.msra.mxu0 %v3477
        %5639 = vmatprep.subr.mxu0 0.0
        %5640 = vmatpush2.msra.mxu0 0.0
        %5641 = vmatprep.subr.mxu0 0.0
        %5642 = vmatpush2.msra.mxu0 0.0
        %5643 = vmatprep.subr.mxu0 0.0
        %5644 = vmatpush2.msra.mxu0 0.0
        %5645 = vmatprep.subr.mxu0 0.0
        %5646 = vmatpush2.msra.mxu0 0.0
        %5647 = vmatprep.subr.mxu0 0.0
        %5648 = vmatpush2.msra.mxu0 0.0
        %5649 = vmatprep.subr.mxu0 0.0
        %5650 = vmatpush2.msra.mxu0 0.0
        %5651 = vmatprep.subr.mxu0 0.0
        %5652 = vmatpush2.msra.mxu0 0.0
        %5653 = vmatprep.subr.mxu0 0.0
        %5654 = vmatpush2.msra.mxu0 0.0
        %5655 = vmatprep.subr.mxu0 0.0
        %5656 = vmatpush2.msra.mxu0 0.0
        %5657 = vmatprep.subr.mxu0 0.0
        %5658 = vmatpush2.msra.mxu0 0.0
        %5659 = vmatprep.subr.mxu0 0.0
        %5660 = vmatpush2.msra.mxu0 0.0
        %5661 = vmatprep.subr.mxu0 0.0
        %5662 = vmatpush2.msra.mxu0 0.0
        %5663 = vmatprep.subr.mxu0 0.0
        %5664 = vmatpush2.msra.mxu0 0.0
        %5665 = vmatprep.subr.mxu0 0.0
        %5666 = vmatpush2.msra.mxu0 0.0
        %5667 = vmatprep.subr.mxu0 0.0
        %5668 = vmatpush2.msra.mxu0 0.0
        %5669 = vmatprep.subr.mxu0 0.0
        %5670 = vmatpush2.msra.mxu0 0.0
        %5671 = vmatprep.mubr.f32.mxu0 0.0
        %5672 = vmatmul.mubr.f32.gmra.mxu0 %v3688
        %v5673 = vpop.f32.mrf.mxu0
        %v5674 = vadd.f32 %v3684, %v5673
        %v5675 = vpop.f32.mrf.mxu0
        %v5676 = vadd.f32 %v3684, %v5675
        %5677 = vdwg.mxu0
        %5678 = vmatprep.subr.mxu0 0.0
        %5679 = vmatpush1.msra.mxu0 0.0
        %5680 = vmatprep.subr.mxu0 0.0
        %5681 = vmatpush1.msra.mxu0 0.0
        %5682 = vmatprep.subr.mxu0 0.0
        %5683 = vmatpush1.msra.mxu0 0.0
        %5684 = vmatprep.subr.mxu0 0.0
        %5685 = vmatpush1.msra.mxu0 0.0
        %5686 = vmatprep.subr.mxu0 0.0
        %5687 = vmatpush1.msra.mxu0 0.0
        %5688 = vmatprep.subr.mxu0 0.0
        %5689 = vmatpush1.msra.mxu0 0.0
        %5690 = vmatprep.subr.mxu0 0.0
        %5691 = vmatpush1.msra.mxu0 0.0
        %5692 = vmatprep.subr.mxu0 0.0
        %5693 = vmatpush1.msra.mxu0 0.0
        %5694 = vmatprep.subr.mxu0 0.0
        %5695 = vmatpush1.msra.mxu0 0.0
        %5696 = vmatprep.subr.mxu0 0.0
        %5697 = vmatpush1.msra.mxu0 0.0
        %5698 = vmatprep.subr.mxu0 0.0
        %5699 = vmatpush1.msra.mxu0 0.0
        %5700 = vmatprep.subr.mxu0 0.0
        %5701 = vmatpush1.msra.mxu0 0.0
        %5702 = vmatprep.subr.mxu0 %v3672
        %5703 = vmatpush1.msra.mxu0 %v3671
        %5704 = vmatprep.subr.mxu0 %v3608
        %5705 = vmatpush1.msra.mxu0 %v3607
        %5706 = vmatprep.subr.mxu0 %v3544
        %5707 = vmatpush1.msra.mxu0 %v3543
        %5708 = vmatprep.subr.mxu0 %v3480
        %5709 = vmatpush1.msra.mxu0 %v3479
        %5710 = vmatprep.subr.mxu0 0.0
        %5711 = vmatpush2.msra.mxu0 0.0
        %5712 = vmatprep.subr.mxu0 0.0
        %5713 = vmatpush2.msra.mxu0 0.0
        %5714 = vmatprep.subr.mxu0 0.0
        %5715 = vmatpush2.msra.mxu0 0.0
        %5716 = vmatprep.subr.mxu0 0.0
        %5717 = vmatpush2.msra.mxu0 0.0
        %5718 = vmatprep.subr.mxu0 0.0
        %5719 = vmatpush2.msra.mxu0 0.0
        %5720 = vmatprep.subr.mxu0 0.0
        %5721 = vmatpush2.msra.mxu0 0.0
        %5722 = vmatprep.subr.mxu0 0.0
        %5723 = vmatpush2.msra.mxu0 0.0
        %5724 = vmatprep.subr.mxu0 0.0
        %5725 = vmatpush2.msra.mxu0 0.0
        %5726 = vmatprep.subr.mxu0 0.0
        %5727 = vmatpush2.msra.mxu0 0.0
        %5728 = vmatprep.subr.mxu0 0.0
        %5729 = vmatpush2.msra.mxu0 0.0
        %5730 = vmatprep.subr.mxu0 0.0
        %5731 = vmatpush2.msra.mxu0 0.0
        %5732 = vmatprep.subr.mxu0 0.0
        %5733 = vmatpush2.msra.mxu0 0.0
        %5734 = vmatprep.subr.mxu0 0.0
        %5735 = vmatpush2.msra.mxu0 0.0
        %5736 = vmatprep.subr.mxu0 0.0
        %5737 = vmatpush2.msra.mxu0 0.0
        %5738 = vmatprep.subr.mxu0 0.0
        %5739 = vmatpush2.msra.mxu0 0.0
        %5740 = vmatprep.subr.mxu0 0.0
        %5741 = vmatpush2.msra.mxu0 0.0
        %5742 = vmatprep.mubr.f32.mxu0 0.0
        %5743 = vmatmul.mubr.f32.gmra.mxu0 %v3688
        %v5744 = vpop.f32.mrf.mxu0
        %v5745 = vadd.f32 %v3684, %v5744
        %v5746 = vpop.f32.mrf.mxu0
        %v5747 = vadd.f32 %v3684, %v5746
        %5748 = vdwg.mxu0
        %5749 = vmatprep.subr.mxu0 0.0
        %5750 = vmatpush1.msra.mxu0 0.0
        %5751 = vmatprep.subr.mxu0 0.0
        %5752 = vmatpush1.msra.mxu0 0.0
        %5753 = vmatprep.subr.mxu0 0.0
        %5754 = vmatpush1.msra.mxu0 0.0
        %5755 = vmatprep.subr.mxu0 0.0
        %5756 = vmatpush1.msra.mxu0 0.0
        %5757 = vmatprep.subr.mxu0 0.0
        %5758 = vmatpush1.msra.mxu0 0.0
        %5759 = vmatprep.subr.mxu0 0.0
        %5760 = vmatpush1.msra.mxu0 0.0
        %5761 = vmatprep.subr.mxu0 0.0
        %5762 = vmatpush1.msra.mxu0 0.0
        %5763 = vmatprep.subr.mxu0 0.0
        %5764 = vmatpush1.msra.mxu0 0.0
        %5765 = vmatprep.subr.mxu0 0.0
        %5766 = vmatpush1.msra.mxu0 0.0
        %5767 = vmatprep.subr.mxu0 0.0
        %5768 = vmatpush1.msra.mxu0 0.0
        %5769 = vmatprep.subr.mxu0 0.0
        %5770 = vmatpush1.msra.mxu0 0.0
        %5771 = vmatprep.subr.mxu0 0.0
        %5772 = vmatpush1.msra.mxu0 0.0
        %5773 = vmatprep.subr.mxu0 %v3674
        %5774 = vmatpush1.msra.mxu0 %v3673
        %5775 = vmatprep.subr.mxu0 %v3610
        %5776 = vmatpush1.msra.mxu0 %v3609
        %5777 = vmatprep.subr.mxu0 %v3546
        %5778 = vmatpush1.msra.mxu0 %v3545
        %5779 = vmatprep.subr.mxu0 %v3482
        %5780 = vmatpush1.msra.mxu0 %v3481
        %5781 = vmatprep.subr.mxu0 0.0
        %5782 = vmatpush2.msra.mxu0 0.0
        %5783 = vmatprep.subr.mxu0 0.0
        %5784 = vmatpush2.msra.mxu0 0.0
        %5785 = vmatprep.subr.mxu0 0.0
        %5786 = vmatpush2.msra.mxu0 0.0
        %5787 = vmatprep.subr.mxu0 0.0
        %5788 = vmatpush2.msra.mxu0 0.0
        %5789 = vmatprep.subr.mxu0 0.0
        %5790 = vmatpush2.msra.mxu0 0.0
        %5791 = vmatprep.subr.mxu0 0.0
        %5792 = vmatpush2.msra.mxu0 0.0
        %5793 = vmatprep.subr.mxu0 0.0
        %5794 = vmatpush2.msra.mxu0 0.0
        %5795 = vmatprep.subr.mxu0 0.0
        %5796 = vmatpush2.msra.mxu0 0.0
        %5797 = vmatprep.subr.mxu0 0.0
        %5798 = vmatpush2.msra.mxu0 0.0
        %5799 = vmatprep.subr.mxu0 0.0
        %5800 = vmatpush2.msra.mxu0 0.0
        %5801 = vmatprep.subr.mxu0 0.0
        %5802 = vmatpush2.msra.mxu0 0.0
        %5803 = vmatprep.subr.mxu0 0.0
        %5804 = vmatpush2.msra.mxu0 0.0
        %5805 = vmatprep.subr.mxu0 0.0
        %5806 = vmatpush2.msra.mxu0 0.0
        %5807 = vmatprep.subr.mxu0 0.0
        %5808 = vmatpush2.msra.mxu0 0.0
        %5809 = vmatprep.subr.mxu0 0.0
        %5810 = vmatpush2.msra.mxu0 0.0
        %5811 = vmatprep.subr.mxu0 0.0
        %5812 = vmatpush2.msra.mxu0 0.0
        %5813 = vmatprep.mubr.f32.mxu0 0.0
        %5814 = vmatmul.mubr.f32.gmra.mxu0 %v3688
        %v5815 = vpop.f32.mrf.mxu0
        %v5816 = vadd.f32 %v3684, %v5815
        %v5817 = vpop.f32.mrf.mxu0
        %v5818 = vadd.f32 %v3684, %v5817
        %5819 = vdwg.mxu0
        %5820 = vmatprep.subr.mxu0 0.0
        %5821 = vmatpush1.msra.mxu0 0.0
        %5822 = vmatprep.subr.mxu0 0.0
        %5823 = vmatpush1.msra.mxu0 0.0
        %5824 = vmatprep.subr.mxu0 0.0
        %5825 = vmatpush1.msra.mxu0 0.0
        %5826 = vmatprep.subr.mxu0 0.0
        %5827 = vmatpush1.msra.mxu0 0.0
        %5828 = vmatprep.subr.mxu0 0.0
        %5829 = vmatpush1.msra.mxu0 0.0
        %5830 = vmatprep.subr.mxu0 0.0
        %5831 = vmatpush1.msra.mxu0 0.0
        %5832 = vmatprep.subr.mxu0 0.0
        %5833 = vmatpush1.msra.mxu0 0.0
        %5834 = vmatprep.subr.mxu0 0.0
        %5835 = vmatpush1.msra.mxu0 0.0
        %5836 = vmatprep.subr.mxu0 0.0
        %5837 = vmatpush1.msra.mxu0 0.0
        %5838 = vmatprep.subr.mxu0 0.0
        %5839 = vmatpush1.msra.mxu0 0.0
        %5840 = vmatprep.subr.mxu0 0.0
        %5841 = vmatpush1.msra.mxu0 0.0
        %5842 = vmatprep.subr.mxu0 0.0
        %5843 = vmatpush1.msra.mxu0 0.0
        %5844 = vmatprep.subr.mxu0 %v3676
        %5845 = vmatpush1.msra.mxu0 %v3675
        %5846 = vmatprep.subr.mxu0 %v3612
        %5847 = vmatpush1.msra.mxu0 %v3611
        %5848 = vmatprep.subr.mxu0 %v3548
        %5849 = vmatpush1.msra.mxu0 %v3547
        %5850 = vmatprep.subr.mxu0 %v3484
        %5851 = vmatpush1.msra.mxu0 %v3483
        %5852 = vmatprep.subr.mxu0 0.0
        %5853 = vmatpush2.msra.mxu0 0.0
        %5854 = vmatprep.subr.mxu0 0.0
        %5855 = vmatpush2.msra.mxu0 0.0
        %5856 = vmatprep.subr.mxu0 0.0
        %5857 = vmatpush2.msra.mxu0 0.0
        %5858 = vmatprep.subr.mxu0 0.0
        %5859 = vmatpush2.msra.mxu0 0.0
        %5860 = vmatprep.subr.mxu0 0.0
        %5861 = vmatpush2.msra.mxu0 0.0
        %5862 = vmatprep.subr.mxu0 0.0
        %5863 = vmatpush2.msra.mxu0 0.0
        %5864 = vmatprep.subr.mxu0 0.0
        %5865 = vmatpush2.msra.mxu0 0.0
        %5866 = vmatprep.subr.mxu0 0.0
        %5867 = vmatpush2.msra.mxu0 0.0
        %5868 = vmatprep.subr.mxu0 0.0
        %5869 = vmatpush2.msra.mxu0 0.0
        %5870 = vmatprep.subr.mxu0 0.0
        %5871 = vmatpush2.msra.mxu0 0.0
        %5872 = vmatprep.subr.mxu0 0.0
        %5873 = vmatpush2.msra.mxu0 0.0
        %5874 = vmatprep.subr.mxu0 0.0
        %5875 = vmatpush2.msra.mxu0 0.0
        %5876 = vmatprep.subr.mxu0 0.0
        %5877 = vmatpush2.msra.mxu0 0.0
        %5878 = vmatprep.subr.mxu0 0.0
        %5879 = vmatpush2.msra.mxu0 0.0
        %5880 = vmatprep.subr.mxu0 0.0
        %5881 = vmatpush2.msra.mxu0 0.0
        %5882 = vmatprep.subr.mxu0 0.0
        %5883 = vmatpush2.msra.mxu0 0.0
        %5884 = vmatprep.mubr.f32.mxu0 0.0
        %5885 = vmatmul.mubr.f32.gmra.mxu0 %v3688
        %v5886 = vpop.f32.mrf.mxu0
        %v5887 = vadd.f32 %v3684, %v5886
        %v5888 = vpop.f32.mrf.mxu0
        %v5889 = vadd.f32 %v3684, %v5888
        %5890 = vdwg.mxu0
        %5891 = vmatprep.subr.mxu0 0.0
        %5892 = vmatpush1.msra.mxu0 0.0
        %5893 = vmatprep.subr.mxu0 0.0
        %5894 = vmatpush1.msra.mxu0 0.0
        %5895 = vmatprep.subr.mxu0 0.0
        %5896 = vmatpush1.msra.mxu0 0.0
        %5897 = vmatprep.subr.mxu0 0.0
        %5898 = vmatpush1.msra.mxu0 0.0
        %5899 = vmatprep.subr.mxu0 0.0
        %5900 = vmatpush1.msra.mxu0 0.0
        %5901 = vmatprep.subr.mxu0 0.0
        %5902 = vmatpush1.msra.mxu0 0.0
        %5903 = vmatprep.subr.mxu0 0.0
        %5904 = vmatpush1.msra.mxu0 0.0
        %5905 = vmatprep.subr.mxu0 0.0
        %5906 = vmatpush1.msra.mxu0 0.0
        %5907 = vmatprep.subr.mxu0 0.0
        %5908 = vmatpush1.msra.mxu0 0.0
        %5909 = vmatprep.subr.mxu0 0.0
        %5910 = vmatpush1.msra.mxu0 0.0
        %5911 = vmatprep.subr.mxu0 0.0
        %5912 = vmatpush1.msra.mxu0 0.0
        %5913 = vmatprep.subr.mxu0 0.0
        %5914 = vmatpush1.msra.mxu0 0.0
        %5915 = vmatprep.subr.mxu0 %v3678
        %5916 = vmatpush1.msra.mxu0 %v3677
        %5917 = vmatprep.subr.mxu0 %v3614
        %5918 = vmatpush1.msra.mxu0 %v3613
        %5919 = vmatprep.subr.mxu0 %v3550
        %5920 = vmatpush1.msra.mxu0 %v3549
        %5921 = vmatprep.subr.mxu0 %v3486
        %5922 = vmatpush1.msra.mxu0 %v3485
        %5923 = vmatprep.subr.mxu0 0.0
        %5924 = vmatpush2.msra.mxu0 0.0
        %5925 = vmatprep.subr.mxu0 0.0
        %5926 = vmatpush2.msra.mxu0 0.0
        %5927 = vmatprep.subr.mxu0 0.0
        %5928 = vmatpush2.msra.mxu0 0.0
        %5929 = vmatprep.subr.mxu0 0.0
        %5930 = vmatpush2.msra.mxu0 0.0
        %5931 = vmatprep.subr.mxu0 0.0
        %5932 = vmatpush2.msra.mxu0 0.0
        %5933 = vmatprep.subr.mxu0 0.0
        %5934 = vmatpush2.msra.mxu0 0.0
        %5935 = vmatprep.subr.mxu0 0.0
        %5936 = vmatpush2.msra.mxu0 0.0
        %5937 = vmatprep.subr.mxu0 0.0
        %5938 = vmatpush2.msra.mxu0 0.0
        %5939 = vmatprep.subr.mxu0 0.0
        %5940 = vmatpush2.msra.mxu0 0.0
        %5941 = vmatprep.subr.mxu0 0.0
        %5942 = vmatpush2.msra.mxu0 0.0
        %5943 = vmatprep.subr.mxu0 0.0
        %5944 = vmatpush2.msra.mxu0 0.0
        %5945 = vmatprep.subr.mxu0 0.0
        %5946 = vmatpush2.msra.mxu0 0.0
        %5947 = vmatprep.subr.mxu0 0.0
        %5948 = vmatpush2.msra.mxu0 0.0
        %5949 = vmatprep.subr.mxu0 0.0
        %5950 = vmatpush2.msra.mxu0 0.0
        %5951 = vmatprep.subr.mxu0 0.0
        %5952 = vmatpush2.msra.mxu0 0.0
        %5953 = vmatprep.subr.mxu0 0.0
        %5954 = vmatpush2.msra.mxu0 0.0
        %5955 = vmatprep.mubr.f32.mxu0 0.0
        %5956 = vmatmul.mubr.f32.gmra.mxu0 %v3688
        %v5957 = vpop.f32.mrf.mxu0
        %v5958 = vadd.f32 %v3684, %v5957
        %v5959 = vpop.f32.mrf.mxu0
        %v5960 = vadd.f32 %v3684, %v5959
        %5961 = vdwg.mxu0
        %v5962 = vld [vmem:[%s272] sm:$0xff]
        %v5963 = vld [vmem:[%s272 + $0x8] sm:$0xff]
        %v5964 = vld [vmem:[%s272 + $0x10] sm:$0xff]
        %v5965 = vld [vmem:[%s272 + $0x18] sm:$0xff]
        %v5966 = vld [vmem:[%s272 + $0x20] sm:$0xff]
        %v5967 = vld [vmem:[%s272 + $0x28] sm:$0xff]
        %v5968 = vld [vmem:[%s272 + $0x30] sm:$0xff]
        %v5969 = vld [vmem:[%s272 + $0x38] sm:$0xff]
        %v5978 = vlaneseq
        %v5979 = vshrl.u32 %v5978, 7
        %v5980 = vsub.s32 0, %v5979
        %v5981 = vrot.slane %v5962, %v5980
        %v5982 = vlaneseq
        %v5983 = vshrl.u32 %v5982, 7
        %v5984 = vsub.s32 1, %v5983
        %v5985 = vrot.slane %v5962, %v5984
        %v5986 = vlaneseq
        %v5987 = vshrl.u32 %v5986, 7
        %v5988 = vsub.s32 2, %v5987
        %v5989 = vrot.slane %v5962, %v5988
        %v5990 = vlaneseq
        %v5991 = vshrl.u32 %v5990, 7
        %v5992 = vsub.s32 3, %v5991
        %v5993 = vrot.slane %v5962, %v5992
        %v5994 = vlaneseq
        %v5995 = vshrl.u32 %v5994, 7
        %v5996 = vsub.s32 4, %v5995
        %v5997 = vrot.slane %v5962, %v5996
        %v5998 = vlaneseq
        %v5999 = vshrl.u32 %v5998, 7
        %v6000 = vsub.s32 5, %v5999
        %v6001 = vrot.slane %v5962, %v6000
        %v6002 = vlaneseq
        %v6003 = vshrl.u32 %v6002, 7
        %v6004 = vsub.s32 6, %v6003
        %v6005 = vrot.slane %v5962, %v6004
        %v6006 = vlaneseq
        %v6007 = vshrl.u32 %v6006, 7
        %v6008 = vsub.s32 7, %v6007
        %v6009 = vrot.slane %v5962, %v6008
        %v6010 = vlaneseq
        %v6011 = vshrl.u32 %v6010, 7
        %v6012 = vsub.s32 0, %v6011
        %v6013 = vrot.slane %v5963, %v6012
        %v6014 = vlaneseq
        %v6015 = vshrl.u32 %v6014, 7
        %v6016 = vsub.s32 1, %v6015
        %v6017 = vrot.slane %v5963, %v6016
        %v6018 = vlaneseq
        %v6019 = vshrl.u32 %v6018, 7
        %v6020 = vsub.s32 2, %v6019
        %v6021 = vrot.slane %v5963, %v6020
        %v6022 = vlaneseq
        %v6023 = vshrl.u32 %v6022, 7
        %v6024 = vsub.s32 3, %v6023
        %v6025 = vrot.slane %v5963, %v6024
        %v6026 = vlaneseq
        %v6027 = vshrl.u32 %v6026, 7
        %v6028 = vsub.s32 4, %v6027
        %v6029 = vrot.slane %v5963, %v6028
        %v6030 = vlaneseq
        %v6031 = vshrl.u32 %v6030, 7
        %v6032 = vsub.s32 5, %v6031
        %v6033 = vrot.slane %v5963, %v6032
        %v6034 = vlaneseq
        %v6035 = vshrl.u32 %v6034, 7
        %v6036 = vsub.s32 6, %v6035
        %v6037 = vrot.slane %v5963, %v6036
        %v6038 = vlaneseq
        %v6039 = vshrl.u32 %v6038, 7
        %v6040 = vsub.s32 7, %v6039
        %v6041 = vrot.slane %v5963, %v6040
        %v6042 = vlaneseq
        %v6043 = vshrl.u32 %v6042, 7
        %v6044 = vsub.s32 0, %v6043
        %v6045 = vrot.slane %v5964, %v6044
        %v6046 = vlaneseq
        %v6047 = vshrl.u32 %v6046, 7
        %v6048 = vsub.s32 1, %v6047
        %v6049 = vrot.slane %v5964, %v6048
        %v6050 = vlaneseq
        %v6051 = vshrl.u32 %v6050, 7
        %v6052 = vsub.s32 2, %v6051
        %v6053 = vrot.slane %v5964, %v6052
        %v6054 = vlaneseq
        %v6055 = vshrl.u32 %v6054, 7
        %v6056 = vsub.s32 3, %v6055
        %v6057 = vrot.slane %v5964, %v6056
        %v6058 = vlaneseq
        %v6059 = vshrl.u32 %v6058, 7
        %v6060 = vsub.s32 4, %v6059
        %v6061 = vrot.slane %v5964, %v6060
        %v6062 = vlaneseq
        %v6063 = vshrl.u32 %v6062, 7
        %v6064 = vsub.s32 5, %v6063
        %v6065 = vrot.slane %v5964, %v6064
        %v6066 = vlaneseq
        %v6067 = vshrl.u32 %v6066, 7
        %v6068 = vsub.s32 6, %v6067
        %v6069 = vrot.slane %v5964, %v6068
        %v6070 = vlaneseq
        %v6071 = vshrl.u32 %v6070, 7
        %v6072 = vsub.s32 7, %v6071
        %v6073 = vrot.slane %v5964, %v6072
        %v6074 = vlaneseq
        %v6075 = vshrl.u32 %v6074, 7
        %v6076 = vsub.s32 0, %v6075
        %v6077 = vrot.slane %v5965, %v6076
        %v6078 = vlaneseq
        %v6079 = vshrl.u32 %v6078, 7
        %v6080 = vsub.s32 1, %v6079
        %v6081 = vrot.slane %v5965, %v6080
        %v6082 = vlaneseq
        %v6083 = vshrl.u32 %v6082, 7
        %v6084 = vsub.s32 2, %v6083
        %v6085 = vrot.slane %v5965, %v6084
        %v6086 = vlaneseq
        %v6087 = vshrl.u32 %v6086, 7
        %v6088 = vsub.s32 3, %v6087
        %v6089 = vrot.slane %v5965, %v6088
        %v6090 = vlaneseq
        %v6091 = vshrl.u32 %v6090, 7
        %v6092 = vsub.s32 4, %v6091
        %v6093 = vrot.slane %v5965, %v6092
        %v6094 = vlaneseq
        %v6095 = vshrl.u32 %v6094, 7
        %v6096 = vsub.s32 5, %v6095
        %v6097 = vrot.slane %v5965, %v6096
        %v6098 = vlaneseq
        %v6099 = vshrl.u32 %v6098, 7
        %v6100 = vsub.s32 6, %v6099
        %v6101 = vrot.slane %v5965, %v6100
        %v6102 = vlaneseq
        %v6103 = vshrl.u32 %v6102, 7
        %v6104 = vsub.s32 7, %v6103
        %v6105 = vrot.slane %v5965, %v6104
        %v6106 = vlaneseq
        %v6107 = vshrl.u32 %v6106, 7
        %v6108 = vsub.s32 0, %v6107
        %v6109 = vrot.slane %v5966, %v6108
        %v6110 = vlaneseq
        %v6111 = vshrl.u32 %v6110, 7
        %v6112 = vsub.s32 1, %v6111
        %v6113 = vrot.slane %v5966, %v6112
        %v6114 = vlaneseq
        %v6115 = vshrl.u32 %v6114, 7
        %v6116 = vsub.s32 2, %v6115
        %v6117 = vrot.slane %v5966, %v6116
        %v6118 = vlaneseq
        %v6119 = vshrl.u32 %v6118, 7
        %v6120 = vsub.s32 3, %v6119
        %v6121 = vrot.slane %v5966, %v6120
        %v6122 = vlaneseq
        %v6123 = vshrl.u32 %v6122, 7
        %v6124 = vsub.s32 4, %v6123
        %v6125 = vrot.slane %v5966, %v6124
        %v6126 = vlaneseq
        %v6127 = vshrl.u32 %v6126, 7
        %v6128 = vsub.s32 5, %v6127
        %v6129 = vrot.slane %v5966, %v6128
        %v6130 = vlaneseq
        %v6131 = vshrl.u32 %v6130, 7
        %v6132 = vsub.s32 6, %v6131
        %v6133 = vrot.slane %v5966, %v6132
        %v6134 = vlaneseq
        %v6135 = vshrl.u32 %v6134, 7
        %v6136 = vsub.s32 7, %v6135
        %v6137 = vrot.slane %v5966, %v6136
        %v6138 = vlaneseq
        %v6139 = vshrl.u32 %v6138, 7
        %v6140 = vsub.s32 0, %v6139
        %v6141 = vrot.slane %v5967, %v6140
        %v6142 = vlaneseq
        %v6143 = vshrl.u32 %v6142, 7
        %v6144 = vsub.s32 1, %v6143
        %v6145 = vrot.slane %v5967, %v6144
        %v6146 = vlaneseq
        %v6147 = vshrl.u32 %v6146, 7
        %v6148 = vsub.s32 2, %v6147
        %v6149 = vrot.slane %v5967, %v6148
        %v6150 = vlaneseq
        %v6151 = vshrl.u32 %v6150, 7
        %v6152 = vsub.s32 3, %v6151
        %v6153 = vrot.slane %v5967, %v6152
        %v6154 = vlaneseq
        %v6155 = vshrl.u32 %v6154, 7
        %v6156 = vsub.s32 4, %v6155
        %v6157 = vrot.slane %v5967, %v6156
        %v6158 = vlaneseq
        %v6159 = vshrl.u32 %v6158, 7
        %v6160 = vsub.s32 5, %v6159
        %v6161 = vrot.slane %v5967, %v6160
        %v6162 = vlaneseq
        %v6163 = vshrl.u32 %v6162, 7
        %v6164 = vsub.s32 6, %v6163
        %v6165 = vrot.slane %v5967, %v6164
        %v6166 = vlaneseq
        %v6167 = vshrl.u32 %v6166, 7
        %v6168 = vsub.s32 7, %v6167
        %v6169 = vrot.slane %v5967, %v6168
        %v6170 = vlaneseq
        %v6171 = vshrl.u32 %v6170, 7
        %v6172 = vsub.s32 0, %v6171
        %v6173 = vrot.slane %v5968, %v6172
        %v6174 = vlaneseq
        %v6175 = vshrl.u32 %v6174, 7
        %v6176 = vsub.s32 1, %v6175
        %v6177 = vrot.slane %v5968, %v6176
        %v6178 = vlaneseq
        %v6179 = vshrl.u32 %v6178, 7
        %v6180 = vsub.s32 2, %v6179
        %v6181 = vrot.slane %v5968, %v6180
        %v6182 = vlaneseq
        %v6183 = vshrl.u32 %v6182, 7
        %v6184 = vsub.s32 3, %v6183
        %v6185 = vrot.slane %v5968, %v6184
        %v6186 = vlaneseq
        %v6187 = vshrl.u32 %v6186, 7
        %v6188 = vsub.s32 4, %v6187
        %v6189 = vrot.slane %v5968, %v6188
        %v6190 = vlaneseq
        %v6191 = vshrl.u32 %v6190, 7
        %v6192 = vsub.s32 5, %v6191
        %v6193 = vrot.slane %v5968, %v6192
        %v6194 = vlaneseq
        %v6195 = vshrl.u32 %v6194, 7
        %v6196 = vsub.s32 6, %v6195
        %v6197 = vrot.slane %v5968, %v6196
        %v6198 = vlaneseq
        %v6199 = vshrl.u32 %v6198, 7
        %v6200 = vsub.s32 7, %v6199
        %v6201 = vrot.slane %v5968, %v6200
        %v6202 = vlaneseq
        %v6203 = vshrl.u32 %v6202, 7
        %v6204 = vsub.s32 0, %v6203
        %v6205 = vrot.slane %v5969, %v6204
        %v6206 = vlaneseq
        %v6207 = vshrl.u32 %v6206, 7
        %v6208 = vsub.s32 1, %v6207
        %v6209 = vrot.slane %v5969, %v6208
        %v6210 = vlaneseq
        %v6211 = vshrl.u32 %v6210, 7
        %v6212 = vsub.s32 2, %v6211
        %v6213 = vrot.slane %v5969, %v6212
        %v6214 = vlaneseq
        %v6215 = vshrl.u32 %v6214, 7
        %v6216 = vsub.s32 3, %v6215
        %v6217 = vrot.slane %v5969, %v6216
        %v6218 = vlaneseq
        %v6219 = vshrl.u32 %v6218, 7
        %v6220 = vsub.s32 4, %v6219
        %v6221 = vrot.slane %v5969, %v6220
        %v6222 = vlaneseq
        %v6223 = vshrl.u32 %v6222, 7
        %v6224 = vsub.s32 5, %v6223
        %v6225 = vrot.slane %v5969, %v6224
        %v6226 = vlaneseq
        %v6227 = vshrl.u32 %v6226, 7
        %v6228 = vsub.s32 6, %v6227
        %v6229 = vrot.slane %v5969, %v6228
        %v6230 = vlaneseq
        %v6231 = vshrl.u32 %v6230, 7
        %v6232 = vsub.s32 7, %v6231
        %v6233 = vrot.slane %v5969, %v6232
        %v6298 = vmul.f32 %v3757, %v5981
        %v6299 = vmul.f32 %v3759, %v5985
        %v6300 = vmul.f32 %v3828, %v5989
        %v6301 = vmul.f32 %v3830, %v5993
        %v6302 = vmul.f32 %v3899, %v5997
        %v6303 = vmul.f32 %v3901, %v6001
        %v6304 = vmul.f32 %v3970, %v6005
        %v6305 = vmul.f32 %v3972, %v6009
        %v6306 = vmul.f32 %v4041, %v6013
        %v6307 = vmul.f32 %v4043, %v6017
        %v6308 = vmul.f32 %v4112, %v6021
        %v6309 = vmul.f32 %v4114, %v6025
        %v6310 = vmul.f32 %v4183, %v6029
        %v6311 = vmul.f32 %v4185, %v6033
        %v6312 = vmul.f32 %v4254, %v6037
        %v6313 = vmul.f32 %v4256, %v6041
        %v6314 = vmul.f32 %v4325, %v6045
        %v6315 = vmul.f32 %v4327, %v6049
        %v6316 = vmul.f32 %v4396, %v6053
        %v6317 = vmul.f32 %v4398, %v6057
        %v6318 = vmul.f32 %v4467, %v6061
        %v6319 = vmul.f32 %v4469, %v6065
        %v6320 = vmul.f32 %v4538, %v6069
        %v6321 = vmul.f32 %v4540, %v6073
        %v6322 = vmul.f32 %v4609, %v6077
        %v6323 = vmul.f32 %v4611, %v6081
        %v6324 = vmul.f32 %v4680, %v6085
        %v6325 = vmul.f32 %v4682, %v6089
        %v6326 = vmul.f32 %v4751, %v6093
        %v6327 = vmul.f32 %v4753, %v6097
        %v6328 = vmul.f32 %v4822, %v6101
        %v6329 = vmul.f32 %v4824, %v6105
        %v6330 = vmul.f32 %v4893, %v6109
        %v6331 = vmul.f32 %v4895, %v6113
        %v6332 = vmul.f32 %v4964, %v6117
        %v6333 = vmul.f32 %v4966, %v6121
        %v6334 = vmul.f32 %v5035, %v6125
        %v6335 = vmul.f32 %v5037, %v6129
        %v6336 = vmul.f32 %v5106, %v6133
        %v6337 = vmul.f32 %v5108, %v6137
        %v6338 = vmul.f32 %v5177, %v6141
        %v6339 = vmul.f32 %v5179, %v6145
        %v6340 = vmul.f32 %v5248, %v6149
        %v6341 = vmul.f32 %v5250, %v6153
        %v6342 = vmul.f32 %v5319, %v6157
        %v6343 = vmul.f32 %v5321, %v6161
        %v6344 = vmul.f32 %v5390, %v6165
        %v6345 = vmul.f32 %v5392, %v6169
        %v6346 = vmul.f32 %v5461, %v6173
        %v6347 = vmul.f32 %v5463, %v6177
        %v6348 = vmul.f32 %v5532, %v6181
        %v6349 = vmul.f32 %v5534, %v6185
        %v6350 = vmul.f32 %v5603, %v6189
        %v6351 = vmul.f32 %v5605, %v6193
        %v6352 = vmul.f32 %v5674, %v6197
        %v6353 = vmul.f32 %v5676, %v6201
        %v6354 = vmul.f32 %v5745, %v6205
        %v6355 = vmul.f32 %v5747, %v6209
        %v6356 = vmul.f32 %v5816, %v6213
        %v6357 = vmul.f32 %v5818, %v6217
        %v6358 = vmul.f32 %v5887, %v6221
        %v6359 = vmul.f32 %v5889, %v6225
        %v6360 = vmul.f32 %v5958, %v6229
        %v6361 = vmul.f32 %v5960, %v6233
        %v6426 = vcombine.low %v6298, %v6299
        %v6427 = vcombine.low %v6300, %v6301
        %v6429 = vunpack.c.l.s4 1983009808
        %v6430 = vunpack.c.0.s8 %v6429
        %v6431 = vlaneseq
        %v6432 = vshrl.u32 %v6431, 7
        %v6433 = vsub.s32 %v6430, %v6432
        %v6434 = vrot.slane %v6426, %v6433
        %v6436 = vunpack.c.l.s4 1983009808
        %v6437 = vunpack.c.0.s8 %v6436
        %v6438 = vlaneseq
        %v6439 = vshrl.u32 %v6438, 7
        %v6440 = vsub.s32 %v6437, %v6439
        %v6441 = vrot.slane %v6427, %v6440
        %v6442 = vcombine.low %v6434, %v6441
        %v6443 = vcombine.low %v6302, %v6303
        %v6444 = vcombine.low %v6304, %v6305
        %v6446 = vunpack.c.l.s4 1983009808
        %v6447 = vunpack.c.0.s8 %v6446
        %v6448 = vlaneseq
        %v6449 = vshrl.u32 %v6448, 7
        %v6450 = vsub.s32 %v6447, %v6449
        %v6451 = vrot.slane %v6443, %v6450
        %v6453 = vunpack.c.l.s4 1983009808
        %v6454 = vunpack.c.0.s8 %v6453
        %v6455 = vlaneseq
        %v6456 = vshrl.u32 %v6455, 7
        %v6457 = vsub.s32 %v6454, %v6456
        %v6458 = vrot.slane %v6444, %v6457
        %v6459 = vcombine.low %v6451, %v6458
        %v6460 = vcombine.low %v6306, %v6307
        %v6461 = vcombine.low %v6308, %v6309
        %v6463 = vunpack.c.l.s4 1983009808
        %v6464 = vunpack.c.0.s8 %v6463
        %v6465 = vlaneseq
        %v6466 = vshrl.u32 %v6465, 7
        %v6467 = vsub.s32 %v6464, %v6466
        %v6468 = vrot.slane %v6460, %v6467
        %v6470 = vunpack.c.l.s4 1983009808
        %v6471 = vunpack.c.0.s8 %v6470
        %v6472 = vlaneseq
        %v6473 = vshrl.u32 %v6472, 7
        %v6474 = vsub.s32 %v6471, %v6473
        %v6475 = vrot.slane %v6461, %v6474
        %v6476 = vcombine.low %v6468, %v6475
        %v6477 = vcombine.low %v6310, %v6311
        %v6478 = vcombine.low %v6312, %v6313
        %v6480 = vunpack.c.l.s4 1983009808
        %v6481 = vunpack.c.0.s8 %v6480
        %v6482 = vlaneseq
        %v6483 = vshrl.u32 %v6482, 7
        %v6484 = vsub.s32 %v6481, %v6483
        %v6485 = vrot.slane %v6477, %v6484
        %v6487 = vunpack.c.l.s4 1983009808
        %v6488 = vunpack.c.0.s8 %v6487
        %v6489 = vlaneseq
        %v6490 = vshrl.u32 %v6489, 7
        %v6491 = vsub.s32 %v6488, %v6490
        %v6492 = vrot.slane %v6478, %v6491
        %v6493 = vcombine.low %v6485, %v6492
        %v6494 = vcombine.low %v6314, %v6315
        %v6495 = vcombine.low %v6316, %v6317
        %v6497 = vunpack.c.l.s4 1983009808
        %v6498 = vunpack.c.0.s8 %v6497
        %v6499 = vlaneseq
        %v6500 = vshrl.u32 %v6499, 7
        %v6501 = vsub.s32 %v6498, %v6500
        %v6502 = vrot.slane %v6494, %v6501
        %v6504 = vunpack.c.l.s4 1983009808
        %v6505 = vunpack.c.0.s8 %v6504
        %v6506 = vlaneseq
        %v6507 = vshrl.u32 %v6506, 7
        %v6508 = vsub.s32 %v6505, %v6507
        %v6509 = vrot.slane %v6495, %v6508
        %v6510 = vcombine.low %v6502, %v6509
        %v6511 = vcombine.low %v6318, %v6319
        %v6512 = vcombine.low %v6320, %v6321
        %v6514 = vunpack.c.l.s4 1983009808
        %v6515 = vunpack.c.0.s8 %v6514
        %v6516 = vlaneseq
        %v6517 = vshrl.u32 %v6516, 7
        %v6518 = vsub.s32 %v6515, %v6517
        %v6519 = vrot.slane %v6511, %v6518
        %v6521 = vunpack.c.l.s4 1983009808
        %v6522 = vunpack.c.0.s8 %v6521
        %v6523 = vlaneseq
        %v6524 = vshrl.u32 %v6523, 7
        %v6525 = vsub.s32 %v6522, %v6524
        %v6526 = vrot.slane %v6512, %v6525
        %v6527 = vcombine.low %v6519, %v6526
        %v6528 = vcombine.low %v6322, %v6323
        %v6529 = vcombine.low %v6324, %v6325
        %v6531 = vunpack.c.l.s4 1983009808
        %v6532 = vunpack.c.0.s8 %v6531
        %v6533 = vlaneseq
        %v6534 = vshrl.u32 %v6533, 7
        %v6535 = vsub.s32 %v6532, %v6534
        %v6536 = vrot.slane %v6528, %v6535
        %v6538 = vunpack.c.l.s4 1983009808
        %v6539 = vunpack.c.0.s8 %v6538
        %v6540 = vlaneseq
        %v6541 = vshrl.u32 %v6540, 7
        %v6542 = vsub.s32 %v6539, %v6541
        %v6543 = vrot.slane %v6529, %v6542
        %v6544 = vcombine.low %v6536, %v6543
        %v6545 = vcombine.low %v6326, %v6327
        %v6546 = vcombine.low %v6328, %v6329
        %v6548 = vunpack.c.l.s4 1983009808
        %v6549 = vunpack.c.0.s8 %v6548
        %v6550 = vlaneseq
        %v6551 = vshrl.u32 %v6550, 7
        %v6552 = vsub.s32 %v6549, %v6551
        %v6553 = vrot.slane %v6545, %v6552
        %v6555 = vunpack.c.l.s4 1983009808
        %v6556 = vunpack.c.0.s8 %v6555
        %v6557 = vlaneseq
        %v6558 = vshrl.u32 %v6557, 7
        %v6559 = vsub.s32 %v6556, %v6558
        %v6560 = vrot.slane %v6546, %v6559
        %v6561 = vcombine.low %v6553, %v6560
        %v6562 = vcombine.low %v6330, %v6331
        %v6563 = vcombine.low %v6332, %v6333
        %v6565 = vunpack.c.l.s4 1983009808
        %v6566 = vunpack.c.0.s8 %v6565
        %v6567 = vlaneseq
        %v6568 = vshrl.u32 %v6567, 7
        %v6569 = vsub.s32 %v6566, %v6568
        %v6570 = vrot.slane %v6562, %v6569
        %v6572 = vunpack.c.l.s4 1983009808
        %v6573 = vunpack.c.0.s8 %v6572
        %v6574 = vlaneseq
        %v6575 = vshrl.u32 %v6574, 7
        %v6576 = vsub.s32 %v6573, %v6575
        %v6577 = vrot.slane %v6563, %v6576
        %v6578 = vcombine.low %v6570, %v6577
        %v6579 = vcombine.low %v6334, %v6335
        %v6580 = vcombine.low %v6336, %v6337
        %v6582 = vunpack.c.l.s4 1983009808
        %v6583 = vunpack.c.0.s8 %v6582
        %v6584 = vlaneseq
        %v6585 = vshrl.u32 %v6584, 7
        %v6586 = vsub.s32 %v6583, %v6585
        %v6587 = vrot.slane %v6579, %v6586
        %v6589 = vunpack.c.l.s4 1983009808
        %v6590 = vunpack.c.0.s8 %v6589
        %v6591 = vlaneseq
        %v6592 = vshrl.u32 %v6591, 7
        %v6593 = vsub.s32 %v6590, %v6592
        %v6594 = vrot.slane %v6580, %v6593
        %v6595 = vcombine.low %v6587, %v6594
        %v6596 = vcombine.low %v6338, %v6339
        %v6597 = vcombine.low %v6340, %v6341
        %v6599 = vunpack.c.l.s4 1983009808
        %v6600 = vunpack.c.0.s8 %v6599
        %v6601 = vlaneseq
        %v6602 = vshrl.u32 %v6601, 7
        %v6603 = vsub.s32 %v6600, %v6602
        %v6604 = vrot.slane %v6596, %v6603
        %v6606 = vunpack.c.l.s4 1983009808
        %v6607 = vunpack.c.0.s8 %v6606
        %v6608 = vlaneseq
        %v6609 = vshrl.u32 %v6608, 7
        %v6610 = vsub.s32 %v6607, %v6609
        %v6611 = vrot.slane %v6597, %v6610
        %v6612 = vcombine.low %v6604, %v6611
        %v6613 = vcombine.low %v6342, %v6343
        %v6614 = vcombine.low %v6344, %v6345
        %v6616 = vunpack.c.l.s4 1983009808
        %v6617 = vunpack.c.0.s8 %v6616
        %v6618 = vlaneseq
        %v6619 = vshrl.u32 %v6618, 7
        %v6620 = vsub.s32 %v6617, %v6619
        %v6621 = vrot.slane %v6613, %v6620
        %v6623 = vunpack.c.l.s4 1983009808
        %v6624 = vunpack.c.0.s8 %v6623
        %v6625 = vlaneseq
        %v6626 = vshrl.u32 %v6625, 7
        %v6627 = vsub.s32 %v6624, %v6626
        %v6628 = vrot.slane %v6614, %v6627
        %v6629 = vcombine.low %v6621, %v6628
        %v6630 = vcombine.low %v6346, %v6347
        %v6631 = vcombine.low %v6348, %v6349
        %v6633 = vunpack.c.l.s4 1983009808
        %v6634 = vunpack.c.0.s8 %v6633
        %v6635 = vlaneseq
        %v6636 = vshrl.u32 %v6635, 7
        %v6637 = vsub.s32 %v6634, %v6636
        %v6638 = vrot.slane %v6630, %v6637
        %v6640 = vunpack.c.l.s4 1983009808
        %v6641 = vunpack.c.0.s8 %v6640
        %v6642 = vlaneseq
        %v6643 = vshrl.u32 %v6642, 7
        %v6644 = vsub.s32 %v6641, %v6643
        %v6645 = vrot.slane %v6631, %v6644
        %v6646 = vcombine.low %v6638, %v6645
        %v6647 = vcombine.low %v6350, %v6351
        %v6648 = vcombine.low %v6352, %v6353
        %v6650 = vunpack.c.l.s4 1983009808
        %v6651 = vunpack.c.0.s8 %v6650
        %v6652 = vlaneseq
        %v6653 = vshrl.u32 %v6652, 7
        %v6654 = vsub.s32 %v6651, %v6653
        %v6655 = vrot.slane %v6647, %v6654
        %v6657 = vunpack.c.l.s4 1983009808
        %v6658 = vunpack.c.0.s8 %v6657
        %v6659 = vlaneseq
        %v6660 = vshrl.u32 %v6659, 7
        %v6661 = vsub.s32 %v6658, %v6660
        %v6662 = vrot.slane %v6648, %v6661
        %v6663 = vcombine.low %v6655, %v6662
        %v6664 = vcombine.low %v6354, %v6355
        %v6665 = vcombine.low %v6356, %v6357
        %v6667 = vunpack.c.l.s4 1983009808
        %v6668 = vunpack.c.0.s8 %v6667
        %v6669 = vlaneseq
        %v6670 = vshrl.u32 %v6669, 7
        %v6671 = vsub.s32 %v6668, %v6670
        %v6672 = vrot.slane %v6664, %v6671
        %v6674 = vunpack.c.l.s4 1983009808
        %v6675 = vunpack.c.0.s8 %v6674
        %v6676 = vlaneseq
        %v6677 = vshrl.u32 %v6676, 7
        %v6678 = vsub.s32 %v6675, %v6677
        %v6679 = vrot.slane %v6665, %v6678
        %v6680 = vcombine.low %v6672, %v6679
        %v6681 = vcombine.low %v6358, %v6359
        %v6682 = vcombine.low %v6360, %v6361
        %v6684 = vunpack.c.l.s4 1983009808
        %v6685 = vunpack.c.0.s8 %v6684
        %v6686 = vlaneseq
        %v6687 = vshrl.u32 %v6686, 7
        %v6688 = vsub.s32 %v6685, %v6687
        %v6689 = vrot.slane %v6681, %v6688
        %v6691 = vunpack.c.l.s4 1983009808
        %v6692 = vunpack.c.0.s8 %v6691
        %v6693 = vlaneseq
        %v6694 = vshrl.u32 %v6693, 7
        %v6695 = vsub.s32 %v6692, %v6694
        %v6696 = vrot.slane %v6682, %v6695
        %v6697 = vcombine.low %v6689, %v6696
        %6714 = vst [vmem:[%s305] sm:$0xff] %v6442
        %6715 = vst [vmem:[%s305 + $0x8] sm:$0xff] %v6459
        %6716 = vst [vmem:[%s305 + $0x10] sm:$0xff] %v6476
        %6717 = vst [vmem:[%s305 + $0x18] sm:$0xff] %v6493
        %6718 = vst [vmem:[%s305 + $0x20] sm:$0xff] %v6510
        %6719 = vst [vmem:[%s305 + $0x28] sm:$0xff] %v6527
        %6720 = vst [vmem:[%s305 + $0x30] sm:$0xff] %v6544
        %6721 = vst [vmem:[%s305 + $0x38] sm:$0xff] %v6561
        %6722 = vst [vmem:[%s305 + $0x40] sm:$0xff] %v6578
        %6723 = vst [vmem:[%s305 + $0x48] sm:$0xff] %v6595
        %6724 = vst [vmem:[%s305 + $0x50] sm:$0xff] %v6612
        %6725 = vst [vmem:[%s305 + $0x58] sm:$0xff] %v6629
        %6726 = vst [vmem:[%s305 + $0x60] sm:$0xff] %v6646
        %6727 = vst [vmem:[%s305 + $0x68] sm:$0xff] %v6663
        %6728 = vst [vmem:[%s305 + $0x70] sm:$0xff] %v6680
        %6729 = vst [vmem:[%s305 + $0x78] sm:$0xff] %v6697
        %s6730 = sand.u32 %s170, 1
        %s6731 = scalar_lea.sflag [#allocation4], %s6730
        %s6732 = sand.u32 %s170, 1
        %s6733 = smul.addr %s6732, 128
        %s6734 = scalar_lea.vmem [#allocation7], %s6733
        // Predicated region
        $region53: #{tpu_custom_call.1} parent=43 // pred_check
          %p6735 = pneg %p180
        $region54: #{tpu_custom_call.1} parent=43 // pred_check_branch
          %6737 = sbr.rel (%p6735) target = $region56
        $region55: #{tpu_custom_call.1} parent=43 // pred_region
          %s6738 = smul.u32 64, %s26
          %s6740 = ssub.s32 2048, 2048
          %6741 = vsyncadd %s6731, %s6740
          %s6742 = smul.addr %s6738, 32
          %s6743 = scalar_lea.hbm %s6, %s6742
          %s6745 = sshll.u32 %s6734, 4
          %s6746 = int_to_ptr.vmem [resolvable:$true] %s6745
          %6748 = dma.vmem_to_hbm [thread:$0]  %s6746, 2048, %s6743, %s6731
        $region56: #{tpu_custom_call.1} parent=43 // pred_fallthru
          _
      $region44: #{tpu_custom_call.1} parent=5 // pred_fallthru
        _
      %p6749 = scmp.le.s32.totalorder 2, %s21
      // Predicated region
      $region57: #{tpu_custom_call.1} parent=5 // pred_check
        %p6750 = pneg %p6749
      $region58: #{tpu_custom_call.1} parent=5 // pred_check_branch
        %6752 = sbr.rel (%p6750) target = $region60
      $region59: #{tpu_custom_call.1} parent=5 // pred_region
        %s6753 = ssub.s32 %s21, 2
        // Predicated region
        $region61: #{tpu_custom_call.1} parent=59 // pred_check
          %p6754 = pneg %p186
        $region62: #{tpu_custom_call.1} parent=59 // pred_check_branch
          %6756 = sbr.rel (%p6754) target = $region64
        $region63: #{tpu_custom_call.1} parent=59 // pred_region
          %s6757 = sand.u32 %s171, 1
          %s6758 = scalar_lea.sflag [#allocation4], %s6757
          %s6759 = sand.u32 %s171, 1
          %s6760 = smul.addr %s6759, 128
          %s6761 = scalar_lea.vmem [#allocation7], %s6760
          %6762 = dma.done %s6758, 2048
        $region64: #{tpu_custom_call.1} parent=59 // pred_fallthru
          _
      $region60: #{tpu_custom_call.1} parent=5 // pred_fallthru
        _
    $region6: #{tpu_custom_call.1} parent=1 // loop_footer
      %s25 = sadd.s32 1, %s21
    $region7: #{tpu_custom_call.1} parent=1 // loop_footer_branch
      %20 = sbr.rel target = $region3
    $region8: #{tpu_custom_call.1} parent=1 // loop_exit
      _
    %6763 = vsyncpa [#allocation3], 1
    %s6764 = scalar_lea.sflag [#allocation3], 1
    %6765 = vsyncpa %s6764, 1
    %6766 = vsyncpa [#allocation6], 1
    %s6767 = scalar_lea.sflag [#allocation6], 1
    %6768 = vsyncpa %s6767, 1
    %6769 = vsyncpa [#allocation4], 1
    %s6770 = scalar_lea.sflag [#allocation4], 1
    %6771 = vsyncpa %s6770, 1

</llo_original>
